<compile_context>
chip_gen: v5e
topology: v5e:2x2
jax: 0.10.0
libtpu: 0.0.40
codegen_flags: <defaults>
</compile_context>

<pallas_src>
import functools

import jax
import jax.numpy as jnp
from jax.experimental import pallas as pl
from jax.experimental.pallas import tpu as pltpu


def _round_up(x, m):
    return ((x + m - 1) // m) * m


def _log_sigmoid(x):
    # numerically stable log(sigmoid(x)) = min(x, 0) - log(1 + exp(-|x|))
    return jnp.minimum(x, 0.0) - jnp.log(1.0 + jnp.exp(-jnp.abs(x)))


def _fm_cbow_gather_kernel(uidx_ref, pwidx_ref, nwidx_ref, u_tab_ref, w_tab_ref,
                           vt_ref, v2t_ref, out_ref, *, precision):
    """Small-vocab path: gather embedding rows in-kernel via one-hot MXU matmuls.

    uidx_ref : (C, TB, 1) int32   context-word indices for TB batch elements
    pwidx_ref: (TB, 1)    int32   positive-word indices
    nwidx_ref: (N, TB, 1) int32   negative-word indices
    u_tab_ref: (Vp, D) f32        padded u-embedding table (grid-invariant)
    w_tab_ref: (Vp, D) f32        padded w-embedding table (grid-invariant)
    vt_ref   : (D, v_dim) f32     v.T        (grid-invariant)
    v2t_ref  : (D, v_dim) f32     (v*v).T    (grid-invariant)
    out_ref  : (TB, 1)  f32       per-batch-element logsigmoid contribution
    """
    C, TB, _ = uidx_ref.shape
    N = nwidx_ref.shape[0]
    Vp, D = u_tab_ref.shape
    f32 = jnp.float32

    u_tab = u_tab_ref[...]
    w_tab = w_tab_ref[...]
    vt = vt_ref[...]
    v2t = v2t_ref[...]

    # Per-vocab-word FM projections (tiny, grid-invariant recompute per step).
    a1 = jnp.dot(u_tab, vt, precision=precision,
                 preferred_element_type=f32)                       # (Vp, v_dim)
    a2 = jnp.dot(u_tab * u_tab, v2t, precision=precision,
                 preferred_element_type=f32)                       # (Vp, v_dim)

    # Context one-hots (exact 0/1 selection): gather == one-hot @ table.
    ctx_iota = jax.lax.broadcasted_iota(jnp.int32, (C, TB, Vp), 2)
    oc3 = (uidx_ref[...] == ctx_iota).astype(f32)                  # (C, TB, Vp)
    oc = oc3.reshape(C * TB, Vp)                                   # merge leading dims

    # FM interaction, fused over the whole (C*TB) row block (two MXU pushes).
    p1 = jnp.dot(oc, a1, precision=precision, preferred_element_type=f32)
    p2 = jnp.dot(oc, a2, precision=precision, preferred_element_type=f32)
    dk = jnp.sum(p1 * p1 - p2, axis=1, keepdims=True)              # (C*TB, 1)
    fm = 0.5 * jnp.sum(dk.reshape(C, TB, 1), axis=0)               # (TB, 1)

    # sum_c E[c] via the context count matrix -> one gather matmul.
    counts = jnp.sum(oc3, axis=0)                                  # (TB, Vp)
    sum_e = jnp.dot(counts, u_tab, precision=precision,
                    preferred_element_type=f32)                    # (TB, D)
    # sum_c (E[c] + fm) == sum_c E[c] + C * fm
    u_b = sum_e + jnp.float32(C) * fm                              # (TB, D)

    # Positive / summed-negative word embeddings (sum of dots == dot of sums).
    pos_iota = jax.lax.broadcasted_iota(jnp.int32, (TB, Vp), 1)
    o_pos = (pwidx_ref[...] == pos_iota).astype(f32)               # (TB, Vp)
    neg_iota = jax.lax.broadcasted_iota(jnp.int32, (N, TB, Vp), 2)
    o_neg = jnp.sum((nwidx_ref[...] == neg_iota).astype(f32), axis=0)   # (TB, Vp)
    w_pos = jnp.dot(o_pos, w_tab, precision=precision, preferred_element_type=f32)
    w_neg = jnp.dot(o_neg, w_tab, precision=precision, preferred_element_type=f32)

    pos_score = jnp.sum(u_b * w_pos, axis=1, keepdims=True)        # (TB, 1)
    neg_score = jnp.sum(u_b * w_neg, axis=1, keepdims=True)        # (TB, 1)
    out_ref[...] = _log_sigmoid(pos_score) + _log_sigmoid(-neg_score)


def _fm_cbow_stream_kernel(act_ref, vt_ref, v2t_ref, out_ref, *, n_ctx, precision):
    """Large-vocab fallback: gathered activations streamed (bf16 by default).

    act_ref: (C+N+1, TB, D)  rows [0,C) context, row C positive, rows C+1.. negatives
    """
    _, TB, D = act_ref.shape
    C = n_ctx
    f32 = jnp.float32

    acts = act_ref[...].astype(f32)                                # (C+N+1, TB, D)
    vt = vt_ref[...].astype(f32)
    v2t = v2t_ref[...].astype(f32)

    e3 = acts[:C]                                                  # (C, TB, D)
    e_flat = e3.reshape(C * TB, D)                                 # merge leading dims
    p1 = jnp.dot(e_flat, vt, precision=precision, preferred_element_type=f32)
    p2 = jnp.dot(e_flat * e_flat, v2t, precision=precision,
                 preferred_element_type=f32)
    dk = jnp.sum(p1 * p1 - p2, axis=1, keepdims=True)              # (C*TB, 1)
    fm = 0.5 * jnp.sum(dk.reshape(C, TB, 1), axis=0)               # (TB, 1)

    sum_e = jnp.sum(e3, axis=0)                                    # (TB, D)
    u_b = sum_e + jnp.float32(C) * fm                              # (TB, D)

    w_pos = acts[C]                                                # (TB, D)
    w_neg = jnp.sum(acts[C + 1:], axis=0)                          # (TB, D)
    pos_score = jnp.sum(u_b * w_pos, axis=1, keepdims=True)
    neg_score = jnp.sum(u_b * w_neg, axis=1, keepdims=True)
    out_ref[...] = _log_sigmoid(pos_score) + _log_sigmoid(-neg_score)


def fm_cbow_forward(u_table, w_table, v, pos_u, pos_w, neg_w, *,
                    block_b=512,
                    gather_in_kernel=None,
                    act_dtype=jnp.bfloat16,
                    precision=jax.lax.Precision.DEFAULT):
    """Scalar loss matching FMCBOWModel.forward."""
    B, C = pos_u.shape
    N = neg_w.shape[1]
    V, D = u_table.shape
    v_dim = v.shape[0]

    Vp = _round_up(V, 128)
    if gather_in_kernel is None:
        # Small-vocab path: tables + per-step one-hots comfortably fit VMEM.
        gather_in_kernel = Vp <= 1024

    # Batch tile: multiple of 16 (bf16 sublane packing), sized to a VMEM budget.
    if gather_in_kernel:
        row_bytes = 4 * ((C + N + 1) * Vp + 4 * D)          # one-hots + f32 intermediates
    else:
        row_bytes = (C + N + 1) * D * (2 * jnp.dtype(act_dtype).itemsize + 4)
    budget = 24 * 1024 * 1024
    tb_cap = max(16, (budget // max(row_bytes, 1)) // 16 * 16)
    TB = min(_round_up(block_b, 16), _round_up(B, 16), tb_cap)
    B_pad = _round_up(B, TB)
    nb = B_pad // TB

    pos_u = jnp.asarray(pos_u, jnp.int32)
    pos_w = jnp.asarray(pos_w, jnp.int32)
    neg_w = jnp.asarray(neg_w, jnp.int32)
    pad = B_pad - B
    if pad:
        pos_u = jnp.concatenate([pos_u, jnp.zeros((pad, C), jnp.int32)], 0)
        pos_w = jnp.concatenate([pos_w, jnp.zeros((pad,), jnp.int32)], 0)
        neg_w = jnp.concatenate([neg_w, jnp.zeros((pad, N), jnp.int32)], 0)

    u_table = u_table.astype(jnp.float32)
    w_table = w_table.astype(jnp.float32)
    vt = v.astype(jnp.float32).T                                  # (D, v_dim)
    v2t = (v.astype(jnp.float32) ** 2).T                          # (D, v_dim)

    compiler_params = pltpu.CompilerParams(
        dimension_semantics=("parallel",),
        vmem_limit_bytes=48 * 1024 * 1024,   # fits v5e/v6e defaults raised; < v7x 64 MiB/TC
    )
    out_shape = jax.ShapeDtypeStruct((B_pad, 1), jnp.float32)
    out_spec = pl.BlockSpec((TB, 1), lambda b: (b, 0))

    if gather_in_kernel:
        # Ship only indices + the (grid-invariant) tables; gather in-kernel.
        u_idx = pos_u.T[:, :, None]                               # (C, B_pad, 1)
        pw_idx = pos_w[:, None]                                   # (B_pad, 1)
        nw_idx = neg_w.T[:, :, None]                              # (N, B_pad, 1)
        u_tab_p = jnp.pad(u_table, ((0, Vp - V), (0, 0)))
        w_tab_p = jnp.pad(w_table, ((0, Vp - V), (0, 0)))

        contrib = pl.pallas_call(
            functools.partial(_fm_cbow_gather_kernel, precision=precision),
            out_shape=out_shape,
            grid_spec=pltpu.PrefetchScalarGridSpec(
                num_scalar_prefetch=0,
                grid=(nb,),
                in_specs=[
                    pl.BlockSpec((C, TB, 1), lambda b: (0, b, 0)),
                    pl.BlockSpec((TB, 1), lambda b: (b, 0)),
                    pl.BlockSpec((N, TB, 1), lambda b: (0, b, 0)),
                    pl.BlockSpec((Vp, D), lambda b: (0, 0)),
                    pl.BlockSpec((Vp, D), lambda b: (0, 0)),
                    pl.BlockSpec((D, v_dim), lambda b: (0, 0)),
                    pl.BlockSpec((D, v_dim), lambda b: (0, 0)),
                ],
                out_specs=out_spec,
            ),
            compiler_params=compiler_params,
        )(u_idx, pw_idx, nw_idx, u_tab_p, w_tab_p, vt, v2t)
    else:
        # Large-vocab fallback: XLA gathers the rows, kernel streams them in bf16.
        # TODO(synk): for huge tables, a manual make_async_copy row-gather driven by
        # scalar-prefetched indices would remove this gathered-activation round trip.
        u_ctx_t = u_table[pos_u.T]                                # (C, B_pad, D)
        wn_idx = jnp.concatenate([pos_w[None, :], neg_w.T], axis=0)   # (N+1, B_pad)
        wn_t = w_table[wn_idx]                                    # (N+1, B_pad, D)
        acts = jnp.concatenate([u_ctx_t, wn_t], axis=0).astype(act_dtype)

        contrib = pl.pallas_call(
            functools.partial(_fm_cbow_stream_kernel, n_ctx=C, precision=precision),
            out_shape=out_shape,
            grid_spec=pltpu.PrefetchScalarGridSpec(
                num_scalar_prefetch=0,
                grid=(nb,),
                in_specs=[
                    pl.BlockSpec((C + N + 1, TB, D), lambda b: (0, b, 0)),
                    pl.BlockSpec((D, v_dim), lambda b: (0, 0)),
                    pl.BlockSpec((D, v_dim), lambda b: (0, 0)),
                ],
                out_specs=out_spec,
            ),
            compiler_params=compiler_params,
        )(acts, vt, v2t)

    # Tiny final reduce: drop padded rows (they must never reach an accumulator),
    # sum, negate.
    return -jnp.sum(contrib[:B, 0])


def fm_cbow_reference(u_table, w_table, v, pos_u, pos_w, neg_w):
    """Pure-JAX reference of the PyTorch forward (f32, HIGHEST precision)."""
    hp = jax.lax.Precision.HIGHEST
    E = u_table[pos_u]                                            # (B, C, D)
    p1 = jnp.einsum('bcd,vd->bcv', E, v, precision=hp)
    p2 = jnp.einsum('bcd,vd->bcv', E * E, v * v, precision=hp)
    fm = 0.5 * jnp.sum(p1 * p1 - p2, axis=(1, 2))                 # (B,)
    u_b = jnp.sum(E, axis=1) + E.shape[1] * fm[:, None]           # (B, D)
    pw = w_table[pos_w]                                           # (B, D)
    nw = w_table[neg_w]                                           # (B, N, D)
    pos_score = jnp.sum(u_b * pw, axis=1)                         # (B,)
    neg_score = jnp.sum(jnp.einsum('bnd,bd->bn', nw, u_b, precision=hp), axis=1)
    loss = (jnp.sum(jax.nn.log_sigmoid(pos_score)) +
            jnp.sum(jax.nn.log_sigmoid(-neg_score)))
    return -loss


if __name__ == "__main__":
    # Small shapes consistent with the module.
    emb_size = 64        # vocabulary size
    emb_dimension = 128  # D (lane-aligned)
    v_dim = 8            # FM latent dim
    B, C, N = 20, 8, 8   # batch, context words per center, negatives

    key = jax.random.PRNGKey(0)
    k1, k2, k3, k4, k5, k6 = jax.random.split(key, 6)

    int_range = 0.5 / emb_dimension
    u_table = jax.random.uniform(k1, (emb_size, emb_dimension), jnp.float32,
                                 -int_range, int_range)
    # Original __init__ zero-inits w_embeddings (uniform_(-0, 0)); use a small random
    # deterministic init instead so the w-scoring path is actually exercised.
    w_table = 0.5 * jax.random.normal(k2, (emb_size, emb_dimension), jnp.float32)
    v = jax.random.normal(k3, (v_dim, emb_dimension), jnp.float32)

    pos_u = jax.random.randint(k4, (B, C), 0, emb_size)
    pos_w = jax.random.randint(k5, (B,), 0, emb_size)
    neg_w = jax.random.randint(k6, (B, N), 0, emb_size)

    ref = jax.block_until_ready(
        fm_cbow_reference(u_table, w_table, v, pos_u, pos_w, neg_w))

    # 1) In-kernel-gather path, multi-block grid, exact (HIGHEST) matmuls.
    loss_exact = jax.block_until_ready(fm_cbow_forward(
        u_table, w_table, v, pos_u, pos_w, neg_w,
        block_b=8, precision=jax.lax.Precision.HIGHEST))
    assert jnp.isfinite(loss_exact)
    assert jnp.allclose(loss_exact, ref, rtol=1e-3, atol=1e-3), (loss_exact, ref)

    # 2) In-kernel-gather path with the fast DEFAULT matmul precision (perf default).
    loss_fast = jax.block_until_ready(fm_cbow_forward(
        u_table, w_table, v, pos_u, pos_w, neg_w))
    assert jnp.isfinite(loss_fast)
    assert jnp.allclose(loss_fast, ref, rtol=5e-2, atol=1.0), (loss_fast, ref)

    # 3) Large-vocab fallback: streamed bf16 activations (HBM traffic halved).
    loss_stream = jax.block_until_ready(fm_cbow_forward(
        u_table, w_table, v, pos_u, pos_w, neg_w,
        gather_in_kernel=False, act_dtype=jnp.bfloat16))
    assert jnp.isfinite(loss_stream)
    assert jnp.allclose(loss_stream, ref, rtol=5e-2, atol=1.0), (loss_stream, ref)

    print("KERNEL_OK")
</pallas_src>

<mosaic_0001>
module attributes {stable_mosaic.version = 11 : i64} {
  func.func @_fm_cbow_gather_kernel(%arg0: i32, %arg1: memref<8x16x1xi32, #tpu.memory_space<vmem>>, %arg2: memref<16x1xi32, #tpu.memory_space<vmem>>, %arg3: memref<8x16x1xi32, #tpu.memory_space<vmem>>, %arg4: memref<128x128xf32, #tpu.memory_space<vmem>>, %arg5: memref<128x128xf32, #tpu.memory_space<vmem>>, %arg6: memref<128x8xf32, #tpu.memory_space<vmem>>, %arg7: memref<128x8xf32, #tpu.memory_space<vmem>>, %arg8: memref<16x1xf32, #tpu.memory_space<vmem>>) attributes {dimension_semantics = [#tpu.dimension_semantics<parallel>], iteration_bounds = array<i64: 2>, scalar_prefetch = 0 : i64, scratch_operands = 0 : i64, tpu.core_type = #tpu.core_type<tc>, window_params = [{transform_indices = @transform_0, window_bounds = array<i64: 8, 16, 1>}, {transform_indices = @transform_1, window_bounds = array<i64: 16, 1>}, {transform_indices = @transform_2, window_bounds = array<i64: 8, 16, 1>}, {pipeline_mode = #tpu.pipeline_mode<synchronous>, transform_indices = @transform_3, window_bounds = array<i64: 128, 128>}, {pipeline_mode = #tpu.pipeline_mode<synchronous>, transform_indices = @transform_4, window_bounds = array<i64: 128, 128>}, {pipeline_mode = #tpu.pipeline_mode<synchronous>, transform_indices = @transform_5, window_bounds = array<i64: 128, 8>}, {pipeline_mode = #tpu.pipeline_mode<synchronous>, transform_indices = @transform_6, window_bounds = array<i64: 128, 8>}, {transform_indices = @transform_7, window_bounds = array<i64: 16, 1>}]} {
    %c0 = arith.constant 0 : index
    %c0_0 = arith.constant 0 : index
    %0 = vector.load %arg4[%c0, %c0_0] : memref<128x128xf32, #tpu.memory_space<vmem>>, vector<128x128xf32>
    %c0_1 = arith.constant 0 : index
    %c0_2 = arith.constant 0 : index
    %1 = vector.load %arg5[%c0_1, %c0_2] : memref<128x128xf32, #tpu.memory_space<vmem>>, vector<128x128xf32>
    %c0_3 = arith.constant 0 : index
    %c0_4 = arith.constant 0 : index
    %2 = vector.load %arg6[%c0_3, %c0_4] : memref<128x8xf32, #tpu.memory_space<vmem>>, vector<128x8xf32>
    %c0_5 = arith.constant 0 : index
    %c0_6 = arith.constant 0 : index
    %3 = vector.load %arg7[%c0_5, %c0_6] : memref<128x8xf32, #tpu.memory_space<vmem>>, vector<128x8xf32>
    %cst = arith.constant dense<0.000000e+00> : vector<128x8xf32>
    %4 = tpu.matmul %0, %2, %cst {dimension_numbers = #tpu.dot_dimension_numbers<[1], [0], [0], [1], [0, 0, 1, 1], [], []>, precision = #tpu.contract_precision<fp32>} : vector<128x128xf32>, vector<128x8xf32>, vector<128x8xf32> -> vector<128x8xf32>
    %5 = arith.mulf %0, %0 : vector<128x128xf32>
    %cst_7 = arith.constant dense<0.000000e+00> : vector<128x8xf32>
    %6 = tpu.matmul %5, %3, %cst_7 {dimension_numbers = #tpu.dot_dimension_numbers<[1], [0], [0], [1], [0, 0, 1, 1], [], []>, precision = #tpu.contract_precision<fp32>} : vector<128x128xf32>, vector<128x8xf32>, vector<128x8xf32> -> vector<128x8xf32>
    %7 = tpu.iota {dimensions = array<i32: 2>} : vector<8x16x128xi32>
    %c0_8 = arith.constant 0 : index
    %c0_9 = arith.constant 0 : index
    %c0_10 = arith.constant 0 : index
    %8 = vector.load %arg1[%c0_8, %c0_9, %c0_10] : memref<8x16x1xi32, #tpu.memory_space<vmem>>, vector<8x16x1xi32>
    %9 = vector.broadcast %8 : vector<8x16x1xi32> to vector<8x16x128xi32>
    %10 = arith.cmpi eq, %9, %7 : vector<8x16x128xi32>
    %11 = arith.extui %10 : vector<8x16x128xi1> to vector<8x16x128xi32>
    %12 = arith.sitofp %11 : vector<8x16x128xi32> to vector<8x16x128xf32>
    %13 = vector.shape_cast %12 : vector<8x16x128xf32> to vector<128x128xf32>
    %cst_11 = arith.constant dense<0.000000e+00> : vector<128x8xf32>
    %14 = tpu.matmul %13, %4, %cst_11 {dimension_numbers = #tpu.dot_dimension_numbers<[1], [0], [0], [1], [0, 0, 1, 1], [], []>, precision = #tpu.contract_precision<fp32>} : vector<128x128xf32>, vector<128x8xf32>, vector<128x8xf32> -> vector<128x8xf32>
    %cst_12 = arith.constant dense<0.000000e+00> : vector<128x8xf32>
    %15 = tpu.matmul %13, %6, %cst_12 {dimension_numbers = #tpu.dot_dimension_numbers<[1], [0], [0], [1], [0, 0, 1, 1], [], []>, precision = #tpu.contract_precision<fp32>} : vector<128x128xf32>, vector<128x8xf32>, vector<128x8xf32> -> vector<128x8xf32>
    %16 = arith.mulf %14, %14 : vector<128x8xf32>
    %17 = arith.subf %16, %15 : vector<128x8xf32>
    %cst_13 = arith.constant dense<0.000000e+00> : vector<128xf32>
    %18 = vector.multi_reduction <add>, %17, %cst_13 [1] : vector<128x8xf32> to vector<128xf32>
    %19 = vector.shape_cast %18 : vector<128xf32> to vector<128x1xf32>
    %20 = vector.shape_cast %19 : vector<128x1xf32> to vector<8x16x1xf32>
    %cst_14 = arith.constant dense<0.000000e+00> : vector<16x1xf32>
    %21 = vector.multi_reduction <add>, %20, %cst_14 [0] : vector<8x16x1xf32> to vector<16x1xf32>
    %cst_15 = arith.constant 5.000000e-01 : f32
    %22 = vector.broadcast %cst_15 : f32 to vector<16x1xf32>
    %23 = arith.mulf %22, %21 : vector<16x1xf32>
    %cst_16 = arith.constant dense<0.000000e+00> : vector<16x128xf32>
    %24 = vector.multi_reduction <add>, %12, %cst_16 [0] : vector<8x16x128xf32> to vector<16x128xf32>
    %cst_17 = arith.constant dense<0.000000e+00> : vector<16x128xf32>
    %25 = tpu.matmul %24, %0, %cst_17 {dimension_numbers = #tpu.dot_dimension_numbers<[1], [0], [0], [1], [0, 0, 1, 1], [], []>, precision = #tpu.contract_precision<fp32>} : vector<16x128xf32>, vector<128x128xf32>, vector<16x128xf32> -> vector<16x128xf32>
    %cst_18 = arith.constant 8.000000e+00 : f32
    %26 = vector.broadcast %cst_18 : f32 to vector<16x1xf32>
    %27 = arith.mulf %26, %23 : vector<16x1xf32>
    %28 = vector.broadcast %27 : vector<16x1xf32> to vector<16x128xf32>
    %29 = arith.addf %25, %28 : vector<16x128xf32>
    %30 = tpu.iota {dimensions = array<i32: 1>} : vector<16x128xi32>
    %c0_19 = arith.constant 0 : index
    %c0_20 = arith.constant 0 : index
    %31 = vector.load %arg2[%c0_19, %c0_20] : memref<16x1xi32, #tpu.memory_space<vmem>>, vector<16x1xi32>
    %32 = vector.broadcast %31 : vector<16x1xi32> to vector<16x128xi32>
    %33 = arith.cmpi eq, %32, %30 : vector<16x128xi32>
    %34 = arith.extui %33 : vector<16x128xi1> to vector<16x128xi32>
    %35 = arith.sitofp %34 : vector<16x128xi32> to vector<16x128xf32>
    %36 = tpu.iota {dimensions = array<i32: 2>} : vector<8x16x128xi32>
    %c0_21 = arith.constant 0 : index
    %c0_22 = arith.constant 0 : index
    %c0_23 = arith.constant 0 : index
    %37 = vector.load %arg3[%c0_21, %c0_22, %c0_23] : memref<8x16x1xi32, #tpu.memory_space<vmem>>, vector<8x16x1xi32>
    %38 = vector.broadcast %37 : vector<8x16x1xi32> to vector<8x16x128xi32>
    %39 = arith.cmpi eq, %38, %36 : vector<8x16x128xi32>
    %40 = arith.extui %39 : vector<8x16x128xi1> to vector<8x16x128xi32>
    %41 = arith.sitofp %40 : vector<8x16x128xi32> to vector<8x16x128xf32>
    %cst_24 = arith.constant dense<0.000000e+00> : vector<16x128xf32>
    %42 = vector.multi_reduction <add>, %41, %cst_24 [0] : vector<8x16x128xf32> to vector<16x128xf32>
    %cst_25 = arith.constant dense<0.000000e+00> : vector<16x128xf32>
    %43 = tpu.matmul %35, %1, %cst_25 {dimension_numbers = #tpu.dot_dimension_numbers<[1], [0], [0], [1], [0, 0, 1, 1], [], []>, precision = #tpu.contract_precision<fp32>} : vector<16x128xf32>, vector<128x128xf32>, vector<16x128xf32> -> vector<16x128xf32>
    %cst_26 = arith.constant dense<0.000000e+00> : vector<16x128xf32>
    %44 = tpu.matmul %42, %1, %cst_26 {dimension_numbers = #tpu.dot_dimension_numbers<[1], [0], [0], [1], [0, 0, 1, 1], [], []>, precision = #tpu.contract_precision<fp32>} : vector<16x128xf32>, vector<128x128xf32>, vector<16x128xf32> -> vector<16x128xf32>
    %45 = arith.mulf %29, %43 : vector<16x128xf32>
    %cst_27 = arith.constant dense<0.000000e+00> : vector<16xf32>
    %46 = vector.multi_reduction <add>, %45, %cst_27 [1] : vector<16x128xf32> to vector<16xf32>
    %47 = vector.shape_cast %46 : vector<16xf32> to vector<16x1xf32>
    %48 = arith.mulf %29, %44 : vector<16x128xf32>
    %cst_28 = arith.constant dense<0.000000e+00> : vector<16xf32>
    %49 = vector.multi_reduction <add>, %48, %cst_28 [1] : vector<16x128xf32> to vector<16xf32>
    %50 = vector.shape_cast %49 : vector<16xf32> to vector<16x1xf32>
    %cst_29 = arith.constant 0.000000e+00 : f32
    %51 = vector.broadcast %cst_29 : f32 to vector<16x1xf32>
    %52 = arith.minimumf %47, %51 : vector<16x1xf32>
    %53 = math.absf %47 : vector<16x1xf32>
    %cst_30 = arith.constant 0.000000e+00 : f32
    %54 = vector.broadcast %cst_30 : f32 to vector<16x1xf32>
    %55 = arith.subf %54, %53 : vector<16x1xf32>
    %56 = math.exp %55 : vector<16x1xf32>
    %cst_31 = arith.constant 1.000000e+00 : f32
    %57 = vector.broadcast %cst_31 : f32 to vector<16x1xf32>
    %58 = arith.addf %57, %56 : vector<16x1xf32>
    %59 = math.log %58 : vector<16x1xf32>
    %60 = arith.subf %52, %59 : vector<16x1xf32>
    %cst_32 = arith.constant 0.000000e+00 : f32
    %61 = vector.broadcast %cst_32 : f32 to vector<16x1xf32>
    %62 = arith.subf %61, %50 : vector<16x1xf32>
    %cst_33 = arith.constant 0.000000e+00 : f32
    %63 = vector.broadcast %cst_33 : f32 to vector<16x1xf32>
    %64 = arith.minimumf %62, %63 : vector<16x1xf32>
    %65 = math.absf %62 : vector<16x1xf32>
    %cst_34 = arith.constant 0.000000e+00 : f32
    %66 = vector.broadcast %cst_34 : f32 to vector<16x1xf32>
    %67 = arith.subf %66, %65 : vector<16x1xf32>
    %68 = math.exp %67 : vector<16x1xf32>
    %cst_35 = arith.constant 1.000000e+00 : f32
    %69 = vector.broadcast %cst_35 : f32 to vector<16x1xf32>
    %70 = arith.addf %69, %68 : vector<16x1xf32>
    %71 = math.log %70 : vector<16x1xf32>
    %72 = arith.subf %64, %71 : vector<16x1xf32>
    %73 = arith.addf %60, %72 : vector<16x1xf32>
    %c0_36 = arith.constant 0 : index
    %c0_37 = arith.constant 0 : index
    %74 = vector.load %arg8[%c0_36, %c0_37] : memref<16x1xf32, #tpu.memory_space<vmem>>, vector<16x1xf32>
    tpu.vector_store %arg8[%c0_36, %c0_37], %73 {strides = array<i32>} : memref<16x1xf32, #tpu.memory_space<vmem>>, vector<16x1xf32>,
    return
  }
  func.func @transform_0(%arg0: i32) -> (i32, i32, i32) {
    %c0_i32 = arith.constant 0 : i32
    %c0_i32_0 = arith.constant 0 : i32
    %c0_i32_1 = arith.constant 0 : i32
    return %c0_i32, %arg0, %c0_i32_0 : i32, i32, i32
  }
  func.func @transform_1(%arg0: i32) -> (i32, i32) {
    %c0_i32 = arith.constant 0 : i32
    %c0_i32_0 = arith.constant 0 : i32
    return %arg0, %c0_i32 : i32, i32
  }
  func.func @transform_2(%arg0: i32) -> (i32, i32, i32) {
    %c0_i32 = arith.constant 0 : i32
    %c0_i32_0 = arith.constant 0 : i32
    %c0_i32_1 = arith.constant 0 : i32
    return %c0_i32, %arg0, %c0_i32_0 : i32, i32, i32
  }
  func.func @transform_3(%arg0: i32) -> (i32, i32) {
    %c0_i32 = arith.constant 0 : i32
    %c0_i32_0 = arith.constant 0 : i32
    %c0_i32_1 = arith.constant 0 : i32
    return %c0_i32, %c0_i32_0 : i32, i32
  }
  func.func @transform_4(%arg0: i32) -> (i32, i32) {
    %c0_i32 = arith.constant 0 : i32
    %c0_i32_0 = arith.constant 0 : i32
    %c0_i32_1 = arith.constant 0 : i32
    return %c0_i32, %c0_i32_0 : i32, i32
  }
  func.func @transform_5(%arg0: i32) -> (i32, i32) {
    %c0_i32 = arith.constant 0 : i32
    %c0_i32_0 = arith.constant 0 : i32
    %c0_i32_1 = arith.constant 0 : i32
    return %c0_i32, %c0_i32_0 : i32, i32
  }
  func.func @transform_6(%arg0: i32) -> (i32, i32) {
    %c0_i32 = arith.constant 0 : i32
    %c0_i32_0 = arith.constant 0 : i32
    %c0_i32_1 = arith.constant 0 : i32
    return %c0_i32, %c0_i32_0 : i32, i32
  }
  func.func @transform_7(%arg0: i32) -> (i32, i32) {
    %c0_i32 = arith.constant 0 : i32
    %c0_i32_0 = arith.constant 0 : i32
    return %arg0, %c0_i32 : i32, i32
  }
}

</mosaic_0001>

<llo_original>
// kernel: tpu_custom_call.1
$region0: #{tpu_custom_call.1}
  #allocation0 [shape = 'u32[]', space=smem, size = 0x4, offset = 0x4, fixed_abs, tag = 'smem constant byte address 0x4 - core index']
  #allocation1 [shape = 'u32[72,128]{1,0:T(1,128)}', space=vmem, size = 0x9000, scoped, tag = 'internal scratch']
  %s0 = inlined_call_operand.vmem [shape: s32[8,32,1], index: 0, kind: input, shape index: {}]
  %s1 = inlined_call_operand.vmem [shape: s32[32,1], index: 1, kind: input, shape index: {}]
  %s2 = inlined_call_operand.vmem [shape: s32[8,32,1], index: 2, kind: input, shape index: {}]
  %s3 = inlined_call_operand.vmem [shape: f32[128,128], index: 3, kind: input, shape index: {}]
  %s4 = inlined_call_operand.vmem [shape: f32[128,128], index: 4, kind: input, shape index: {}]
  %s5 = inlined_call_operand.vmem [shape: f32[128,8], index: 5, kind: input, shape index: {}]
  %s6 = inlined_call_operand.vmem [shape: f32[128,8], index: 6, kind: input, shape index: {}]
  %s7 = inlined_call_operand.vmem [shape: f32[32,1], index: 7, kind: output, shape index: {}]
  %s8 = sld [smem:[#allocation0]]
  $region137: #{tpu_custom_call.1} parent=0
    _
  %s10 = ssub.s32 1, %s8
  %s11 = scalar_select 0, %s10, %s8
  $region1: #{tpu_custom_call.1} parent=0
    #allocation2 [shape = 'u8[131072]{0}', space=vmem, size = 0x20000, scoped, tag = 'input window, operand 0']
    #allocation3 [shape = 'u8[131072]{0}', space=vmem, size = 0x20000, scoped, tag = 'input window, operand 2']
    loop: start=0, step=1, limit=4
    $region2: #{tpu_custom_call.1} parent=1 // loop_pre_header
      _
    $region3: #{tpu_custom_call.1} parent=1 // loop_header
      %s13 = sphi 0, %s17
      %p14 = scmp.ge.s32.totalorder %s13, 4
      %s23 = sphi 0, %s25
      %s26 = sphi 0, %s23
      %s27 = sphi 0, %s26
      %s43 = sphi 0, %s27
      %s49 = sphi 0, %s51
      %s52 = sphi 0, %s49
      %s53 = sphi 0, %s52
      %s69 = sphi 0, %s53
      %s75 = sphi 0, %s77
      %s78 = sphi 0, %s75
      %s79 = sphi 0, %s78
      %s95 = sphi 0, %s79
      %s99 = sphi 0, %s99
      %s101 = sphi 0, %s99
      %s102 = sphi 0, %s101
      %s116 = sphi 0, %s102
      %s120 = sphi 0, %s120
      %s122 = sphi 0, %s120
      %s123 = sphi 0, %s122
      %s137 = sphi 0, %s123
      %s141 = sphi 0, %s141
      %s143 = sphi 0, %s141
      %s144 = sphi 0, %s143
      %s158 = sphi 0, %s144
      %s162 = sphi 0, %s162
      %s164 = sphi 0, %s162
      %s165 = sphi 0, %s164
      %s179 = sphi 0, %s165
      %s185 = sphi 0, %s187
      %s188 = sphi 0, %s185
      %s189 = sphi 0, %s188
      %s205 = sphi 0, %s189
    $region4: #{tpu_custom_call.1} parent=1 // loop_header_branch
      %16 = sbr.rel (%p14) target = $region8
    $region5: #{tpu_custom_call.1} parent=1 // loop_body
      %s18 = ssub.s32 %s13, 1
      %s19 = ssub.s32 %s13, 2
      %s20 = sadd.s32 %s13, 1
      %s21 = ssub.s32 %s13, %s20
      %p22 = scmp.eq.s32.totalorder %s21, 0
      %s24 = sadd.s32 %s23, 1
      %s25 = scalar_select %p22, %s23, %s24
      %p28 = pneg %p22
      %p29 = scmp.eq.s32.totalorder %s13, 1
      %p30 = por %p28, %p29
      %p31 = scmp.ne.s32.totalorder %s23, %s26
      %p32 = scmp.eq.s32.totalorder %s13, 0
      %p33 = por %p31, %p32
      %p34 = scmp.ne.s32.totalorder %s23, %s26
      %p35 = scmp.eq.s32.totalorder %s18, 1
      %p36 = por %p34, %p35
      %p37 = scmp.ne.s32.totalorder %s26, %s27
      %p38 = scmp.eq.s32.totalorder %s18, 0
      %p39 = por %p37, %p38
      %p40 = scmp.ne.s32.totalorder %s26, %s27
      %p41 = scmp.eq.s32.totalorder %s19, 1
      %p42 = por %p40, %p41
      %p44 = scmp.ne.s32.totalorder %s27, %s43
      %p45 = scmp.eq.s32.totalorder %s19, 0
      %p46 = por %p44, %p45
      %s47 = ssub.s32 %s13, %s20
      %p48 = scmp.eq.s32.totalorder %s47, 0
      %s50 = sadd.s32 %s49, 1
      %s51 = scalar_select %p48, %s49, %s50
      %p54 = pneg %p48
      %p55 = scmp.eq.s32.totalorder %s13, 1
      %p56 = por %p54, %p55
      %p57 = scmp.ne.s32.totalorder %s49, %s52
      %p58 = scmp.eq.s32.totalorder %s13, 0
      %p59 = por %p57, %p58
      %p60 = scmp.ne.s32.totalorder %s49, %s52
      %p61 = scmp.eq.s32.totalorder %s18, 1
      %p62 = por %p60, %p61
      %p63 = scmp.ne.s32.totalorder %s52, %s53
      %p64 = scmp.eq.s32.totalorder %s18, 0
      %p65 = por %p63, %p64
      %p66 = scmp.ne.s32.totalorder %s52, %s53
      %p67 = scmp.eq.s32.totalorder %s19, 1
      %p68 = por %p66, %p67
      %p70 = scmp.ne.s32.totalorder %s53, %s69
      %p71 = scmp.eq.s32.totalorder %s19, 0
      %p72 = por %p70, %p71
      %s73 = ssub.s32 %s13, %s20
      %p74 = scmp.eq.s32.totalorder %s73, 0
      %s76 = sadd.s32 %s75, 1
      %s77 = scalar_select %p74, %s75, %s76
      %p80 = pneg %p74
      %p81 = scmp.eq.s32.totalorder %s13, 1
      %p82 = por %p80, %p81
      %p83 = scmp.ne.s32.totalorder %s75, %s78
      %p84 = scmp.eq.s32.totalorder %s13, 0
      %p85 = por %p83, %p84
      %p86 = scmp.ne.s32.totalorder %s75, %s78
      %p87 = scmp.eq.s32.totalorder %s18, 1
      %p88 = por %p86, %p87
      %p89 = scmp.ne.s32.totalorder %s78, %s79
      %p90 = scmp.eq.s32.totalorder %s18, 0
      %p91 = por %p89, %p90
      %p92 = scmp.ne.s32.totalorder %s78, %s79
      %p93 = scmp.eq.s32.totalorder %s19, 1
      %p94 = por %p92, %p93
      %p96 = scmp.ne.s32.totalorder %s79, %s95
      %p97 = scmp.eq.s32.totalorder %s19, 0
      %p98 = por %p96, %p97
      %s100 = sadd.s32 %s99, 1
      %p103 = scmp.eq.s32.totalorder %s13, 1
      %p104 = scmp.ne.s32.totalorder %s99, %s101
      %p105 = scmp.eq.s32.totalorder %s13, 0
      %p106 = por %p104, %p105
      %p107 = scmp.ne.s32.totalorder %s99, %s101
      %p108 = scmp.eq.s32.totalorder %s18, 1
      %p109 = por %p107, %p108
      %p110 = scmp.ne.s32.totalorder %s101, %s102
      %p111 = scmp.eq.s32.totalorder %s18, 0
      %p112 = por %p110, %p111
      %p113 = scmp.ne.s32.totalorder %s101, %s102
      %p114 = scmp.eq.s32.totalorder %s19, 1
      %p115 = por %p113, %p114
      %p117 = scmp.ne.s32.totalorder %s102, %s116
      %p118 = scmp.eq.s32.totalorder %s19, 0
      %p119 = por %p117, %p118
      %s121 = sadd.s32 %s120, 1
      %p124 = scmp.eq.s32.totalorder %s13, 1
      %p125 = scmp.ne.s32.totalorder %s120, %s122
      %p126 = scmp.eq.s32.totalorder %s13, 0
      %p127 = por %p125, %p126
      %p128 = scmp.ne.s32.totalorder %s120, %s122
      %p129 = scmp.eq.s32.totalorder %s18, 1
      %p130 = por %p128, %p129
      %p131 = scmp.ne.s32.totalorder %s122, %s123
      %p132 = scmp.eq.s32.totalorder %s18, 0
      %p133 = por %p131, %p132
      %p134 = scmp.ne.s32.totalorder %s122, %s123
      %p135 = scmp.eq.s32.totalorder %s19, 1
      %p136 = por %p134, %p135
      %p138 = scmp.ne.s32.totalorder %s123, %s137
      %p139 = scmp.eq.s32.totalorder %s19, 0
      %p140 = por %p138, %p139
      %s142 = sadd.s32 %s141, 1
      %p145 = scmp.eq.s32.totalorder %s13, 1
      %p146 = scmp.ne.s32.totalorder %s141, %s143
      %p147 = scmp.eq.s32.totalorder %s13, 0
      %p148 = por %p146, %p147
      %p149 = scmp.ne.s32.totalorder %s141, %s143
      %p150 = scmp.eq.s32.totalorder %s18, 1
      %p151 = por %p149, %p150
      %p152 = scmp.ne.s32.totalorder %s143, %s144
      %p153 = scmp.eq.s32.totalorder %s18, 0
      %p154 = por %p152, %p153
      %p155 = scmp.ne.s32.totalorder %s143, %s144
      %p156 = scmp.eq.s32.totalorder %s19, 1
      %p157 = por %p155, %p156
      %p159 = scmp.ne.s32.totalorder %s144, %s158
      %p160 = scmp.eq.s32.totalorder %s19, 0
      %p161 = por %p159, %p160
      %s163 = sadd.s32 %s162, 1
      %p166 = scmp.eq.s32.totalorder %s13, 1
      %p167 = scmp.ne.s32.totalorder %s162, %s164
      %p168 = scmp.eq.s32.totalorder %s13, 0
      %p169 = por %p167, %p168
      %p170 = scmp.ne.s32.totalorder %s162, %s164
      %p171 = scmp.eq.s32.totalorder %s18, 1
      %p172 = por %p170, %p171
      %p173 = scmp.ne.s32.totalorder %s164, %s165
      %p174 = scmp.eq.s32.totalorder %s18, 0
      %p175 = por %p173, %p174
      %p176 = scmp.ne.s32.totalorder %s164, %s165
      %p177 = scmp.eq.s32.totalorder %s19, 1
      %p178 = por %p176, %p177
      %p180 = scmp.ne.s32.totalorder %s165, %s179
      %p181 = scmp.eq.s32.totalorder %s19, 0
      %p182 = por %p180, %p181
      %s183 = ssub.s32 %s13, %s20
      %p184 = scmp.eq.s32.totalorder %s183, 0
      %s186 = sadd.s32 %s185, 1
      %s187 = scalar_select %p184, %s185, %s186
      %p190 = pneg %p184
      %p191 = scmp.eq.s32.totalorder %s13, 1
      %p192 = por %p190, %p191
      %p193 = scmp.ne.s32.totalorder %s185, %s188
      %p194 = scmp.eq.s32.totalorder %s13, 0
      %p195 = por %p193, %p194
      %p196 = scmp.ne.s32.totalorder %s185, %s188
      %p197 = scmp.eq.s32.totalorder %s18, 1
      %p198 = por %p196, %p197
      %p199 = scmp.ne.s32.totalorder %s188, %s189
      %p200 = scmp.eq.s32.totalorder %s18, 0
      %p201 = por %p199, %p200
      %p202 = scmp.ne.s32.totalorder %s188, %s189
      %p203 = scmp.eq.s32.totalorder %s19, 1
      %p204 = por %p202, %p203
      %p206 = scmp.ne.s32.totalorder %s189, %s205
      %p207 = scmp.eq.s32.totalorder %s19, 0
      %p208 = por %p206, %p207
      %p209 = scmp.le.s32.totalorder 1, %s13
      %p210 = scmp.lt.s32.totalorder %s13, 3
      %p211 = pnand %p209, %p210
      %p212 = pneg %p211
      // Predicated region
      $region9: #{tpu_custom_call.1} parent=5 // pred_check
        _
      $region10: #{tpu_custom_call.1} parent=5 // pred_check_branch
        %214 = sbr.rel (%p211) target = $region12
      $region11: #{tpu_custom_call.1} parent=5 // pred_region
        %s215 = ssub.s32 %s13, 1
        // Predicated region
        $region13: #{tpu_custom_call.1} parent=11 // pred_check
          %p216 = pneg %p112
        $region14: #{tpu_custom_call.1} parent=11 // pred_check_branch
          %218 = sbr.rel (%p216) target = $region16
        $region15: #{tpu_custom_call.1} parent=11 // pred_region
          _
        $region16: #{tpu_custom_call.1} parent=11 // pred_fallthru
          _
        // Predicated region
        $region17: #{tpu_custom_call.1} parent=11 // pred_check
          %p219 = pneg %p133
        $region18: #{tpu_custom_call.1} parent=11 // pred_check_branch
          %221 = sbr.rel (%p219) target = $region20
        $region19: #{tpu_custom_call.1} parent=11 // pred_region
          _
        $region20: #{tpu_custom_call.1} parent=11 // pred_fallthru
          _
        // Predicated region
        $region21: #{tpu_custom_call.1} parent=11 // pred_check
          %p222 = pneg %p154
        $region22: #{tpu_custom_call.1} parent=11 // pred_check_branch
          %224 = sbr.rel (%p222) target = $region24
        $region23: #{tpu_custom_call.1} parent=11 // pred_region
          _
        $region24: #{tpu_custom_call.1} parent=11 // pred_fallthru
          _
        // Predicated region
        $region25: #{tpu_custom_call.1} parent=11 // pred_check
          %p225 = pneg %p175
        $region26: #{tpu_custom_call.1} parent=11 // pred_check_branch
          %227 = sbr.rel (%p225) target = $region28
        $region27: #{tpu_custom_call.1} parent=11 // pred_region
          _
        $region28: #{tpu_custom_call.1} parent=11 // pred_fallthru
          _
      $region12: #{tpu_custom_call.1} parent=5 // pred_fallthru
        _
      %p228 = scmp.lt.s32.totalorder %s13, 2
      // Predicated region
      $region29: #{tpu_custom_call.1} parent=5 // pred_check
        %p229 = pneg %p228
      $region30: #{tpu_custom_call.1} parent=5 // pred_check_branch
        %231 = sbr.rel (%p229) target = $region32
      $region31: #{tpu_custom_call.1} parent=5 // pred_region
        // Predicated region
        $region33: #{tpu_custom_call.1} parent=31 // pred_check
          %p232 = pneg %p33
        $region34: #{tpu_custom_call.1} parent=31 // pred_check_branch
          %234 = sbr.rel (%p232) target = $region36
        $region35: #{tpu_custom_call.1} parent=31 // pred_region
          %s235 = sand.u32 %s23, 1
          %s236 = sand.u32 %s23, 1
          %s237 = smul.addr %s236, 128
          %s238 = scalar_lea.vmem [#allocation2], %s237
          %s239 = smul.u32 2, %s13
          %s240 = smul.addr %s239, 8
          %s241 = scalar_lea.vmem %s0, %s240
          // Predicated region
          $region37: #{tpu_custom_call.1} parent=35 // pred_check
            _
          $region38: #{tpu_custom_call.1} parent=35 // pred_check_branch
            %243 = sbr.rel (0) target = $region40
          $region39: #{tpu_custom_call.1} parent=35 // pred_region
            // Predicated region
            $region41: #{tpu_custom_call.1} parent=39 // pred_check
              _
            $region42: #{tpu_custom_call.1} parent=39 // pred_check_branch
              %245 = sbr.rel (0) target = $region44
            $region43: #{tpu_custom_call.1} parent=39 // pred_region
              // Predicated region
              $region56: #{tpu_custom_call.1} parent=43 // pred_check
                _
              $region57: #{tpu_custom_call.1} parent=43 // pred_check_branch
                %291 = sbr.rel (0) target = $region59
              $region58: #{tpu_custom_call.1} parent=43 // pred_region
                loop: start=0, step=1, limit=1
                $region60: #{tpu_custom_call.1} parent=58 // loop_pre_header
                  _
                $region61: #{tpu_custom_call.1} parent=58 // loop_header
                  %s293 = sphi 0, %s297
                  %p294 = scmp.ge.s32.totalorder %s293, 1
                  %s298 = sphi %s241, %s241
                  %s299 = sphi %s238, %s238
                $region62: #{tpu_custom_call.1} parent=58 // loop_header_branch
                  %296 = sbr.rel (%p294) target = $region66
                $region63: #{tpu_custom_call.1} parent=58 // loop_body
                  %v300 = vld [vmem:[%s298] sm:$0xff]
                  %301 = vst [vmem:[%s299] sm:$0xff] %v300
                  %v302 = vld [vmem:[%s298 + $0x8] sm:$0xff]
                  %303 = vst [vmem:[%s299 + $0x8] sm:$0xff] %v302
                  %v304 = vld [vmem:[%s298 + $0x20] sm:$0xff]
                  %305 = vst [vmem:[%s299 + $0x10] sm:$0xff] %v304
                  %v306 = vld [vmem:[%s298 + $0x28] sm:$0xff]
                  %307 = vst [vmem:[%s299 + $0x18] sm:$0xff] %v306
                  %v308 = vld [vmem:[%s298 + $0x40] sm:$0xff]
                  %309 = vst [vmem:[%s299 + $0x20] sm:$0xff] %v308
                  %v310 = vld [vmem:[%s298 + $0x48] sm:$0xff]
                  %311 = vst [vmem:[%s299 + $0x28] sm:$0xff] %v310
                  %v312 = vld [vmem:[%s298 + $0x60] sm:$0xff]
                  %313 = vst [vmem:[%s299 + $0x30] sm:$0xff] %v312
                  %v314 = vld [vmem:[%s298 + $0x68] sm:$0xff]
                  %315 = vst [vmem:[%s299 + $0x38] sm:$0xff] %v314
                  %v316 = vld [vmem:[%s298 + $0x80] sm:$0xff]
                  %317 = vst [vmem:[%s299 + $0x40] sm:$0xff] %v316
                  %v318 = vld [vmem:[%s298 + $0x88] sm:$0xff]
                  %319 = vst [vmem:[%s299 + $0x48] sm:$0xff] %v318
                  %v320 = vld [vmem:[%s298 + $0xa0] sm:$0xff]
                  %321 = vst [vmem:[%s299 + $0x50] sm:$0xff] %v320
                  %v322 = vld [vmem:[%s298 + $0xa8] sm:$0xff]
                  %323 = vst [vmem:[%s299 + $0x58] sm:$0xff] %v322
                  %v324 = vld [vmem:[%s298 + $0xc0] sm:$0xff]
                  %325 = vst [vmem:[%s299 + $0x60] sm:$0xff] %v324
                  %v326 = vld [vmem:[%s298 + $0xc8] sm:$0xff]
                  %327 = vst [vmem:[%s299 + $0x68] sm:$0xff] %v326
                  %v328 = vld [vmem:[%s298 + $0xe0] sm:$0xff]
                  %329 = vst [vmem:[%s299 + $0x70] sm:$0xff] %v328
                  %v330 = vld [vmem:[%s298 + $0xe8] sm:$0xff]
                  %331 = vst [vmem:[%s299 + $0x78] sm:$0xff] %v330
                $region64: #{tpu_custom_call.1} parent=58 // loop_footer
                  %s297 = sadd.s32 1, %s293
                $region65: #{tpu_custom_call.1} parent=58 // loop_footer_branch
                  %292 = sbr.rel target = $region61
                $region66: #{tpu_custom_call.1} parent=58 // loop_exit
                  _
              $region59: #{tpu_custom_call.1} parent=43 // pred_fallthru
                _
              // Predicated region
              $region67: #{tpu_custom_call.1} parent=43 // pred_check
                _
              $region68: #{tpu_custom_call.1} parent=43 // pred_check_branch
                %333 = sbr.rel target = $region70
              $region69: #{tpu_custom_call.1} parent=43 // pred_region
                _
              $region70: #{tpu_custom_call.1} parent=43 // pred_fallthru
                _
            $region44: #{tpu_custom_call.1} parent=39 // pred_fallthru
              _
            // Predicated region
            $region45: #{tpu_custom_call.1} parent=39 // pred_check
              _
            $region46: #{tpu_custom_call.1} parent=39 // pred_check_branch
              %247 = sbr.rel target = $region48
            $region47: #{tpu_custom_call.1} parent=39 // pred_region
              %s249 = ssub.s32 256, 1
              loop: start=0, step=1, limit=1
              $region49: #{tpu_custom_call.1} parent=47 // loop_pre_header
                _
              $region50: #{tpu_custom_call.1} parent=47 // loop_header
                %s251 = sphi 0, %s255
                %p252 = scmp.ge.s32.totalorder %s251, 1
                %s256 = sphi %s241, %s241
                %s257 = sphi %s238, %s238
              $region51: #{tpu_custom_call.1} parent=47 // loop_header_branch
                %254 = sbr.rel (%p252) target = $region55
              $region52: #{tpu_custom_call.1} parent=47 // loop_body
                %v258 = vld [vmem:[%s256] sm:%s249]
                %259 = vst [vmem:[%s257] sm:%s249] %v258
                %v260 = vld [vmem:[%s256 + $0x8] sm:%s249]
                %261 = vst [vmem:[%s257 + $0x8] sm:%s249] %v260
                %v262 = vld [vmem:[%s256 + $0x20] sm:%s249]
                %263 = vst [vmem:[%s257 + $0x10] sm:%s249] %v262
                %v264 = vld [vmem:[%s256 + $0x28] sm:%s249]
                %265 = vst [vmem:[%s257 + $0x18] sm:%s249] %v264
                %v266 = vld [vmem:[%s256 + $0x40] sm:%s249]
                %267 = vst [vmem:[%s257 + $0x20] sm:%s249] %v266
                %v268 = vld [vmem:[%s256 + $0x48] sm:%s249]
                %269 = vst [vmem:[%s257 + $0x28] sm:%s249] %v268
                %v270 = vld [vmem:[%s256 + $0x60] sm:%s249]
                %271 = vst [vmem:[%s257 + $0x30] sm:%s249] %v270
                %v272 = vld [vmem:[%s256 + $0x68] sm:%s249]
                %273 = vst [vmem:[%s257 + $0x38] sm:%s249] %v272
                %v274 = vld [vmem:[%s256 + $0x80] sm:%s249]
                %275 = vst [vmem:[%s257 + $0x40] sm:%s249] %v274
                %v276 = vld [vmem:[%s256 + $0x88] sm:%s249]
                %277 = vst [vmem:[%s257 + $0x48] sm:%s249] %v276
                %v278 = vld [vmem:[%s256 + $0xa0] sm:%s249]
                %279 = vst [vmem:[%s257 + $0x50] sm:%s249] %v278
                %v280 = vld [vmem:[%s256 + $0xa8] sm:%s249]
                %281 = vst [vmem:[%s257 + $0x58] sm:%s249] %v280
                %v282 = vld [vmem:[%s256 + $0xc0] sm:%s249]
                %283 = vst [vmem:[%s257 + $0x60] sm:%s249] %v282
                %v284 = vld [vmem:[%s256 + $0xc8] sm:%s249]
                %285 = vst [vmem:[%s257 + $0x68] sm:%s249] %v284
                %v286 = vld [vmem:[%s256 + $0xe0] sm:%s249]
                %287 = vst [vmem:[%s257 + $0x70] sm:%s249] %v286
                %v288 = vld [vmem:[%s256 + $0xe8] sm:%s249]
                %289 = vst [vmem:[%s257 + $0x78] sm:%s249] %v288
              $region53: #{tpu_custom_call.1} parent=47 // loop_footer
                %s255 = sadd.s32 1, %s251
              $region54: #{tpu_custom_call.1} parent=47 // loop_footer_branch
                %250 = sbr.rel target = $region50
              $region55: #{tpu_custom_call.1} parent=47 // loop_exit
                _
            $region48: #{tpu_custom_call.1} parent=39 // pred_fallthru
              _
          $region40: #{tpu_custom_call.1} parent=35 // pred_fallthru
            _
          %334 = vnop
        $region36: #{tpu_custom_call.1} parent=31 // pred_fallthru
          _
        // Predicated region
        $region71: #{tpu_custom_call.1} parent=31 // pred_check
          %p335 = pneg %p59
        $region72: #{tpu_custom_call.1} parent=31 // pred_check_branch
          %337 = sbr.rel (%p335) target = $region74
        $region73: #{tpu_custom_call.1} parent=31 // pred_region
          %s338 = smul.u32 2, %s13
          %p339 = scmp.lt.s32.totalorder %s338, 3
          %s340 = scalar_select %p339, %s338, 3
          %s341 = smul.addr %s340, 8
          %s342 = scalar_lea.vmem %s1, %s341
          %s343 = smul.u32 2, %s13
        $region74: #{tpu_custom_call.1} parent=31 // pred_fallthru
          _
        // Predicated region
        $region75: #{tpu_custom_call.1} parent=31 // pred_check
          %p344 = pneg %p85
        $region76: #{tpu_custom_call.1} parent=31 // pred_check_branch
          %346 = sbr.rel (%p344) target = $region78
        $region77: #{tpu_custom_call.1} parent=31 // pred_region
          %s347 = sand.u32 %s75, 1
          %s348 = sand.u32 %s75, 1
          %s349 = smul.addr %s348, 128
          %s350 = scalar_lea.vmem [#allocation3], %s349
          %s351 = smul.u32 2, %s13
          %s352 = smul.addr %s351, 8
          %s353 = scalar_lea.vmem %s2, %s352
          // Predicated region
          $region79: #{tpu_custom_call.1} parent=77 // pred_check
            _
          $region80: #{tpu_custom_call.1} parent=77 // pred_check_branch
            %355 = sbr.rel (0) target = $region82
          $region81: #{tpu_custom_call.1} parent=77 // pred_region
            // Predicated region
            $region83: #{tpu_custom_call.1} parent=81 // pred_check
              _
            $region84: #{tpu_custom_call.1} parent=81 // pred_check_branch
              %357 = sbr.rel (0) target = $region86
            $region85: #{tpu_custom_call.1} parent=81 // pred_region
              // Predicated region
              $region98: #{tpu_custom_call.1} parent=85 // pred_check
                _
              $region99: #{tpu_custom_call.1} parent=85 // pred_check_branch
                %403 = sbr.rel (0) target = $region101
              $region100: #{tpu_custom_call.1} parent=85 // pred_region
                loop: start=0, step=1, limit=1
                $region102: #{tpu_custom_call.1} parent=100 // loop_pre_header
                  _
                $region103: #{tpu_custom_call.1} parent=100 // loop_header
                  %s405 = sphi 0, %s409
                  %p406 = scmp.ge.s32.totalorder %s405, 1
                  %s410 = sphi %s353, %s353
                  %s411 = sphi %s350, %s350
                $region104: #{tpu_custom_call.1} parent=100 // loop_header_branch
                  %408 = sbr.rel (%p406) target = $region108
                $region105: #{tpu_custom_call.1} parent=100 // loop_body
                  %v412 = vld [vmem:[%s410] sm:$0xff]
                  %413 = vst [vmem:[%s411] sm:$0xff] %v412
                  %v414 = vld [vmem:[%s410 + $0x8] sm:$0xff]
                  %415 = vst [vmem:[%s411 + $0x8] sm:$0xff] %v414
                  %v416 = vld [vmem:[%s410 + $0x20] sm:$0xff]
                  %417 = vst [vmem:[%s411 + $0x10] sm:$0xff] %v416
                  %v418 = vld [vmem:[%s410 + $0x28] sm:$0xff]
                  %419 = vst [vmem:[%s411 + $0x18] sm:$0xff] %v418
                  %v420 = vld [vmem:[%s410 + $0x40] sm:$0xff]
                  %421 = vst [vmem:[%s411 + $0x20] sm:$0xff] %v420
                  %v422 = vld [vmem:[%s410 + $0x48] sm:$0xff]
                  %423 = vst [vmem:[%s411 + $0x28] sm:$0xff] %v422
                  %v424 = vld [vmem:[%s410 + $0x60] sm:$0xff]
                  %425 = vst [vmem:[%s411 + $0x30] sm:$0xff] %v424
                  %v426 = vld [vmem:[%s410 + $0x68] sm:$0xff]
                  %427 = vst [vmem:[%s411 + $0x38] sm:$0xff] %v426
                  %v428 = vld [vmem:[%s410 + $0x80] sm:$0xff]
                  %429 = vst [vmem:[%s411 + $0x40] sm:$0xff] %v428
                  %v430 = vld [vmem:[%s410 + $0x88] sm:$0xff]
                  %431 = vst [vmem:[%s411 + $0x48] sm:$0xff] %v430
                  %v432 = vld [vmem:[%s410 + $0xa0] sm:$0xff]
                  %433 = vst [vmem:[%s411 + $0x50] sm:$0xff] %v432
                  %v434 = vld [vmem:[%s410 + $0xa8] sm:$0xff]
                  %435 = vst [vmem:[%s411 + $0x58] sm:$0xff] %v434
                  %v436 = vld [vmem:[%s410 + $0xc0] sm:$0xff]
                  %437 = vst [vmem:[%s411 + $0x60] sm:$0xff] %v436
                  %v438 = vld [vmem:[%s410 + $0xc8] sm:$0xff]
                  %439 = vst [vmem:[%s411 + $0x68] sm:$0xff] %v438
                  %v440 = vld [vmem:[%s410 + $0xe0] sm:$0xff]
                  %441 = vst [vmem:[%s411 + $0x70] sm:$0xff] %v440
                  %v442 = vld [vmem:[%s410 + $0xe8] sm:$0xff]
                  %443 = vst [vmem:[%s411 + $0x78] sm:$0xff] %v442
                $region106: #{tpu_custom_call.1} parent=100 // loop_footer
                  %s409 = sadd.s32 1, %s405
                $region107: #{tpu_custom_call.1} parent=100 // loop_footer_branch
                  %404 = sbr.rel target = $region103
                $region108: #{tpu_custom_call.1} parent=100 // loop_exit
                  _
              $region101: #{tpu_custom_call.1} parent=85 // pred_fallthru
                _
              // Predicated region
              $region109: #{tpu_custom_call.1} parent=85 // pred_check
                _
              $region110: #{tpu_custom_call.1} parent=85 // pred_check_branch
                %445 = sbr.rel target = $region112
              $region111: #{tpu_custom_call.1} parent=85 // pred_region
                _
              $region112: #{tpu_custom_call.1} parent=85 // pred_fallthru
                _
            $region86: #{tpu_custom_call.1} parent=81 // pred_fallthru
              _
            // Predicated region
            $region87: #{tpu_custom_call.1} parent=81 // pred_check
              _
            $region88: #{tpu_custom_call.1} parent=81 // pred_check_branch
              %359 = sbr.rel target = $region90
            $region89: #{tpu_custom_call.1} parent=81 // pred_region
              %s361 = ssub.s32 256, 1
              loop: start=0, step=1, limit=1
              $region91: #{tpu_custom_call.1} parent=89 // loop_pre_header
                _
              $region92: #{tpu_custom_call.1} parent=89 // loop_header
                %s363 = sphi 0, %s367
                %p364 = scmp.ge.s32.totalorder %s363, 1
                %s368 = sphi %s353, %s353
                %s369 = sphi %s350, %s350
              $region93: #{tpu_custom_call.1} parent=89 // loop_header_branch
                %366 = sbr.rel (%p364) target = $region97
              $region94: #{tpu_custom_call.1} parent=89 // loop_body
                %v370 = vld [vmem:[%s368] sm:%s361]
                %371 = vst [vmem:[%s369] sm:%s361] %v370
                %v372 = vld [vmem:[%s368 + $0x8] sm:%s361]
                %373 = vst [vmem:[%s369 + $0x8] sm:%s361] %v372
                %v374 = vld [vmem:[%s368 + $0x20] sm:%s361]
                %375 = vst [vmem:[%s369 + $0x10] sm:%s361] %v374
                %v376 = vld [vmem:[%s368 + $0x28] sm:%s361]
                %377 = vst [vmem:[%s369 + $0x18] sm:%s361] %v376
                %v378 = vld [vmem:[%s368 + $0x40] sm:%s361]
                %379 = vst [vmem:[%s369 + $0x20] sm:%s361] %v378
                %v380 = vld [vmem:[%s368 + $0x48] sm:%s361]
                %381 = vst [vmem:[%s369 + $0x28] sm:%s361] %v380
                %v382 = vld [vmem:[%s368 + $0x60] sm:%s361]
                %383 = vst [vmem:[%s369 + $0x30] sm:%s361] %v382
                %v384 = vld [vmem:[%s368 + $0x68] sm:%s361]
                %385 = vst [vmem:[%s369 + $0x38] sm:%s361] %v384
                %v386 = vld [vmem:[%s368 + $0x80] sm:%s361]
                %387 = vst [vmem:[%s369 + $0x40] sm:%s361] %v386
                %v388 = vld [vmem:[%s368 + $0x88] sm:%s361]
                %389 = vst [vmem:[%s369 + $0x48] sm:%s361] %v388
                %v390 = vld [vmem:[%s368 + $0xa0] sm:%s361]
                %391 = vst [vmem:[%s369 + $0x50] sm:%s361] %v390
                %v392 = vld [vmem:[%s368 + $0xa8] sm:%s361]
                %393 = vst [vmem:[%s369 + $0x58] sm:%s361] %v392
                %v394 = vld [vmem:[%s368 + $0xc0] sm:%s361]
                %395 = vst [vmem:[%s369 + $0x60] sm:%s361] %v394
                %v396 = vld [vmem:[%s368 + $0xc8] sm:%s361]
                %397 = vst [vmem:[%s369 + $0x68] sm:%s361] %v396
                %v398 = vld [vmem:[%s368 + $0xe0] sm:%s361]
                %399 = vst [vmem:[%s369 + $0x70] sm:%s361] %v398
                %v400 = vld [vmem:[%s368 + $0xe8] sm:%s361]
                %401 = vst [vmem:[%s369 + $0x78] sm:%s361] %v400
              $region95: #{tpu_custom_call.1} parent=89 // loop_footer
                %s367 = sadd.s32 1, %s363
              $region96: #{tpu_custom_call.1} parent=89 // loop_footer_branch
                %362 = sbr.rel target = $region92
              $region97: #{tpu_custom_call.1} parent=89 // loop_exit
                _
            $region90: #{tpu_custom_call.1} parent=81 // pred_fallthru
              _
          $region82: #{tpu_custom_call.1} parent=77 // pred_fallthru
            _
          %446 = vnop
        $region78: #{tpu_custom_call.1} parent=31 // pred_fallthru
          _
      $region32: #{tpu_custom_call.1} parent=5 // pred_fallthru
        _
      %p447 = scmp.le.s32.totalorder 1, %s13
      %p448 = scmp.lt.s32.totalorder %s13, 3
      %p449 = pnand %p447, %p448
      %p450 = pneg %p449
      // Predicated region
      $region113: #{tpu_custom_call.1} parent=5 // pred_check
        _
      $region114: #{tpu_custom_call.1} parent=5 // pred_check_branch
        %452 = sbr.rel (%p449) target = $region116
      $region115: #{tpu_custom_call.1} parent=5 // pred_region
        %s453 = ssub.s32 %s13, 1
        %s454 = sand.u32 %s26, 1
        %s455 = sand.u32 %s26, 1
        %s456 = smul.addr %s455, 128
        %s457 = scalar_lea.vmem [#allocation2], %s456
        // Predicated region
        $region117: #{tpu_custom_call.1} parent=115 // pred_check
          %p458 = pneg %p39
        $region118: #{tpu_custom_call.1} parent=115 // pred_check_branch
          %460 = sbr.rel (%p458) target = $region120
        $region119: #{tpu_custom_call.1} parent=115 // pred_region
          _
        $region120: #{tpu_custom_call.1} parent=115 // pred_fallthru
          _
        %s461 = sand.u32 %s78, 1
        %s462 = sand.u32 %s78, 1
        %s463 = smul.addr %s462, 128
        %s464 = scalar_lea.vmem [#allocation3], %s463
        // Predicated region
        $region121: #{tpu_custom_call.1} parent=115 // pred_check
          %p465 = pneg %p91
        $region122: #{tpu_custom_call.1} parent=115 // pred_check_branch
          %467 = sbr.rel (%p465) target = $region124
        $region123: #{tpu_custom_call.1} parent=115 // pred_region
          _
        $region124: #{tpu_custom_call.1} parent=115 // pred_fallthru
          _
        %s468 = sand.u32 %s26, 1
        %s469 = sand.u32 %s26, 1
        %s470 = smul.addr %s469, 128
        %s471 = scalar_lea.vmem [#allocation2], %s470
        %p472 = pneg %p39
        %p473 = pneg %p36
        %s474 = smul.u32 2, %s18
        %p475 = scmp.lt.s32.totalorder %s474, 3
        %s476 = scalar_select %p475, %s474, 3
        %s477 = smul.addr %s476, 8
        %s478 = scalar_lea.vmem %s1, %s477
        %p479 = pneg %p65
        %p480 = pneg %p62
        %s481 = sand.u32 %s78, 1
        %s482 = sand.u32 %s78, 1
        %s483 = smul.addr %s482, 128
        %s484 = scalar_lea.vmem [#allocation3], %s483
        %p485 = pneg %p91
        %p486 = pneg %p88
        %p487 = pneg %p112
        %p488 = pneg %p109
        %p489 = pneg %p133
        %p490 = pneg %p130
        %p491 = pneg %p154
        %p492 = pneg %p151
        %p493 = pneg %p175
        %p494 = pneg %p172
        %p495 = pneg %p201
        %p496 = pneg %p198
        %s497 = smul.u32 2, %s18
        %p498 = scmp.lt.s32.totalorder %s497, 3
        %s499 = scalar_select %p498, %s497, 3
        %s500 = smul.addr %s499, 8
        %s501 = scalar_lea.vmem %s7, %s500
        %s502 = smul.u32 2, %s18
        %s503 = smul.u32 2, %s18
        %p504 = scmp.lt.s32.totalorder %s503, 3
        %s505 = scalar_select %p504, %s503, 3
        %s506 = smul.addr %s505, 8
        %s507 = scalar_lea.vmem %s1, %s506
        %s508 = smul.u32 2, %s18
        %s509 = smul.u32 2, %s18
        %s510 = smul.u32 2, %s18
        %p511 = scmp.lt.s32.totalorder %s510, 3
        %s512 = scalar_select %p511, %s510, 3
        %s513 = smul.addr %s512, 8
        %s514 = scalar_lea.vmem %s7, %s513
        %s515 = smul.u32 2, %s18
        %v516 = vld [vmem:[%s3] sm:$0xff]
        %v517 = vld [vmem:[%s3 + $0x8] sm:$0xff]
        %v518 = vld [vmem:[%s3 + $0x10] sm:$0xff]
        %v519 = vld [vmem:[%s3 + $0x18] sm:$0xff]
        %v520 = vld [vmem:[%s3 + $0x20] sm:$0xff]
        %v521 = vld [vmem:[%s3 + $0x28] sm:$0xff]
        %v522 = vld [vmem:[%s3 + $0x30] sm:$0xff]
        %v523 = vld [vmem:[%s3 + $0x38] sm:$0xff]
        %v524 = vld [vmem:[%s3 + $0x40] sm:$0xff]
        %v525 = vld [vmem:[%s3 + $0x48] sm:$0xff]
        %v526 = vld [vmem:[%s3 + $0x50] sm:$0xff]
        %v527 = vld [vmem:[%s3 + $0x58] sm:$0xff]
        %v528 = vld [vmem:[%s3 + $0x60] sm:$0xff]
        %v529 = vld [vmem:[%s3 + $0x68] sm:$0xff]
        %v530 = vld [vmem:[%s3 + $0x70] sm:$0xff]
        %v531 = vld [vmem:[%s3 + $0x78] sm:$0xff]
        %v532 = vld [vmem:[%s4] sm:$0xff]
        %v533 = vld [vmem:[%s4 + $0x8] sm:$0xff]
        %v534 = vld [vmem:[%s4 + $0x10] sm:$0xff]
        %v535 = vld [vmem:[%s4 + $0x18] sm:$0xff]
        %v536 = vld [vmem:[%s4 + $0x20] sm:$0xff]
        %v537 = vld [vmem:[%s4 + $0x28] sm:$0xff]
        %v538 = vld [vmem:[%s4 + $0x30] sm:$0xff]
        %v539 = vld [vmem:[%s4 + $0x38] sm:$0xff]
        %v540 = vld [vmem:[%s4 + $0x40] sm:$0xff]
        %v541 = vld [vmem:[%s4 + $0x48] sm:$0xff]
        %v542 = vld [vmem:[%s4 + $0x50] sm:$0xff]
        %v543 = vld [vmem:[%s4 + $0x58] sm:$0xff]
        %v544 = vld [vmem:[%s4 + $0x60] sm:$0xff]
        %v545 = vld [vmem:[%s4 + $0x68] sm:$0xff]
        %v546 = vld [vmem:[%s4 + $0x70] sm:$0xff]
        %v547 = vld [vmem:[%s4 + $0x78] sm:$0xff]
        %v548 = vld [vmem:[%s5] sm:$0xff]
        %v549 = vld [vmem:[%s5 + $0x8] sm:$0xff]
        %v550 = vld [vmem:[%s5 + $0x10] sm:$0xff]
        %v551 = vld [vmem:[%s5 + $0x18] sm:$0xff]
        %v552 = vld [vmem:[%s5 + $0x20] sm:$0xff]
        %v553 = vld [vmem:[%s5 + $0x28] sm:$0xff]
        %v554 = vld [vmem:[%s5 + $0x30] sm:$0xff]
        %v555 = vld [vmem:[%s5 + $0x38] sm:$0xff]
        %v556 = vld [vmem:[%s5 + $0x40] sm:$0xff]
        %v557 = vld [vmem:[%s5 + $0x48] sm:$0xff]
        %v558 = vld [vmem:[%s5 + $0x50] sm:$0xff]
        %v559 = vld [vmem:[%s5 + $0x58] sm:$0xff]
        %v560 = vld [vmem:[%s5 + $0x60] sm:$0xff]
        %v561 = vld [vmem:[%s5 + $0x68] sm:$0xff]
        %v562 = vld [vmem:[%s5 + $0x70] sm:$0xff]
        %v563 = vld [vmem:[%s5 + $0x78] sm:$0xff]
        %v564 = vld [vmem:[%s6] sm:$0xff]
        %v565 = vld [vmem:[%s6 + $0x8] sm:$0xff]
        %v566 = vld [vmem:[%s6 + $0x10] sm:$0xff]
        %v567 = vld [vmem:[%s6 + $0x18] sm:$0xff]
        %v568 = vld [vmem:[%s6 + $0x20] sm:$0xff]
        %v569 = vld [vmem:[%s6 + $0x28] sm:$0xff]
        %v570 = vld [vmem:[%s6 + $0x30] sm:$0xff]
        %v571 = vld [vmem:[%s6 + $0x38] sm:$0xff]
        %v572 = vld [vmem:[%s6 + $0x40] sm:$0xff]
        %v573 = vld [vmem:[%s6 + $0x48] sm:$0xff]
        %v574 = vld [vmem:[%s6 + $0x50] sm:$0xff]
        %v575 = vld [vmem:[%s6 + $0x58] sm:$0xff]
        %v576 = vld [vmem:[%s6 + $0x60] sm:$0xff]
        %v577 = vld [vmem:[%s6 + $0x68] sm:$0xff]
        %v578 = vld [vmem:[%s6 + $0x70] sm:$0xff]
        %v579 = vld [vmem:[%s6 + $0x78] sm:$0xff]
        %v580 = vand.u32 %v563, 4294901760
        %581 = vmatpush.msra.mxu0 %v580
        %v582 = vand.u32 %v562, 4294901760
        %583 = vmatpush.msra.mxu0 %v582
        %v584 = vand.u32 %v561, 4294901760
        %585 = vmatpush.msra.mxu0 %v584
        %v586 = vand.u32 %v560, 4294901760
        %587 = vmatpush.msra.mxu0 %v586
        %v588 = vand.u32 %v559, 4294901760
        %589 = vmatpush.msra.mxu0 %v588
        %v590 = vand.u32 %v558, 4294901760
        %591 = vmatpush.msra.mxu0 %v590
        %v592 = vand.u32 %v557, 4294901760
        %593 = vmatpush.msra.mxu0 %v592
        %v594 = vand.u32 %v556, 4294901760
        %595 = vmatpush.msra.mxu0 %v594
        %v596 = vand.u32 %v555, 4294901760
        %597 = vmatpush.msra.mxu0 %v596
        %v598 = vand.u32 %v554, 4294901760
        %599 = vmatpush.msra.mxu0 %v598
        %v600 = vand.u32 %v553, 4294901760
        %601 = vmatpush.msra.mxu0 %v600
        %v602 = vand.u32 %v552, 4294901760
        %603 = vmatpush.msra.mxu0 %v602
        %v604 = vand.u32 %v551, 4294901760
        %605 = vmatpush.msra.mxu0 %v604
        %v606 = vand.u32 %v550, 4294901760
        %607 = vmatpush.msra.mxu0 %v606
        %v608 = vand.u32 %v549, 4294901760
        %609 = vmatpush.msra.mxu0 %v608
        %v610 = vand.u32 %v548, 4294901760
        %611 = vmatpush.msra.mxu0 %v610
        %v612 = vand.u32 %v516, 4294901760
        %v613 = vsub.f32 %v516, %v612
        %v614 = vand.u32 %v613, 4294901760
        %v615 = vsub.f32 %v613, %v614
        %v616 = vand.u32 %v615, 4294901760
        %617 = vmatmul.f32.gmra.mxu0 %v616
        %v618 = vpop.f32.mrf.mxu0
        %v619 = vadd.f32 0.0, %v618
        %v620 = vand.u32 %v517, 4294901760
        %v621 = vsub.f32 %v517, %v620
        %v622 = vand.u32 %v621, 4294901760
        %v623 = vsub.f32 %v621, %v622
        %v624 = vand.u32 %v623, 4294901760
        %625 = vmatmul.f32.gmra.mxu0 %v624
        %v626 = vpop.f32.mrf.mxu0
        %v627 = vadd.f32 0.0, %v626
        %v628 = vand.u32 %v518, 4294901760
        %v629 = vsub.f32 %v518, %v628
        %v630 = vand.u32 %v629, 4294901760
        %v631 = vsub.f32 %v629, %v630
        %v632 = vand.u32 %v631, 4294901760
        %633 = vmatmul.f32.gmra.mxu0 %v632
        %v634 = vpop.f32.mrf.mxu0
        %v635 = vadd.f32 0.0, %v634
        %v636 = vand.u32 %v519, 4294901760
        %v637 = vsub.f32 %v519, %v636
        %v638 = vand.u32 %v637, 4294901760
        %v639 = vsub.f32 %v637, %v638
        %v640 = vand.u32 %v639, 4294901760
        %641 = vmatmul.f32.gmra.mxu0 %v640
        %v642 = vpop.f32.mrf.mxu0
        %v643 = vadd.f32 0.0, %v642
        %v644 = vand.u32 %v520, 4294901760
        %v645 = vsub.f32 %v520, %v644
        %v646 = vand.u32 %v645, 4294901760
        %v647 = vsub.f32 %v645, %v646
        %v648 = vand.u32 %v647, 4294901760
        %649 = vmatmul.f32.gmra.mxu0 %v648
        %v650 = vpop.f32.mrf.mxu0
        %v651 = vadd.f32 0.0, %v650
        %v652 = vand.u32 %v521, 4294901760
        %v653 = vsub.f32 %v521, %v652
        %v654 = vand.u32 %v653, 4294901760
        %v655 = vsub.f32 %v653, %v654
        %v656 = vand.u32 %v655, 4294901760
        %657 = vmatmul.f32.gmra.mxu0 %v656
        %v658 = vpop.f32.mrf.mxu0
        %v659 = vadd.f32 0.0, %v658
        %v660 = vand.u32 %v522, 4294901760
        %v661 = vsub.f32 %v522, %v660
        %v662 = vand.u32 %v661, 4294901760
        %v663 = vsub.f32 %v661, %v662
        %v664 = vand.u32 %v663, 4294901760
        %665 = vmatmul.f32.gmra.mxu0 %v664
        %v666 = vpop.f32.mrf.mxu0
        %v667 = vadd.f32 0.0, %v666
        %v668 = vand.u32 %v523, 4294901760
        %v669 = vsub.f32 %v523, %v668
        %v670 = vand.u32 %v669, 4294901760
        %v671 = vsub.f32 %v669, %v670
        %v672 = vand.u32 %v671, 4294901760
        %673 = vmatmul.f32.gmra.mxu0 %v672
        %v674 = vpop.f32.mrf.mxu0
        %v675 = vadd.f32 0.0, %v674
        %v676 = vand.u32 %v524, 4294901760
        %v677 = vsub.f32 %v524, %v676
        %v678 = vand.u32 %v677, 4294901760
        %v679 = vsub.f32 %v677, %v678
        %v680 = vand.u32 %v679, 4294901760
        %681 = vmatmul.f32.gmra.mxu0 %v680
        %v682 = vpop.f32.mrf.mxu0
        %v683 = vadd.f32 0.0, %v682
        %v684 = vand.u32 %v525, 4294901760
        %v685 = vsub.f32 %v525, %v684
        %v686 = vand.u32 %v685, 4294901760
        %v687 = vsub.f32 %v685, %v686
        %v688 = vand.u32 %v687, 4294901760
        %689 = vmatmul.f32.gmra.mxu0 %v688
        %v690 = vpop.f32.mrf.mxu0
        %v691 = vadd.f32 0.0, %v690
        %v692 = vand.u32 %v526, 4294901760
        %v693 = vsub.f32 %v526, %v692
        %v694 = vand.u32 %v693, 4294901760
        %v695 = vsub.f32 %v693, %v694
        %v696 = vand.u32 %v695, 4294901760
        %697 = vmatmul.f32.gmra.mxu0 %v696
        %v698 = vpop.f32.mrf.mxu0
        %v699 = vadd.f32 0.0, %v698
        %v700 = vand.u32 %v527, 4294901760
        %v701 = vsub.f32 %v527, %v700
        %v702 = vand.u32 %v701, 4294901760
        %v703 = vsub.f32 %v701, %v702
        %v704 = vand.u32 %v703, 4294901760
        %705 = vmatmul.f32.gmra.mxu0 %v704
        %v706 = vpop.f32.mrf.mxu0
        %v707 = vadd.f32 0.0, %v706
        %v708 = vand.u32 %v528, 4294901760
        %v709 = vsub.f32 %v528, %v708
        %v710 = vand.u32 %v709, 4294901760
        %v711 = vsub.f32 %v709, %v710
        %v712 = vand.u32 %v711, 4294901760
        %713 = vmatmul.f32.gmra.mxu0 %v712
        %v714 = vpop.f32.mrf.mxu0
        %v715 = vadd.f32 0.0, %v714
        %v716 = vand.u32 %v529, 4294901760
        %v717 = vsub.f32 %v529, %v716
        %v718 = vand.u32 %v717, 4294901760
        %v719 = vsub.f32 %v717, %v718
        %v720 = vand.u32 %v719, 4294901760
        %721 = vmatmul.f32.gmra.mxu0 %v720
        %v722 = vpop.f32.mrf.mxu0
        %v723 = vadd.f32 0.0, %v722
        %v724 = vand.u32 %v530, 4294901760
        %v725 = vsub.f32 %v530, %v724
        %v726 = vand.u32 %v725, 4294901760
        %v727 = vsub.f32 %v725, %v726
        %v728 = vand.u32 %v727, 4294901760
        %729 = vmatmul.f32.gmra.mxu0 %v728
        %v730 = vpop.f32.mrf.mxu0
        %v731 = vadd.f32 0.0, %v730
        %v732 = vand.u32 %v531, 4294901760
        %v733 = vsub.f32 %v531, %v732
        %v734 = vand.u32 %v733, 4294901760
        %v735 = vsub.f32 %v733, %v734
        %v736 = vand.u32 %v735, 4294901760
        %737 = vmatmul.f32.gmra.mxu0 %v736
        %v738 = vpop.f32.mrf.mxu0
        %v739 = vadd.f32 0.0, %v738
        %740 = vdwg.mxu0
        %v741 = vand.u32 %v563, 4294901760
        %v742 = vsub.f32 %v563, %v741
        %v743 = vand.u32 %v742, 4294901760
        %v744 = vsub.f32 %v742, %v743
        %v745 = vand.u32 %v744, 4294901760
        %746 = vmatpush.msra.mxu0 %v745
        %v747 = vand.u32 %v562, 4294901760
        %v748 = vsub.f32 %v562, %v747
        %v749 = vand.u32 %v748, 4294901760
        %v750 = vsub.f32 %v748, %v749
        %v751 = vand.u32 %v750, 4294901760
        %752 = vmatpush.msra.mxu0 %v751
        %v753 = vand.u32 %v561, 4294901760
        %v754 = vsub.f32 %v561, %v753
        %v755 = vand.u32 %v754, 4294901760
        %v756 = vsub.f32 %v754, %v755
        %v757 = vand.u32 %v756, 4294901760
        %758 = vmatpush.msra.mxu0 %v757
        %v759 = vand.u32 %v560, 4294901760
        %v760 = vsub.f32 %v560, %v759
        %v761 = vand.u32 %v760, 4294901760
        %v762 = vsub.f32 %v760, %v761
        %v763 = vand.u32 %v762, 4294901760
        %764 = vmatpush.msra.mxu0 %v763
        %v765 = vand.u32 %v559, 4294901760
        %v766 = vsub.f32 %v559, %v765
        %v767 = vand.u32 %v766, 4294901760
        %v768 = vsub.f32 %v766, %v767
        %v769 = vand.u32 %v768, 4294901760
        %770 = vmatpush.msra.mxu0 %v769
        %v771 = vand.u32 %v558, 4294901760
        %v772 = vsub.f32 %v558, %v771
        %v773 = vand.u32 %v772, 4294901760
        %v774 = vsub.f32 %v772, %v773
        %v775 = vand.u32 %v774, 4294901760
        %776 = vmatpush.msra.mxu0 %v775
        %v777 = vand.u32 %v557, 4294901760
        %v778 = vsub.f32 %v557, %v777
        %v779 = vand.u32 %v778, 4294901760
        %v780 = vsub.f32 %v778, %v779
        %v781 = vand.u32 %v780, 4294901760
        %782 = vmatpush.msra.mxu0 %v781
        %v783 = vand.u32 %v556, 4294901760
        %v784 = vsub.f32 %v556, %v783
        %v785 = vand.u32 %v784, 4294901760
        %v786 = vsub.f32 %v784, %v785
        %v787 = vand.u32 %v786, 4294901760
        %788 = vmatpush.msra.mxu0 %v787
        %v789 = vand.u32 %v555, 4294901760
        %v790 = vsub.f32 %v555, %v789
        %v791 = vand.u32 %v790, 4294901760
        %v792 = vsub.f32 %v790, %v791
        %v793 = vand.u32 %v792, 4294901760
        %794 = vmatpush.msra.mxu0 %v793
        %v795 = vand.u32 %v554, 4294901760
        %v796 = vsub.f32 %v554, %v795
        %v797 = vand.u32 %v796, 4294901760
        %v798 = vsub.f32 %v796, %v797
        %v799 = vand.u32 %v798, 4294901760
        %800 = vmatpush.msra.mxu0 %v799
        %v801 = vand.u32 %v553, 4294901760
        %v802 = vsub.f32 %v553, %v801
        %v803 = vand.u32 %v802, 4294901760
        %v804 = vsub.f32 %v802, %v803
        %v805 = vand.u32 %v804, 4294901760
        %806 = vmatpush.msra.mxu0 %v805
        %v807 = vand.u32 %v552, 4294901760
        %v808 = vsub.f32 %v552, %v807
        %v809 = vand.u32 %v808, 4294901760
        %v810 = vsub.f32 %v808, %v809
        %v811 = vand.u32 %v810, 4294901760
        %812 = vmatpush.msra.mxu0 %v811
        %v813 = vand.u32 %v551, 4294901760
        %v814 = vsub.f32 %v551, %v813
        %v815 = vand.u32 %v814, 4294901760
        %v816 = vsub.f32 %v814, %v815
        %v817 = vand.u32 %v816, 4294901760
        %818 = vmatpush.msra.mxu0 %v817
        %v819 = vand.u32 %v550, 4294901760
        %v820 = vsub.f32 %v550, %v819
        %v821 = vand.u32 %v820, 4294901760
        %v822 = vsub.f32 %v820, %v821
        %v823 = vand.u32 %v822, 4294901760
        %824 = vmatpush.msra.mxu0 %v823
        %v825 = vand.u32 %v549, 4294901760
        %v826 = vsub.f32 %v549, %v825
        %v827 = vand.u32 %v826, 4294901760
        %v828 = vsub.f32 %v826, %v827
        %v829 = vand.u32 %v828, 4294901760
        %830 = vmatpush.msra.mxu0 %v829
        %v831 = vand.u32 %v548, 4294901760
        %v832 = vsub.f32 %v548, %v831
        %v833 = vand.u32 %v832, 4294901760
        %v834 = vsub.f32 %v832, %v833
        %v835 = vand.u32 %v834, 4294901760
        %836 = vmatpush.msra.mxu0 %v835
        %v837 = vand.u32 %v516, 4294901760
        %838 = vmatmul.f32.gmra.mxu0 %v837
        %v839 = vpop.f32.mrf.mxu0
        %v840 = vadd.f32 %v619, %v839
        %v841 = vand.u32 %v517, 4294901760
        %842 = vmatmul.f32.gmra.mxu0 %v841
        %v843 = vpop.f32.mrf.mxu0
        %v844 = vadd.f32 %v627, %v843
        %v845 = vand.u32 %v518, 4294901760
        %846 = vmatmul.f32.gmra.mxu0 %v845
        %v847 = vpop.f32.mrf.mxu0
        %v848 = vadd.f32 %v635, %v847
        %v849 = vand.u32 %v519, 4294901760
        %850 = vmatmul.f32.gmra.mxu0 %v849
        %v851 = vpop.f32.mrf.mxu0
        %v852 = vadd.f32 %v643, %v851
        %v853 = vand.u32 %v520, 4294901760
        %854 = vmatmul.f32.gmra.mxu0 %v853
        %v855 = vpop.f32.mrf.mxu0
        %v856 = vadd.f32 %v651, %v855
        %v857 = vand.u32 %v521, 4294901760
        %858 = vmatmul.f32.gmra.mxu0 %v857
        %v859 = vpop.f32.mrf.mxu0
        %v860 = vadd.f32 %v659, %v859
        %v861 = vand.u32 %v522, 4294901760
        %862 = vmatmul.f32.gmra.mxu0 %v861
        %v863 = vpop.f32.mrf.mxu0
        %v864 = vadd.f32 %v667, %v863
        %v865 = vand.u32 %v523, 4294901760
        %866 = vmatmul.f32.gmra.mxu0 %v865
        %v867 = vpop.f32.mrf.mxu0
        %v868 = vadd.f32 %v675, %v867
        %v869 = vand.u32 %v524, 4294901760
        %870 = vmatmul.f32.gmra.mxu0 %v869
        %v871 = vpop.f32.mrf.mxu0
        %v872 = vadd.f32 %v683, %v871
        %v873 = vand.u32 %v525, 4294901760
        %874 = vmatmul.f32.gmra.mxu0 %v873
        %v875 = vpop.f32.mrf.mxu0
        %v876 = vadd.f32 %v691, %v875
        %v877 = vand.u32 %v526, 4294901760
        %878 = vmatmul.f32.gmra.mxu0 %v877
        %v879 = vpop.f32.mrf.mxu0
        %v880 = vadd.f32 %v699, %v879
        %v881 = vand.u32 %v527, 4294901760
        %882 = vmatmul.f32.gmra.mxu0 %v881
        %v883 = vpop.f32.mrf.mxu0
        %v884 = vadd.f32 %v707, %v883
        %v885 = vand.u32 %v528, 4294901760
        %886 = vmatmul.f32.gmra.mxu0 %v885
        %v887 = vpop.f32.mrf.mxu0
        %v888 = vadd.f32 %v715, %v887
        %v889 = vand.u32 %v529, 4294901760
        %890 = vmatmul.f32.gmra.mxu0 %v889
        %v891 = vpop.f32.mrf.mxu0
        %v892 = vadd.f32 %v723, %v891
        %v893 = vand.u32 %v530, 4294901760
        %894 = vmatmul.f32.gmra.mxu0 %v893
        %v895 = vpop.f32.mrf.mxu0
        %v896 = vadd.f32 %v731, %v895
        %v897 = vand.u32 %v531, 4294901760
        %898 = vmatmul.f32.gmra.mxu0 %v897
        %v899 = vpop.f32.mrf.mxu0
        %v900 = vadd.f32 %v739, %v899
        %901 = vdwg.mxu0
        %v902 = vand.u32 %v563, 4294901760
        %v903 = vsub.f32 %v563, %v902
        %904 = vmatpush.msra.mxu0 %v903
        %v905 = vand.u32 %v562, 4294901760
        %v906 = vsub.f32 %v562, %v905
        %907 = vmatpush.msra.mxu0 %v906
        %v908 = vand.u32 %v561, 4294901760
        %v909 = vsub.f32 %v561, %v908
        %910 = vmatpush.msra.mxu0 %v909
        %v911 = vand.u32 %v560, 4294901760
        %v912 = vsub.f32 %v560, %v911
        %913 = vmatpush.msra.mxu0 %v912
        %v914 = vand.u32 %v559, 4294901760
        %v915 = vsub.f32 %v559, %v914
        %916 = vmatpush.msra.mxu0 %v915
        %v917 = vand.u32 %v558, 4294901760
        %v918 = vsub.f32 %v558, %v917
        %919 = vmatpush.msra.mxu0 %v918
        %v920 = vand.u32 %v557, 4294901760
        %v921 = vsub.f32 %v557, %v920
        %922 = vmatpush.msra.mxu0 %v921
        %v923 = vand.u32 %v556, 4294901760
        %v924 = vsub.f32 %v556, %v923
        %925 = vmatpush.msra.mxu0 %v924
        %v926 = vand.u32 %v555, 4294901760
        %v927 = vsub.f32 %v555, %v926
        %928 = vmatpush.msra.mxu0 %v927
        %v929 = vand.u32 %v554, 4294901760
        %v930 = vsub.f32 %v554, %v929
        %931 = vmatpush.msra.mxu0 %v930
        %v932 = vand.u32 %v553, 4294901760
        %v933 = vsub.f32 %v553, %v932
        %934 = vmatpush.msra.mxu0 %v933
        %v935 = vand.u32 %v552, 4294901760
        %v936 = vsub.f32 %v552, %v935
        %937 = vmatpush.msra.mxu0 %v936
        %v938 = vand.u32 %v551, 4294901760
        %v939 = vsub.f32 %v551, %v938
        %940 = vmatpush.msra.mxu0 %v939
        %v941 = vand.u32 %v550, 4294901760
        %v942 = vsub.f32 %v550, %v941
        %943 = vmatpush.msra.mxu0 %v942
        %v944 = vand.u32 %v549, 4294901760
        %v945 = vsub.f32 %v549, %v944
        %946 = vmatpush.msra.mxu0 %v945
        %v947 = vand.u32 %v548, 4294901760
        %v948 = vsub.f32 %v548, %v947
        %949 = vmatpush.msra.mxu0 %v948
        %v950 = vand.u32 %v516, 4294901760
        %v951 = vsub.f32 %v516, %v950
        %952 = vmatmul.f32.gmra.mxu0 %v951
        %v953 = vpop.f32.mrf.mxu0
        %v954 = vadd.f32 %v840, %v953
        %v955 = vand.u32 %v517, 4294901760
        %v956 = vsub.f32 %v517, %v955
        %957 = vmatmul.f32.gmra.mxu0 %v956
        %v958 = vpop.f32.mrf.mxu0
        %v959 = vadd.f32 %v844, %v958
        %v960 = vand.u32 %v518, 4294901760
        %v961 = vsub.f32 %v518, %v960
        %962 = vmatmul.f32.gmra.mxu0 %v961
        %v963 = vpop.f32.mrf.mxu0
        %v964 = vadd.f32 %v848, %v963
        %v965 = vand.u32 %v519, 4294901760
        %v966 = vsub.f32 %v519, %v965
        %967 = vmatmul.f32.gmra.mxu0 %v966
        %v968 = vpop.f32.mrf.mxu0
        %v969 = vadd.f32 %v852, %v968
        %v970 = vand.u32 %v520, 4294901760
        %v971 = vsub.f32 %v520, %v970
        %972 = vmatmul.f32.gmra.mxu0 %v971
        %v973 = vpop.f32.mrf.mxu0
        %v974 = vadd.f32 %v856, %v973
        %v975 = vand.u32 %v521, 4294901760
        %v976 = vsub.f32 %v521, %v975
        %977 = vmatmul.f32.gmra.mxu0 %v976
        %v978 = vpop.f32.mrf.mxu0
        %v979 = vadd.f32 %v860, %v978
        %v980 = vand.u32 %v522, 4294901760
        %v981 = vsub.f32 %v522, %v980
        %982 = vmatmul.f32.gmra.mxu0 %v981
        %v983 = vpop.f32.mrf.mxu0
        %v984 = vadd.f32 %v864, %v983
        %v985 = vand.u32 %v523, 4294901760
        %v986 = vsub.f32 %v523, %v985
        %987 = vmatmul.f32.gmra.mxu0 %v986
        %v988 = vpop.f32.mrf.mxu0
        %v989 = vadd.f32 %v868, %v988
        %v990 = vand.u32 %v524, 4294901760
        %v991 = vsub.f32 %v524, %v990
        %992 = vmatmul.f32.gmra.mxu0 %v991
        %v993 = vpop.f32.mrf.mxu0
        %v994 = vadd.f32 %v872, %v993
        %v995 = vand.u32 %v525, 4294901760
        %v996 = vsub.f32 %v525, %v995
        %997 = vmatmul.f32.gmra.mxu0 %v996
        %v998 = vpop.f32.mrf.mxu0
        %v999 = vadd.f32 %v876, %v998
        %v1000 = vand.u32 %v526, 4294901760
        %v1001 = vsub.f32 %v526, %v1000
        %1002 = vmatmul.f32.gmra.mxu0 %v1001
        %v1003 = vpop.f32.mrf.mxu0
        %v1004 = vadd.f32 %v880, %v1003
        %v1005 = vand.u32 %v527, 4294901760
        %v1006 = vsub.f32 %v527, %v1005
        %1007 = vmatmul.f32.gmra.mxu0 %v1006
        %v1008 = vpop.f32.mrf.mxu0
        %v1009 = vadd.f32 %v884, %v1008
        %v1010 = vand.u32 %v528, 4294901760
        %v1011 = vsub.f32 %v528, %v1010
        %1012 = vmatmul.f32.gmra.mxu0 %v1011
        %v1013 = vpop.f32.mrf.mxu0
        %v1014 = vadd.f32 %v888, %v1013
        %v1015 = vand.u32 %v529, 4294901760
        %v1016 = vsub.f32 %v529, %v1015
        %1017 = vmatmul.f32.gmra.mxu0 %v1016
        %v1018 = vpop.f32.mrf.mxu0
        %v1019 = vadd.f32 %v892, %v1018
        %v1020 = vand.u32 %v530, 4294901760
        %v1021 = vsub.f32 %v530, %v1020
        %1022 = vmatmul.f32.gmra.mxu0 %v1021
        %v1023 = vpop.f32.mrf.mxu0
        %v1024 = vadd.f32 %v896, %v1023
        %v1025 = vand.u32 %v531, 4294901760
        %v1026 = vsub.f32 %v531, %v1025
        %1027 = vmatmul.f32.gmra.mxu0 %v1026
        %v1028 = vpop.f32.mrf.mxu0
        %v1029 = vadd.f32 %v900, %v1028
        %1030 = vdwg.mxu0
        %v1031 = vand.u32 %v563, 4294901760
        %1032 = vmatpush.msra.mxu0 %v1031
        %v1033 = vand.u32 %v562, 4294901760
        %1034 = vmatpush.msra.mxu0 %v1033
        %v1035 = vand.u32 %v561, 4294901760
        %1036 = vmatpush.msra.mxu0 %v1035
        %v1037 = vand.u32 %v560, 4294901760
        %1038 = vmatpush.msra.mxu0 %v1037
        %v1039 = vand.u32 %v559, 4294901760
        %1040 = vmatpush.msra.mxu0 %v1039
        %v1041 = vand.u32 %v558, 4294901760
        %1042 = vmatpush.msra.mxu0 %v1041
        %v1043 = vand.u32 %v557, 4294901760
        %1044 = vmatpush.msra.mxu0 %v1043
        %v1045 = vand.u32 %v556, 4294901760
        %1046 = vmatpush.msra.mxu0 %v1045
        %v1047 = vand.u32 %v555, 4294901760
        %1048 = vmatpush.msra.mxu0 %v1047
        %v1049 = vand.u32 %v554, 4294901760
        %1050 = vmatpush.msra.mxu0 %v1049
        %v1051 = vand.u32 %v553, 4294901760
        %1052 = vmatpush.msra.mxu0 %v1051
        %v1053 = vand.u32 %v552, 4294901760
        %1054 = vmatpush.msra.mxu0 %v1053
        %v1055 = vand.u32 %v551, 4294901760
        %1056 = vmatpush.msra.mxu0 %v1055
        %v1057 = vand.u32 %v550, 4294901760
        %1058 = vmatpush.msra.mxu0 %v1057
        %v1059 = vand.u32 %v549, 4294901760
        %1060 = vmatpush.msra.mxu0 %v1059
        %v1061 = vand.u32 %v548, 4294901760
        %1062 = vmatpush.msra.mxu0 %v1061
        %v1063 = vand.u32 %v516, 4294901760
        %v1064 = vsub.f32 %v516, %v1063
        %v1065 = vand.u32 %v1064, 4294901760
        %1066 = vmatmul.f32.gmra.mxu0 %v1065
        %v1067 = vpop.f32.mrf.mxu0
        %v1068 = vadd.f32 %v954, %v1067
        %v1069 = vand.u32 %v517, 4294901760
        %v1070 = vsub.f32 %v517, %v1069
        %v1071 = vand.u32 %v1070, 4294901760
        %1072 = vmatmul.f32.gmra.mxu0 %v1071
        %v1073 = vpop.f32.mrf.mxu0
        %v1074 = vadd.f32 %v959, %v1073
        %v1075 = vand.u32 %v518, 4294901760
        %v1076 = vsub.f32 %v518, %v1075
        %v1077 = vand.u32 %v1076, 4294901760
        %1078 = vmatmul.f32.gmra.mxu0 %v1077
        %v1079 = vpop.f32.mrf.mxu0
        %v1080 = vadd.f32 %v964, %v1079
        %v1081 = vand.u32 %v519, 4294901760
        %v1082 = vsub.f32 %v519, %v1081
        %v1083 = vand.u32 %v1082, 4294901760
        %1084 = vmatmul.f32.gmra.mxu0 %v1083
        %v1085 = vpop.f32.mrf.mxu0
        %v1086 = vadd.f32 %v969, %v1085
        %v1087 = vand.u32 %v520, 4294901760
        %v1088 = vsub.f32 %v520, %v1087
        %v1089 = vand.u32 %v1088, 4294901760
        %1090 = vmatmul.f32.gmra.mxu0 %v1089
        %v1091 = vpop.f32.mrf.mxu0
        %v1092 = vadd.f32 %v974, %v1091
        %v1093 = vand.u32 %v521, 4294901760
        %v1094 = vsub.f32 %v521, %v1093
        %v1095 = vand.u32 %v1094, 4294901760
        %1096 = vmatmul.f32.gmra.mxu0 %v1095
        %v1097 = vpop.f32.mrf.mxu0
        %v1098 = vadd.f32 %v979, %v1097
        %v1099 = vand.u32 %v522, 4294901760
        %v1100 = vsub.f32 %v522, %v1099
        %v1101 = vand.u32 %v1100, 4294901760
        %1102 = vmatmul.f32.gmra.mxu0 %v1101
        %v1103 = vpop.f32.mrf.mxu0
        %v1104 = vadd.f32 %v984, %v1103
        %v1105 = vand.u32 %v523, 4294901760
        %v1106 = vsub.f32 %v523, %v1105
        %v1107 = vand.u32 %v1106, 4294901760
        %1108 = vmatmul.f32.gmra.mxu0 %v1107
        %v1109 = vpop.f32.mrf.mxu0
        %v1110 = vadd.f32 %v989, %v1109
        %v1111 = vand.u32 %v524, 4294901760
        %v1112 = vsub.f32 %v524, %v1111
        %v1113 = vand.u32 %v1112, 4294901760
        %1114 = vmatmul.f32.gmra.mxu0 %v1113
        %v1115 = vpop.f32.mrf.mxu0
        %v1116 = vadd.f32 %v994, %v1115
        %v1117 = vand.u32 %v525, 4294901760
        %v1118 = vsub.f32 %v525, %v1117
        %v1119 = vand.u32 %v1118, 4294901760
        %1120 = vmatmul.f32.gmra.mxu0 %v1119
        %v1121 = vpop.f32.mrf.mxu0
        %v1122 = vadd.f32 %v999, %v1121
        %v1123 = vand.u32 %v526, 4294901760
        %v1124 = vsub.f32 %v526, %v1123
        %v1125 = vand.u32 %v1124, 4294901760
        %1126 = vmatmul.f32.gmra.mxu0 %v1125
        %v1127 = vpop.f32.mrf.mxu0
        %v1128 = vadd.f32 %v1004, %v1127
        %v1129 = vand.u32 %v527, 4294901760
        %v1130 = vsub.f32 %v527, %v1129
        %v1131 = vand.u32 %v1130, 4294901760
        %1132 = vmatmul.f32.gmra.mxu0 %v1131
        %v1133 = vpop.f32.mrf.mxu0
        %v1134 = vadd.f32 %v1009, %v1133
        %v1135 = vand.u32 %v528, 4294901760
        %v1136 = vsub.f32 %v528, %v1135
        %v1137 = vand.u32 %v1136, 4294901760
        %1138 = vmatmul.f32.gmra.mxu0 %v1137
        %v1139 = vpop.f32.mrf.mxu0
        %v1140 = vadd.f32 %v1014, %v1139
        %v1141 = vand.u32 %v529, 4294901760
        %v1142 = vsub.f32 %v529, %v1141
        %v1143 = vand.u32 %v1142, 4294901760
        %1144 = vmatmul.f32.gmra.mxu0 %v1143
        %v1145 = vpop.f32.mrf.mxu0
        %v1146 = vadd.f32 %v1019, %v1145
        %v1147 = vand.u32 %v530, 4294901760
        %v1148 = vsub.f32 %v530, %v1147
        %v1149 = vand.u32 %v1148, 4294901760
        %1150 = vmatmul.f32.gmra.mxu0 %v1149
        %v1151 = vpop.f32.mrf.mxu0
        %v1152 = vadd.f32 %v1024, %v1151
        %v1153 = vand.u32 %v531, 4294901760
        %v1154 = vsub.f32 %v531, %v1153
        %v1155 = vand.u32 %v1154, 4294901760
        %1156 = vmatmul.f32.gmra.mxu0 %v1155
        %v1157 = vpop.f32.mrf.mxu0
        %v1158 = vadd.f32 %v1029, %v1157
        %1159 = vdwg.mxu0
        %v1160 = vand.u32 %v563, 4294901760
        %v1161 = vsub.f32 %v563, %v1160
        %v1162 = vand.u32 %v1161, 4294901760
        %1163 = vmatpush.msra.mxu0 %v1162
        %v1164 = vand.u32 %v562, 4294901760
        %v1165 = vsub.f32 %v562, %v1164
        %v1166 = vand.u32 %v1165, 4294901760
        %1167 = vmatpush.msra.mxu0 %v1166
        %v1168 = vand.u32 %v561, 4294901760
        %v1169 = vsub.f32 %v561, %v1168
        %v1170 = vand.u32 %v1169, 4294901760
        %1171 = vmatpush.msra.mxu0 %v1170
        %v1172 = vand.u32 %v560, 4294901760
        %v1173 = vsub.f32 %v560, %v1172
        %v1174 = vand.u32 %v1173, 4294901760
        %1175 = vmatpush.msra.mxu0 %v1174
        %v1176 = vand.u32 %v559, 4294901760
        %v1177 = vsub.f32 %v559, %v1176
        %v1178 = vand.u32 %v1177, 4294901760
        %1179 = vmatpush.msra.mxu0 %v1178
        %v1180 = vand.u32 %v558, 4294901760
        %v1181 = vsub.f32 %v558, %v1180
        %v1182 = vand.u32 %v1181, 4294901760
        %1183 = vmatpush.msra.mxu0 %v1182
        %v1184 = vand.u32 %v557, 4294901760
        %v1185 = vsub.f32 %v557, %v1184
        %v1186 = vand.u32 %v1185, 4294901760
        %1187 = vmatpush.msra.mxu0 %v1186
        %v1188 = vand.u32 %v556, 4294901760
        %v1189 = vsub.f32 %v556, %v1188
        %v1190 = vand.u32 %v1189, 4294901760
        %1191 = vmatpush.msra.mxu0 %v1190
        %v1192 = vand.u32 %v555, 4294901760
        %v1193 = vsub.f32 %v555, %v1192
        %v1194 = vand.u32 %v1193, 4294901760
        %1195 = vmatpush.msra.mxu0 %v1194
        %v1196 = vand.u32 %v554, 4294901760
        %v1197 = vsub.f32 %v554, %v1196
        %v1198 = vand.u32 %v1197, 4294901760
        %1199 = vmatpush.msra.mxu0 %v1198
        %v1200 = vand.u32 %v553, 4294901760
        %v1201 = vsub.f32 %v553, %v1200
        %v1202 = vand.u32 %v1201, 4294901760
        %1203 = vmatpush.msra.mxu0 %v1202
        %v1204 = vand.u32 %v552, 4294901760
        %v1205 = vsub.f32 %v552, %v1204
        %v1206 = vand.u32 %v1205, 4294901760
        %1207 = vmatpush.msra.mxu0 %v1206
        %v1208 = vand.u32 %v551, 4294901760
        %v1209 = vsub.f32 %v551, %v1208
        %v1210 = vand.u32 %v1209, 4294901760
        %1211 = vmatpush.msra.mxu0 %v1210
        %v1212 = vand.u32 %v550, 4294901760
        %v1213 = vsub.f32 %v550, %v1212
        %v1214 = vand.u32 %v1213, 4294901760
        %1215 = vmatpush.msra.mxu0 %v1214
        %v1216 = vand.u32 %v549, 4294901760
        %v1217 = vsub.f32 %v549, %v1216
        %v1218 = vand.u32 %v1217, 4294901760
        %1219 = vmatpush.msra.mxu0 %v1218
        %v1220 = vand.u32 %v548, 4294901760
        %v1221 = vsub.f32 %v548, %v1220
        %v1222 = vand.u32 %v1221, 4294901760
        %1223 = vmatpush.msra.mxu0 %v1222
        %v1224 = vand.u32 %v516, 4294901760
        %1225 = vmatmul.f32.gmra.mxu0 %v1224
        %v1226 = vpop.f32.mrf.mxu0
        %v1227 = vadd.f32 %v1068, %v1226
        %v1228 = vand.u32 %v517, 4294901760
        %1229 = vmatmul.f32.gmra.mxu0 %v1228
        %v1230 = vpop.f32.mrf.mxu0
        %v1231 = vadd.f32 %v1074, %v1230
        %v1232 = vand.u32 %v518, 4294901760
        %1233 = vmatmul.f32.gmra.mxu0 %v1232
        %v1234 = vpop.f32.mrf.mxu0
        %v1235 = vadd.f32 %v1080, %v1234
        %v1236 = vand.u32 %v519, 4294901760
        %1237 = vmatmul.f32.gmra.mxu0 %v1236
        %v1238 = vpop.f32.mrf.mxu0
        %v1239 = vadd.f32 %v1086, %v1238
        %v1240 = vand.u32 %v520, 4294901760
        %1241 = vmatmul.f32.gmra.mxu0 %v1240
        %v1242 = vpop.f32.mrf.mxu0
        %v1243 = vadd.f32 %v1092, %v1242
        %v1244 = vand.u32 %v521, 4294901760
        %1245 = vmatmul.f32.gmra.mxu0 %v1244
        %v1246 = vpop.f32.mrf.mxu0
        %v1247 = vadd.f32 %v1098, %v1246
        %v1248 = vand.u32 %v522, 4294901760
        %1249 = vmatmul.f32.gmra.mxu0 %v1248
        %v1250 = vpop.f32.mrf.mxu0
        %v1251 = vadd.f32 %v1104, %v1250
        %v1252 = vand.u32 %v523, 4294901760
        %1253 = vmatmul.f32.gmra.mxu0 %v1252
        %v1254 = vpop.f32.mrf.mxu0
        %v1255 = vadd.f32 %v1110, %v1254
        %v1256 = vand.u32 %v524, 4294901760
        %1257 = vmatmul.f32.gmra.mxu0 %v1256
        %v1258 = vpop.f32.mrf.mxu0
        %v1259 = vadd.f32 %v1116, %v1258
        %v1260 = vand.u32 %v525, 4294901760
        %1261 = vmatmul.f32.gmra.mxu0 %v1260
        %v1262 = vpop.f32.mrf.mxu0
        %v1263 = vadd.f32 %v1122, %v1262
        %v1264 = vand.u32 %v526, 4294901760
        %1265 = vmatmul.f32.gmra.mxu0 %v1264
        %v1266 = vpop.f32.mrf.mxu0
        %v1267 = vadd.f32 %v1128, %v1266
        %v1268 = vand.u32 %v527, 4294901760
        %1269 = vmatmul.f32.gmra.mxu0 %v1268
        %v1270 = vpop.f32.mrf.mxu0
        %v1271 = vadd.f32 %v1134, %v1270
        %v1272 = vand.u32 %v528, 4294901760
        %1273 = vmatmul.f32.gmra.mxu0 %v1272
        %v1274 = vpop.f32.mrf.mxu0
        %v1275 = vadd.f32 %v1140, %v1274
        %v1276 = vand.u32 %v529, 4294901760
        %1277 = vmatmul.f32.gmra.mxu0 %v1276
        %v1278 = vpop.f32.mrf.mxu0
        %v1279 = vadd.f32 %v1146, %v1278
        %v1280 = vand.u32 %v530, 4294901760
        %1281 = vmatmul.f32.gmra.mxu0 %v1280
        %v1282 = vpop.f32.mrf.mxu0
        %v1283 = vadd.f32 %v1152, %v1282
        %v1284 = vand.u32 %v531, 4294901760
        %1285 = vmatmul.f32.gmra.mxu0 %v1284
        %v1286 = vpop.f32.mrf.mxu0
        %v1287 = vadd.f32 %v1158, %v1286
        %1288 = vdwg.mxu0
        %v1289 = vand.u32 %v563, 4294901760
        %1290 = vmatpush.msra.mxu0 %v1289
        %v1291 = vand.u32 %v562, 4294901760
        %1292 = vmatpush.msra.mxu0 %v1291
        %v1293 = vand.u32 %v561, 4294901760
        %1294 = vmatpush.msra.mxu0 %v1293
        %v1295 = vand.u32 %v560, 4294901760
        %1296 = vmatpush.msra.mxu0 %v1295
        %v1297 = vand.u32 %v559, 4294901760
        %1298 = vmatpush.msra.mxu0 %v1297
        %v1299 = vand.u32 %v558, 4294901760
        %1300 = vmatpush.msra.mxu0 %v1299
        %v1301 = vand.u32 %v557, 4294901760
        %1302 = vmatpush.msra.mxu0 %v1301
        %v1303 = vand.u32 %v556, 4294901760
        %1304 = vmatpush.msra.mxu0 %v1303
        %v1305 = vand.u32 %v555, 4294901760
        %1306 = vmatpush.msra.mxu0 %v1305
        %v1307 = vand.u32 %v554, 4294901760
        %1308 = vmatpush.msra.mxu0 %v1307
        %v1309 = vand.u32 %v553, 4294901760
        %1310 = vmatpush.msra.mxu0 %v1309
        %v1311 = vand.u32 %v552, 4294901760
        %1312 = vmatpush.msra.mxu0 %v1311
        %v1313 = vand.u32 %v551, 4294901760
        %1314 = vmatpush.msra.mxu0 %v1313
        %v1315 = vand.u32 %v550, 4294901760
        %1316 = vmatpush.msra.mxu0 %v1315
        %v1317 = vand.u32 %v549, 4294901760
        %1318 = vmatpush.msra.mxu0 %v1317
        %v1319 = vand.u32 %v548, 4294901760
        %1320 = vmatpush.msra.mxu0 %v1319
        %v1321 = vand.u32 %v516, 4294901760
        %1322 = vmatmul.f32.gmra.mxu0 %v1321
        %v1323 = vpop.f32.mrf.mxu0
        %v1324 = vadd.f32 %v1227, %v1323
        %v1325 = vand.u32 %v517, 4294901760
        %1326 = vmatmul.f32.gmra.mxu0 %v1325
        %v1327 = vpop.f32.mrf.mxu0
        %v1328 = vadd.f32 %v1231, %v1327
        %v1329 = vand.u32 %v518, 4294901760
        %1330 = vmatmul.f32.gmra.mxu0 %v1329
        %v1331 = vpop.f32.mrf.mxu0
        %v1332 = vadd.f32 %v1235, %v1331
        %v1333 = vand.u32 %v519, 4294901760
        %1334 = vmatmul.f32.gmra.mxu0 %v1333
        %v1335 = vpop.f32.mrf.mxu0
        %v1336 = vadd.f32 %v1239, %v1335
        %v1337 = vand.u32 %v520, 4294901760
        %1338 = vmatmul.f32.gmra.mxu0 %v1337
        %v1339 = vpop.f32.mrf.mxu0
        %v1340 = vadd.f32 %v1243, %v1339
        %v1341 = vand.u32 %v521, 4294901760
        %1342 = vmatmul.f32.gmra.mxu0 %v1341
        %v1343 = vpop.f32.mrf.mxu0
        %v1344 = vadd.f32 %v1247, %v1343
        %v1345 = vand.u32 %v522, 4294901760
        %1346 = vmatmul.f32.gmra.mxu0 %v1345
        %v1347 = vpop.f32.mrf.mxu0
        %v1348 = vadd.f32 %v1251, %v1347
        %v1349 = vand.u32 %v523, 4294901760
        %1350 = vmatmul.f32.gmra.mxu0 %v1349
        %v1351 = vpop.f32.mrf.mxu0
        %v1352 = vadd.f32 %v1255, %v1351
        %v1353 = vand.u32 %v524, 4294901760
        %1354 = vmatmul.f32.gmra.mxu0 %v1353
        %v1355 = vpop.f32.mrf.mxu0
        %v1356 = vadd.f32 %v1259, %v1355
        %v1357 = vand.u32 %v525, 4294901760
        %1358 = vmatmul.f32.gmra.mxu0 %v1357
        %v1359 = vpop.f32.mrf.mxu0
        %v1360 = vadd.f32 %v1263, %v1359
        %v1361 = vand.u32 %v526, 4294901760
        %1362 = vmatmul.f32.gmra.mxu0 %v1361
        %v1363 = vpop.f32.mrf.mxu0
        %v1364 = vadd.f32 %v1267, %v1363
        %v1365 = vand.u32 %v527, 4294901760
        %1366 = vmatmul.f32.gmra.mxu0 %v1365
        %v1367 = vpop.f32.mrf.mxu0
        %v1368 = vadd.f32 %v1271, %v1367
        %v1369 = vand.u32 %v528, 4294901760
        %1370 = vmatmul.f32.gmra.mxu0 %v1369
        %v1371 = vpop.f32.mrf.mxu0
        %v1372 = vadd.f32 %v1275, %v1371
        %v1373 = vand.u32 %v529, 4294901760
        %1374 = vmatmul.f32.gmra.mxu0 %v1373
        %v1375 = vpop.f32.mrf.mxu0
        %v1376 = vadd.f32 %v1279, %v1375
        %v1377 = vand.u32 %v530, 4294901760
        %1378 = vmatmul.f32.gmra.mxu0 %v1377
        %v1379 = vpop.f32.mrf.mxu0
        %v1380 = vadd.f32 %v1283, %v1379
        %v1381 = vand.u32 %v531, 4294901760
        %1382 = vmatmul.f32.gmra.mxu0 %v1381
        %v1383 = vpop.f32.mrf.mxu0
        %v1384 = vadd.f32 %v1287, %v1383
        %1385 = vdwg.mxu0
        %v1386 = vmul.f32 %v516, %v516
        %v1387 = vmul.f32 %v517, %v517
        %v1388 = vmul.f32 %v518, %v518
        %v1389 = vmul.f32 %v519, %v519
        %v1390 = vmul.f32 %v520, %v520
        %v1391 = vmul.f32 %v521, %v521
        %v1392 = vmul.f32 %v522, %v522
        %v1393 = vmul.f32 %v523, %v523
        %v1394 = vmul.f32 %v524, %v524
        %v1395 = vmul.f32 %v525, %v525
        %v1396 = vmul.f32 %v526, %v526
        %v1397 = vmul.f32 %v527, %v527
        %v1398 = vmul.f32 %v528, %v528
        %v1399 = vmul.f32 %v529, %v529
        %v1400 = vmul.f32 %v530, %v530
        %v1401 = vmul.f32 %v531, %v531
        %v1402 = vand.u32 %v579, 4294901760
        %1403 = vmatpush.msra.mxu0 %v1402
        %v1404 = vand.u32 %v578, 4294901760
        %1405 = vmatpush.msra.mxu0 %v1404
        %v1406 = vand.u32 %v577, 4294901760
        %1407 = vmatpush.msra.mxu0 %v1406
        %v1408 = vand.u32 %v576, 4294901760
        %1409 = vmatpush.msra.mxu0 %v1408
        %v1410 = vand.u32 %v575, 4294901760
        %1411 = vmatpush.msra.mxu0 %v1410
        %v1412 = vand.u32 %v574, 4294901760
        %1413 = vmatpush.msra.mxu0 %v1412
        %v1414 = vand.u32 %v573, 4294901760
        %1415 = vmatpush.msra.mxu0 %v1414
        %v1416 = vand.u32 %v572, 4294901760
        %1417 = vmatpush.msra.mxu0 %v1416
        %v1418 = vand.u32 %v571, 4294901760
        %1419 = vmatpush.msra.mxu0 %v1418
        %v1420 = vand.u32 %v570, 4294901760
        %1421 = vmatpush.msra.mxu0 %v1420
        %v1422 = vand.u32 %v569, 4294901760
        %1423 = vmatpush.msra.mxu0 %v1422
        %v1424 = vand.u32 %v568, 4294901760
        %1425 = vmatpush.msra.mxu0 %v1424
        %v1426 = vand.u32 %v567, 4294901760
        %1427 = vmatpush.msra.mxu0 %v1426
        %v1428 = vand.u32 %v566, 4294901760
        %1429 = vmatpush.msra.mxu0 %v1428
        %v1430 = vand.u32 %v565, 4294901760
        %1431 = vmatpush.msra.mxu0 %v1430
        %v1432 = vand.u32 %v564, 4294901760
        %1433 = vmatpush.msra.mxu0 %v1432
        %v1434 = vand.u32 %v1386, 4294901760
        %v1435 = vsub.f32 %v1386, %v1434
        %v1436 = vand.u32 %v1435, 4294901760
        %v1437 = vsub.f32 %v1435, %v1436
        %v1438 = vand.u32 %v1437, 4294901760
        %1439 = vmatmul.f32.gmra.mxu0 %v1438
        %v1440 = vpop.f32.mrf.mxu0
        %v1441 = vadd.f32 0.0, %v1440
        %v1442 = vand.u32 %v1387, 4294901760
        %v1443 = vsub.f32 %v1387, %v1442
        %v1444 = vand.u32 %v1443, 4294901760
        %v1445 = vsub.f32 %v1443, %v1444
        %v1446 = vand.u32 %v1445, 4294901760
        %1447 = vmatmul.f32.gmra.mxu0 %v1446
        %v1448 = vpop.f32.mrf.mxu0
        %v1449 = vadd.f32 0.0, %v1448
        %v1450 = vand.u32 %v1388, 4294901760
        %v1451 = vsub.f32 %v1388, %v1450
        %v1452 = vand.u32 %v1451, 4294901760
        %v1453 = vsub.f32 %v1451, %v1452
        %v1454 = vand.u32 %v1453, 4294901760
        %1455 = vmatmul.f32.gmra.mxu0 %v1454
        %v1456 = vpop.f32.mrf.mxu0
        %v1457 = vadd.f32 0.0, %v1456
        %v1458 = vand.u32 %v1389, 4294901760
        %v1459 = vsub.f32 %v1389, %v1458
        %v1460 = vand.u32 %v1459, 4294901760
        %v1461 = vsub.f32 %v1459, %v1460
        %v1462 = vand.u32 %v1461, 4294901760
        %1463 = vmatmul.f32.gmra.mxu0 %v1462
        %v1464 = vpop.f32.mrf.mxu0
        %v1465 = vadd.f32 0.0, %v1464
        %v1466 = vand.u32 %v1390, 4294901760
        %v1467 = vsub.f32 %v1390, %v1466
        %v1468 = vand.u32 %v1467, 4294901760
        %v1469 = vsub.f32 %v1467, %v1468
        %v1470 = vand.u32 %v1469, 4294901760
        %1471 = vmatmul.f32.gmra.mxu0 %v1470
        %v1472 = vpop.f32.mrf.mxu0
        %v1473 = vadd.f32 0.0, %v1472
        %v1474 = vand.u32 %v1391, 4294901760
        %v1475 = vsub.f32 %v1391, %v1474
        %v1476 = vand.u32 %v1475, 4294901760
        %v1477 = vsub.f32 %v1475, %v1476
        %v1478 = vand.u32 %v1477, 4294901760
        %1479 = vmatmul.f32.gmra.mxu0 %v1478
        %v1480 = vpop.f32.mrf.mxu0
        %v1481 = vadd.f32 0.0, %v1480
        %v1482 = vand.u32 %v1392, 4294901760
        %v1483 = vsub.f32 %v1392, %v1482
        %v1484 = vand.u32 %v1483, 4294901760
        %v1485 = vsub.f32 %v1483, %v1484
        %v1486 = vand.u32 %v1485, 4294901760
        %1487 = vmatmul.f32.gmra.mxu0 %v1486
        %v1488 = vpop.f32.mrf.mxu0
        %v1489 = vadd.f32 0.0, %v1488
        %v1490 = vand.u32 %v1393, 4294901760
        %v1491 = vsub.f32 %v1393, %v1490
        %v1492 = vand.u32 %v1491, 4294901760
        %v1493 = vsub.f32 %v1491, %v1492
        %v1494 = vand.u32 %v1493, 4294901760
        %1495 = vmatmul.f32.gmra.mxu0 %v1494
        %v1496 = vpop.f32.mrf.mxu0
        %v1497 = vadd.f32 0.0, %v1496
        %v1498 = vand.u32 %v1394, 4294901760
        %v1499 = vsub.f32 %v1394, %v1498
        %v1500 = vand.u32 %v1499, 4294901760
        %v1501 = vsub.f32 %v1499, %v1500
        %v1502 = vand.u32 %v1501, 4294901760
        %1503 = vmatmul.f32.gmra.mxu0 %v1502
        %v1504 = vpop.f32.mrf.mxu0
        %v1505 = vadd.f32 0.0, %v1504
        %v1506 = vand.u32 %v1395, 4294901760
        %v1507 = vsub.f32 %v1395, %v1506
        %v1508 = vand.u32 %v1507, 4294901760
        %v1509 = vsub.f32 %v1507, %v1508
        %v1510 = vand.u32 %v1509, 4294901760
        %1511 = vmatmul.f32.gmra.mxu0 %v1510
        %v1512 = vpop.f32.mrf.mxu0
        %v1513 = vadd.f32 0.0, %v1512
        %v1514 = vand.u32 %v1396, 4294901760
        %v1515 = vsub.f32 %v1396, %v1514
        %v1516 = vand.u32 %v1515, 4294901760
        %v1517 = vsub.f32 %v1515, %v1516
        %v1518 = vand.u32 %v1517, 4294901760
        %1519 = vmatmul.f32.gmra.mxu0 %v1518
        %v1520 = vpop.f32.mrf.mxu0
        %v1521 = vadd.f32 0.0, %v1520
        %v1522 = vand.u32 %v1397, 4294901760
        %v1523 = vsub.f32 %v1397, %v1522
        %v1524 = vand.u32 %v1523, 4294901760
        %v1525 = vsub.f32 %v1523, %v1524
        %v1526 = vand.u32 %v1525, 4294901760
        %1527 = vmatmul.f32.gmra.mxu0 %v1526
        %v1528 = vpop.f32.mrf.mxu0
        %v1529 = vadd.f32 0.0, %v1528
        %v1530 = vand.u32 %v1398, 4294901760
        %v1531 = vsub.f32 %v1398, %v1530
        %v1532 = vand.u32 %v1531, 4294901760
        %v1533 = vsub.f32 %v1531, %v1532
        %v1534 = vand.u32 %v1533, 4294901760
        %1535 = vmatmul.f32.gmra.mxu0 %v1534
        %v1536 = vpop.f32.mrf.mxu0
        %v1537 = vadd.f32 0.0, %v1536
        %v1538 = vand.u32 %v1399, 4294901760
        %v1539 = vsub.f32 %v1399, %v1538
        %v1540 = vand.u32 %v1539, 4294901760
        %v1541 = vsub.f32 %v1539, %v1540
        %v1542 = vand.u32 %v1541, 4294901760
        %1543 = vmatmul.f32.gmra.mxu0 %v1542
        %v1544 = vpop.f32.mrf.mxu0
        %v1545 = vadd.f32 0.0, %v1544
        %v1546 = vand.u32 %v1400, 4294901760
        %v1547 = vsub.f32 %v1400, %v1546
        %v1548 = vand.u32 %v1547, 4294901760
        %v1549 = vsub.f32 %v1547, %v1548
        %v1550 = vand.u32 %v1549, 4294901760
        %1551 = vmatmul.f32.gmra.mxu0 %v1550
        %v1552 = vpop.f32.mrf.mxu0
        %v1553 = vadd.f32 0.0, %v1552
        %v1554 = vand.u32 %v1401, 4294901760
        %v1555 = vsub.f32 %v1401, %v1554
        %v1556 = vand.u32 %v1555, 4294901760
        %v1557 = vsub.f32 %v1555, %v1556
        %v1558 = vand.u32 %v1557, 4294901760
        %1559 = vmatmul.f32.gmra.mxu0 %v1558
        %v1560 = vpop.f32.mrf.mxu0
        %v1561 = vadd.f32 0.0, %v1560
        %1562 = vdwg.mxu0
        %v1563 = vand.u32 %v579, 4294901760
        %v1564 = vsub.f32 %v579, %v1563
        %v1565 = vand.u32 %v1564, 4294901760
        %v1566 = vsub.f32 %v1564, %v1565
        %v1567 = vand.u32 %v1566, 4294901760
        %1568 = vmatpush.msra.mxu0 %v1567
        %v1569 = vand.u32 %v578, 4294901760
        %v1570 = vsub.f32 %v578, %v1569
        %v1571 = vand.u32 %v1570, 4294901760
        %v1572 = vsub.f32 %v1570, %v1571
        %v1573 = vand.u32 %v1572, 4294901760
        %1574 = vmatpush.msra.mxu0 %v1573
        %v1575 = vand.u32 %v577, 4294901760
        %v1576 = vsub.f32 %v577, %v1575
        %v1577 = vand.u32 %v1576, 4294901760
        %v1578 = vsub.f32 %v1576, %v1577
        %v1579 = vand.u32 %v1578, 4294901760
        %1580 = vmatpush.msra.mxu0 %v1579
        %v1581 = vand.u32 %v576, 4294901760
        %v1582 = vsub.f32 %v576, %v1581
        %v1583 = vand.u32 %v1582, 4294901760
        %v1584 = vsub.f32 %v1582, %v1583
        %v1585 = vand.u32 %v1584, 4294901760
        %1586 = vmatpush.msra.mxu0 %v1585
        %v1587 = vand.u32 %v575, 4294901760
        %v1588 = vsub.f32 %v575, %v1587
        %v1589 = vand.u32 %v1588, 4294901760
        %v1590 = vsub.f32 %v1588, %v1589
        %v1591 = vand.u32 %v1590, 4294901760
        %1592 = vmatpush.msra.mxu0 %v1591
        %v1593 = vand.u32 %v574, 4294901760
        %v1594 = vsub.f32 %v574, %v1593
        %v1595 = vand.u32 %v1594, 4294901760
        %v1596 = vsub.f32 %v1594, %v1595
        %v1597 = vand.u32 %v1596, 4294901760
        %1598 = vmatpush.msra.mxu0 %v1597
        %v1599 = vand.u32 %v573, 4294901760
        %v1600 = vsub.f32 %v573, %v1599
        %v1601 = vand.u32 %v1600, 4294901760
        %v1602 = vsub.f32 %v1600, %v1601
        %v1603 = vand.u32 %v1602, 4294901760
        %1604 = vmatpush.msra.mxu0 %v1603
        %v1605 = vand.u32 %v572, 4294901760
        %v1606 = vsub.f32 %v572, %v1605
        %v1607 = vand.u32 %v1606, 4294901760
        %v1608 = vsub.f32 %v1606, %v1607
        %v1609 = vand.u32 %v1608, 4294901760
        %1610 = vmatpush.msra.mxu0 %v1609
        %v1611 = vand.u32 %v571, 4294901760
        %v1612 = vsub.f32 %v571, %v1611
        %v1613 = vand.u32 %v1612, 4294901760
        %v1614 = vsub.f32 %v1612, %v1613
        %v1615 = vand.u32 %v1614, 4294901760
        %1616 = vmatpush.msra.mxu0 %v1615
        %v1617 = vand.u32 %v570, 4294901760
        %v1618 = vsub.f32 %v570, %v1617
        %v1619 = vand.u32 %v1618, 4294901760
        %v1620 = vsub.f32 %v1618, %v1619
        %v1621 = vand.u32 %v1620, 4294901760
        %1622 = vmatpush.msra.mxu0 %v1621
        %v1623 = vand.u32 %v569, 4294901760
        %v1624 = vsub.f32 %v569, %v1623
        %v1625 = vand.u32 %v1624, 4294901760
        %v1626 = vsub.f32 %v1624, %v1625
        %v1627 = vand.u32 %v1626, 4294901760
        %1628 = vmatpush.msra.mxu0 %v1627
        %v1629 = vand.u32 %v568, 4294901760
        %v1630 = vsub.f32 %v568, %v1629
        %v1631 = vand.u32 %v1630, 4294901760
        %v1632 = vsub.f32 %v1630, %v1631
        %v1633 = vand.u32 %v1632, 4294901760
        %1634 = vmatpush.msra.mxu0 %v1633
        %v1635 = vand.u32 %v567, 4294901760
        %v1636 = vsub.f32 %v567, %v1635
        %v1637 = vand.u32 %v1636, 4294901760
        %v1638 = vsub.f32 %v1636, %v1637
        %v1639 = vand.u32 %v1638, 4294901760
        %1640 = vmatpush.msra.mxu0 %v1639
        %v1641 = vand.u32 %v566, 4294901760
        %v1642 = vsub.f32 %v566, %v1641
        %v1643 = vand.u32 %v1642, 4294901760
        %v1644 = vsub.f32 %v1642, %v1643
        %v1645 = vand.u32 %v1644, 4294901760
        %1646 = vmatpush.msra.mxu0 %v1645
        %v1647 = vand.u32 %v565, 4294901760
        %v1648 = vsub.f32 %v565, %v1647
        %v1649 = vand.u32 %v1648, 4294901760
        %v1650 = vsub.f32 %v1648, %v1649
        %v1651 = vand.u32 %v1650, 4294901760
        %1652 = vmatpush.msra.mxu0 %v1651
        %v1653 = vand.u32 %v564, 4294901760
        %v1654 = vsub.f32 %v564, %v1653
        %v1655 = vand.u32 %v1654, 4294901760
        %v1656 = vsub.f32 %v1654, %v1655
        %v1657 = vand.u32 %v1656, 4294901760
        %1658 = vmatpush.msra.mxu0 %v1657
        %v1659 = vand.u32 %v1386, 4294901760
        %1660 = vmatmul.f32.gmra.mxu0 %v1659
        %v1661 = vpop.f32.mrf.mxu0
        %v1662 = vadd.f32 %v1441, %v1661
        %v1663 = vand.u32 %v1387, 4294901760
        %1664 = vmatmul.f32.gmra.mxu0 %v1663
        %v1665 = vpop.f32.mrf.mxu0
        %v1666 = vadd.f32 %v1449, %v1665
        %v1667 = vand.u32 %v1388, 4294901760
        %1668 = vmatmul.f32.gmra.mxu0 %v1667
        %v1669 = vpop.f32.mrf.mxu0
        %v1670 = vadd.f32 %v1457, %v1669
        %v1671 = vand.u32 %v1389, 4294901760
        %1672 = vmatmul.f32.gmra.mxu0 %v1671
        %v1673 = vpop.f32.mrf.mxu0
        %v1674 = vadd.f32 %v1465, %v1673
        %v1675 = vand.u32 %v1390, 4294901760
        %1676 = vmatmul.f32.gmra.mxu0 %v1675
        %v1677 = vpop.f32.mrf.mxu0
        %v1678 = vadd.f32 %v1473, %v1677
        %v1679 = vand.u32 %v1391, 4294901760
        %1680 = vmatmul.f32.gmra.mxu0 %v1679
        %v1681 = vpop.f32.mrf.mxu0
        %v1682 = vadd.f32 %v1481, %v1681
        %v1683 = vand.u32 %v1392, 4294901760
        %1684 = vmatmul.f32.gmra.mxu0 %v1683
        %v1685 = vpop.f32.mrf.mxu0
        %v1686 = vadd.f32 %v1489, %v1685
        %v1687 = vand.u32 %v1393, 4294901760
        %1688 = vmatmul.f32.gmra.mxu0 %v1687
        %v1689 = vpop.f32.mrf.mxu0
        %v1690 = vadd.f32 %v1497, %v1689
        %v1691 = vand.u32 %v1394, 4294901760
        %1692 = vmatmul.f32.gmra.mxu0 %v1691
        %v1693 = vpop.f32.mrf.mxu0
        %v1694 = vadd.f32 %v1505, %v1693
        %v1695 = vand.u32 %v1395, 4294901760
        %1696 = vmatmul.f32.gmra.mxu0 %v1695
        %v1697 = vpop.f32.mrf.mxu0
        %v1698 = vadd.f32 %v1513, %v1697
        %v1699 = vand.u32 %v1396, 4294901760
        %1700 = vmatmul.f32.gmra.mxu0 %v1699
        %v1701 = vpop.f32.mrf.mxu0
        %v1702 = vadd.f32 %v1521, %v1701
        %v1703 = vand.u32 %v1397, 4294901760
        %1704 = vmatmul.f32.gmra.mxu0 %v1703
        %v1705 = vpop.f32.mrf.mxu0
        %v1706 = vadd.f32 %v1529, %v1705
        %v1707 = vand.u32 %v1398, 4294901760
        %1708 = vmatmul.f32.gmra.mxu0 %v1707
        %v1709 = vpop.f32.mrf.mxu0
        %v1710 = vadd.f32 %v1537, %v1709
        %v1711 = vand.u32 %v1399, 4294901760
        %1712 = vmatmul.f32.gmra.mxu0 %v1711
        %v1713 = vpop.f32.mrf.mxu0
        %v1714 = vadd.f32 %v1545, %v1713
        %v1715 = vand.u32 %v1400, 4294901760
        %1716 = vmatmul.f32.gmra.mxu0 %v1715
        %v1717 = vpop.f32.mrf.mxu0
        %v1718 = vadd.f32 %v1553, %v1717
        %v1719 = vand.u32 %v1401, 4294901760
        %1720 = vmatmul.f32.gmra.mxu0 %v1719
        %v1721 = vpop.f32.mrf.mxu0
        %v1722 = vadd.f32 %v1561, %v1721
        %1723 = vdwg.mxu0
        %v1724 = vand.u32 %v579, 4294901760
        %v1725 = vsub.f32 %v579, %v1724
        %1726 = vmatpush.msra.mxu0 %v1725
        %v1727 = vand.u32 %v578, 4294901760
        %v1728 = vsub.f32 %v578, %v1727
        %1729 = vmatpush.msra.mxu0 %v1728
        %v1730 = vand.u32 %v577, 4294901760
        %v1731 = vsub.f32 %v577, %v1730
        %1732 = vmatpush.msra.mxu0 %v1731
        %v1733 = vand.u32 %v576, 4294901760
        %v1734 = vsub.f32 %v576, %v1733
        %1735 = vmatpush.msra.mxu0 %v1734
        %v1736 = vand.u32 %v575, 4294901760
        %v1737 = vsub.f32 %v575, %v1736
        %1738 = vmatpush.msra.mxu0 %v1737
        %v1739 = vand.u32 %v574, 4294901760
        %v1740 = vsub.f32 %v574, %v1739
        %1741 = vmatpush.msra.mxu0 %v1740
        %v1742 = vand.u32 %v573, 4294901760
        %v1743 = vsub.f32 %v573, %v1742
        %1744 = vmatpush.msra.mxu0 %v1743
        %v1745 = vand.u32 %v572, 4294901760
        %v1746 = vsub.f32 %v572, %v1745
        %1747 = vmatpush.msra.mxu0 %v1746
        %v1748 = vand.u32 %v571, 4294901760
        %v1749 = vsub.f32 %v571, %v1748
        %1750 = vmatpush.msra.mxu0 %v1749
        %v1751 = vand.u32 %v570, 4294901760
        %v1752 = vsub.f32 %v570, %v1751
        %1753 = vmatpush.msra.mxu0 %v1752
        %v1754 = vand.u32 %v569, 4294901760
        %v1755 = vsub.f32 %v569, %v1754
        %1756 = vmatpush.msra.mxu0 %v1755
        %v1757 = vand.u32 %v568, 4294901760
        %v1758 = vsub.f32 %v568, %v1757
        %1759 = vmatpush.msra.mxu0 %v1758
        %v1760 = vand.u32 %v567, 4294901760
        %v1761 = vsub.f32 %v567, %v1760
        %1762 = vmatpush.msra.mxu0 %v1761
        %v1763 = vand.u32 %v566, 4294901760
        %v1764 = vsub.f32 %v566, %v1763
        %1765 = vmatpush.msra.mxu0 %v1764
        %v1766 = vand.u32 %v565, 4294901760
        %v1767 = vsub.f32 %v565, %v1766
        %1768 = vmatpush.msra.mxu0 %v1767
        %v1769 = vand.u32 %v564, 4294901760
        %v1770 = vsub.f32 %v564, %v1769
        %1771 = vmatpush.msra.mxu0 %v1770
        %v1772 = vand.u32 %v1386, 4294901760
        %v1773 = vsub.f32 %v1386, %v1772
        %1774 = vmatmul.f32.gmra.mxu0 %v1773
        %v1775 = vpop.f32.mrf.mxu0
        %v1776 = vadd.f32 %v1662, %v1775
        %v1777 = vand.u32 %v1387, 4294901760
        %v1778 = vsub.f32 %v1387, %v1777
        %1779 = vmatmul.f32.gmra.mxu0 %v1778
        %v1780 = vpop.f32.mrf.mxu0
        %v1781 = vadd.f32 %v1666, %v1780
        %v1782 = vand.u32 %v1388, 4294901760
        %v1783 = vsub.f32 %v1388, %v1782
        %1784 = vmatmul.f32.gmra.mxu0 %v1783
        %v1785 = vpop.f32.mrf.mxu0
        %v1786 = vadd.f32 %v1670, %v1785
        %v1787 = vand.u32 %v1389, 4294901760
        %v1788 = vsub.f32 %v1389, %v1787
        %1789 = vmatmul.f32.gmra.mxu0 %v1788
        %v1790 = vpop.f32.mrf.mxu0
        %v1791 = vadd.f32 %v1674, %v1790
        %v1792 = vand.u32 %v1390, 4294901760
        %v1793 = vsub.f32 %v1390, %v1792
        %1794 = vmatmul.f32.gmra.mxu0 %v1793
        %v1795 = vpop.f32.mrf.mxu0
        %v1796 = vadd.f32 %v1678, %v1795
        %v1797 = vand.u32 %v1391, 4294901760
        %v1798 = vsub.f32 %v1391, %v1797
        %1799 = vmatmul.f32.gmra.mxu0 %v1798
        %v1800 = vpop.f32.mrf.mxu0
        %v1801 = vadd.f32 %v1682, %v1800
        %v1802 = vand.u32 %v1392, 4294901760
        %v1803 = vsub.f32 %v1392, %v1802
        %1804 = vmatmul.f32.gmra.mxu0 %v1803
        %v1805 = vpop.f32.mrf.mxu0
        %v1806 = vadd.f32 %v1686, %v1805
        %v1807 = vand.u32 %v1393, 4294901760
        %v1808 = vsub.f32 %v1393, %v1807
        %1809 = vmatmul.f32.gmra.mxu0 %v1808
        %v1810 = vpop.f32.mrf.mxu0
        %v1811 = vadd.f32 %v1690, %v1810
        %v1812 = vand.u32 %v1394, 4294901760
        %v1813 = vsub.f32 %v1394, %v1812
        %1814 = vmatmul.f32.gmra.mxu0 %v1813
        %v1815 = vpop.f32.mrf.mxu0
        %v1816 = vadd.f32 %v1694, %v1815
        %v1817 = vand.u32 %v1395, 4294901760
        %v1818 = vsub.f32 %v1395, %v1817
        %1819 = vmatmul.f32.gmra.mxu0 %v1818
        %v1820 = vpop.f32.mrf.mxu0
        %v1821 = vadd.f32 %v1698, %v1820
        %v1822 = vand.u32 %v1396, 4294901760
        %v1823 = vsub.f32 %v1396, %v1822
        %1824 = vmatmul.f32.gmra.mxu0 %v1823
        %v1825 = vpop.f32.mrf.mxu0
        %v1826 = vadd.f32 %v1702, %v1825
        %v1827 = vand.u32 %v1397, 4294901760
        %v1828 = vsub.f32 %v1397, %v1827
        %1829 = vmatmul.f32.gmra.mxu0 %v1828
        %v1830 = vpop.f32.mrf.mxu0
        %v1831 = vadd.f32 %v1706, %v1830
        %v1832 = vand.u32 %v1398, 4294901760
        %v1833 = vsub.f32 %v1398, %v1832
        %1834 = vmatmul.f32.gmra.mxu0 %v1833
        %v1835 = vpop.f32.mrf.mxu0
        %v1836 = vadd.f32 %v1710, %v1835
        %v1837 = vand.u32 %v1399, 4294901760
        %v1838 = vsub.f32 %v1399, %v1837
        %1839 = vmatmul.f32.gmra.mxu0 %v1838
        %v1840 = vpop.f32.mrf.mxu0
        %v1841 = vadd.f32 %v1714, %v1840
        %v1842 = vand.u32 %v1400, 4294901760
        %v1843 = vsub.f32 %v1400, %v1842
        %1844 = vmatmul.f32.gmra.mxu0 %v1843
        %v1845 = vpop.f32.mrf.mxu0
        %v1846 = vadd.f32 %v1718, %v1845
        %v1847 = vand.u32 %v1401, 4294901760
        %v1848 = vsub.f32 %v1401, %v1847
        %1849 = vmatmul.f32.gmra.mxu0 %v1848
        %v1850 = vpop.f32.mrf.mxu0
        %v1851 = vadd.f32 %v1722, %v1850
        %1852 = vdwg.mxu0
        %v1853 = vand.u32 %v579, 4294901760
        %1854 = vmatpush.msra.mxu0 %v1853
        %v1855 = vand.u32 %v578, 4294901760
        %1856 = vmatpush.msra.mxu0 %v1855
        %v1857 = vand.u32 %v577, 4294901760
        %1858 = vmatpush.msra.mxu0 %v1857
        %v1859 = vand.u32 %v576, 4294901760
        %1860 = vmatpush.msra.mxu0 %v1859
        %v1861 = vand.u32 %v575, 4294901760
        %1862 = vmatpush.msra.mxu0 %v1861
        %v1863 = vand.u32 %v574, 4294901760
        %1864 = vmatpush.msra.mxu0 %v1863
        %v1865 = vand.u32 %v573, 4294901760
        %1866 = vmatpush.msra.mxu0 %v1865
        %v1867 = vand.u32 %v572, 4294901760
        %1868 = vmatpush.msra.mxu0 %v1867
        %v1869 = vand.u32 %v571, 4294901760
        %1870 = vmatpush.msra.mxu0 %v1869
        %v1871 = vand.u32 %v570, 4294901760
        %1872 = vmatpush.msra.mxu0 %v1871
        %v1873 = vand.u32 %v569, 4294901760
        %1874 = vmatpush.msra.mxu0 %v1873
        %v1875 = vand.u32 %v568, 4294901760
        %1876 = vmatpush.msra.mxu0 %v1875
        %v1877 = vand.u32 %v567, 4294901760
        %1878 = vmatpush.msra.mxu0 %v1877
        %v1879 = vand.u32 %v566, 4294901760
        %1880 = vmatpush.msra.mxu0 %v1879
        %v1881 = vand.u32 %v565, 4294901760
        %1882 = vmatpush.msra.mxu0 %v1881
        %v1883 = vand.u32 %v564, 4294901760
        %1884 = vmatpush.msra.mxu0 %v1883
        %v1885 = vand.u32 %v1386, 4294901760
        %v1886 = vsub.f32 %v1386, %v1885
        %v1887 = vand.u32 %v1886, 4294901760
        %1888 = vmatmul.f32.gmra.mxu0 %v1887
        %v1889 = vpop.f32.mrf.mxu0
        %v1890 = vadd.f32 %v1776, %v1889
        %v1891 = vand.u32 %v1387, 4294901760
        %v1892 = vsub.f32 %v1387, %v1891
        %v1893 = vand.u32 %v1892, 4294901760
        %1894 = vmatmul.f32.gmra.mxu0 %v1893
        %v1895 = vpop.f32.mrf.mxu0
        %v1896 = vadd.f32 %v1781, %v1895
        %v1897 = vand.u32 %v1388, 4294901760
        %v1898 = vsub.f32 %v1388, %v1897
        %v1899 = vand.u32 %v1898, 4294901760
        %1900 = vmatmul.f32.gmra.mxu0 %v1899
        %v1901 = vpop.f32.mrf.mxu0
        %v1902 = vadd.f32 %v1786, %v1901
        %v1903 = vand.u32 %v1389, 4294901760
        %v1904 = vsub.f32 %v1389, %v1903
        %v1905 = vand.u32 %v1904, 4294901760
        %1906 = vmatmul.f32.gmra.mxu0 %v1905
        %v1907 = vpop.f32.mrf.mxu0
        %v1908 = vadd.f32 %v1791, %v1907
        %v1909 = vand.u32 %v1390, 4294901760
        %v1910 = vsub.f32 %v1390, %v1909
        %v1911 = vand.u32 %v1910, 4294901760
        %1912 = vmatmul.f32.gmra.mxu0 %v1911
        %v1913 = vpop.f32.mrf.mxu0
        %v1914 = vadd.f32 %v1796, %v1913
        %v1915 = vand.u32 %v1391, 4294901760
        %v1916 = vsub.f32 %v1391, %v1915
        %v1917 = vand.u32 %v1916, 4294901760
        %1918 = vmatmul.f32.gmra.mxu0 %v1917
        %v1919 = vpop.f32.mrf.mxu0
        %v1920 = vadd.f32 %v1801, %v1919
        %v1921 = vand.u32 %v1392, 4294901760
        %v1922 = vsub.f32 %v1392, %v1921
        %v1923 = vand.u32 %v1922, 4294901760
        %1924 = vmatmul.f32.gmra.mxu0 %v1923
        %v1925 = vpop.f32.mrf.mxu0
        %v1926 = vadd.f32 %v1806, %v1925
        %v1927 = vand.u32 %v1393, 4294901760
        %v1928 = vsub.f32 %v1393, %v1927
        %v1929 = vand.u32 %v1928, 4294901760
        %1930 = vmatmul.f32.gmra.mxu0 %v1929
        %v1931 = vpop.f32.mrf.mxu0
        %v1932 = vadd.f32 %v1811, %v1931
        %v1933 = vand.u32 %v1394, 4294901760
        %v1934 = vsub.f32 %v1394, %v1933
        %v1935 = vand.u32 %v1934, 4294901760
        %1936 = vmatmul.f32.gmra.mxu0 %v1935
        %v1937 = vpop.f32.mrf.mxu0
        %v1938 = vadd.f32 %v1816, %v1937
        %v1939 = vand.u32 %v1395, 4294901760
        %v1940 = vsub.f32 %v1395, %v1939
        %v1941 = vand.u32 %v1940, 4294901760
        %1942 = vmatmul.f32.gmra.mxu0 %v1941
        %v1943 = vpop.f32.mrf.mxu0
        %v1944 = vadd.f32 %v1821, %v1943
        %v1945 = vand.u32 %v1396, 4294901760
        %v1946 = vsub.f32 %v1396, %v1945
        %v1947 = vand.u32 %v1946, 4294901760
        %1948 = vmatmul.f32.gmra.mxu0 %v1947
        %v1949 = vpop.f32.mrf.mxu0
        %v1950 = vadd.f32 %v1826, %v1949
        %v1951 = vand.u32 %v1397, 4294901760
        %v1952 = vsub.f32 %v1397, %v1951
        %v1953 = vand.u32 %v1952, 4294901760
        %1954 = vmatmul.f32.gmra.mxu0 %v1953
        %v1955 = vpop.f32.mrf.mxu0
        %v1956 = vadd.f32 %v1831, %v1955
        %v1957 = vand.u32 %v1398, 4294901760
        %v1958 = vsub.f32 %v1398, %v1957
        %v1959 = vand.u32 %v1958, 4294901760
        %1960 = vmatmul.f32.gmra.mxu0 %v1959
        %v1961 = vpop.f32.mrf.mxu0
        %v1962 = vadd.f32 %v1836, %v1961
        %v1963 = vand.u32 %v1399, 4294901760
        %v1964 = vsub.f32 %v1399, %v1963
        %v1965 = vand.u32 %v1964, 4294901760
        %1966 = vmatmul.f32.gmra.mxu0 %v1965
        %v1967 = vpop.f32.mrf.mxu0
        %v1968 = vadd.f32 %v1841, %v1967
        %v1969 = vand.u32 %v1400, 4294901760
        %v1970 = vsub.f32 %v1400, %v1969
        %v1971 = vand.u32 %v1970, 4294901760
        %1972 = vmatmul.f32.gmra.mxu0 %v1971
        %v1973 = vpop.f32.mrf.mxu0
        %v1974 = vadd.f32 %v1846, %v1973
        %v1975 = vand.u32 %v1401, 4294901760
        %v1976 = vsub.f32 %v1401, %v1975
        %v1977 = vand.u32 %v1976, 4294901760
        %1978 = vmatmul.f32.gmra.mxu0 %v1977
        %v1979 = vpop.f32.mrf.mxu0
        %v1980 = vadd.f32 %v1851, %v1979
        %1981 = vdwg.mxu0
        %v1982 = vand.u32 %v579, 4294901760
        %v1983 = vsub.f32 %v579, %v1982
        %v1984 = vand.u32 %v1983, 4294901760
        %1985 = vmatpush.msra.mxu0 %v1984
        %v1986 = vand.u32 %v578, 4294901760
        %v1987 = vsub.f32 %v578, %v1986
        %v1988 = vand.u32 %v1987, 4294901760
        %1989 = vmatpush.msra.mxu0 %v1988
        %v1990 = vand.u32 %v577, 4294901760
        %v1991 = vsub.f32 %v577, %v1990
        %v1992 = vand.u32 %v1991, 4294901760
        %1993 = vmatpush.msra.mxu0 %v1992
        %v1994 = vand.u32 %v576, 4294901760
        %v1995 = vsub.f32 %v576, %v1994
        %v1996 = vand.u32 %v1995, 4294901760
        %1997 = vmatpush.msra.mxu0 %v1996
        %v1998 = vand.u32 %v575, 4294901760
        %v1999 = vsub.f32 %v575, %v1998
        %v2000 = vand.u32 %v1999, 4294901760
        %2001 = vmatpush.msra.mxu0 %v2000
        %v2002 = vand.u32 %v574, 4294901760
        %v2003 = vsub.f32 %v574, %v2002
        %v2004 = vand.u32 %v2003, 4294901760
        %2005 = vmatpush.msra.mxu0 %v2004
        %v2006 = vand.u32 %v573, 4294901760
        %v2007 = vsub.f32 %v573, %v2006
        %v2008 = vand.u32 %v2007, 4294901760
        %2009 = vmatpush.msra.mxu0 %v2008
        %v2010 = vand.u32 %v572, 4294901760
        %v2011 = vsub.f32 %v572, %v2010
        %v2012 = vand.u32 %v2011, 4294901760
        %2013 = vmatpush.msra.mxu0 %v2012
        %v2014 = vand.u32 %v571, 4294901760
        %v2015 = vsub.f32 %v571, %v2014
        %v2016 = vand.u32 %v2015, 4294901760
        %2017 = vmatpush.msra.mxu0 %v2016
        %v2018 = vand.u32 %v570, 4294901760
        %v2019 = vsub.f32 %v570, %v2018
        %v2020 = vand.u32 %v2019, 4294901760
        %2021 = vmatpush.msra.mxu0 %v2020
        %v2022 = vand.u32 %v569, 4294901760
        %v2023 = vsub.f32 %v569, %v2022
        %v2024 = vand.u32 %v2023, 4294901760
        %2025 = vmatpush.msra.mxu0 %v2024
        %v2026 = vand.u32 %v568, 4294901760
        %v2027 = vsub.f32 %v568, %v2026
        %v2028 = vand.u32 %v2027, 4294901760
        %2029 = vmatpush.msra.mxu0 %v2028
        %v2030 = vand.u32 %v567, 4294901760
        %v2031 = vsub.f32 %v567, %v2030
        %v2032 = vand.u32 %v2031, 4294901760
        %2033 = vmatpush.msra.mxu0 %v2032
        %v2034 = vand.u32 %v566, 4294901760
        %v2035 = vsub.f32 %v566, %v2034
        %v2036 = vand.u32 %v2035, 4294901760
        %2037 = vmatpush.msra.mxu0 %v2036
        %v2038 = vand.u32 %v565, 4294901760
        %v2039 = vsub.f32 %v565, %v2038
        %v2040 = vand.u32 %v2039, 4294901760
        %2041 = vmatpush.msra.mxu0 %v2040
        %v2042 = vand.u32 %v564, 4294901760
        %v2043 = vsub.f32 %v564, %v2042
        %v2044 = vand.u32 %v2043, 4294901760
        %2045 = vmatpush.msra.mxu0 %v2044
        %v2046 = vand.u32 %v1386, 4294901760
        %2047 = vmatmul.f32.gmra.mxu0 %v2046
        %v2048 = vpop.f32.mrf.mxu0
        %v2049 = vadd.f32 %v1890, %v2048
        %v2050 = vand.u32 %v1387, 4294901760
        %2051 = vmatmul.f32.gmra.mxu0 %v2050
        %v2052 = vpop.f32.mrf.mxu0
        %v2053 = vadd.f32 %v1896, %v2052
        %v2054 = vand.u32 %v1388, 4294901760
        %2055 = vmatmul.f32.gmra.mxu0 %v2054
        %v2056 = vpop.f32.mrf.mxu0
        %v2057 = vadd.f32 %v1902, %v2056
        %v2058 = vand.u32 %v1389, 4294901760
        %2059 = vmatmul.f32.gmra.mxu0 %v2058
        %v2060 = vpop.f32.mrf.mxu0
        %v2061 = vadd.f32 %v1908, %v2060
        %v2062 = vand.u32 %v1390, 4294901760
        %2063 = vmatmul.f32.gmra.mxu0 %v2062
        %v2064 = vpop.f32.mrf.mxu0
        %v2065 = vadd.f32 %v1914, %v2064
        %v2066 = vand.u32 %v1391, 4294901760
        %2067 = vmatmul.f32.gmra.mxu0 %v2066
        %v2068 = vpop.f32.mrf.mxu0
        %v2069 = vadd.f32 %v1920, %v2068
        %v2070 = vand.u32 %v1392, 4294901760
        %2071 = vmatmul.f32.gmra.mxu0 %v2070
        %v2072 = vpop.f32.mrf.mxu0
        %v2073 = vadd.f32 %v1926, %v2072
        %v2074 = vand.u32 %v1393, 4294901760
        %2075 = vmatmul.f32.gmra.mxu0 %v2074
        %v2076 = vpop.f32.mrf.mxu0
        %v2077 = vadd.f32 %v1932, %v2076
        %v2078 = vand.u32 %v1394, 4294901760
        %2079 = vmatmul.f32.gmra.mxu0 %v2078
        %v2080 = vpop.f32.mrf.mxu0
        %v2081 = vadd.f32 %v1938, %v2080
        %v2082 = vand.u32 %v1395, 4294901760
        %2083 = vmatmul.f32.gmra.mxu0 %v2082
        %v2084 = vpop.f32.mrf.mxu0
        %v2085 = vadd.f32 %v1944, %v2084
        %v2086 = vand.u32 %v1396, 4294901760
        %2087 = vmatmul.f32.gmra.mxu0 %v2086
        %v2088 = vpop.f32.mrf.mxu0
        %v2089 = vadd.f32 %v1950, %v2088
        %v2090 = vand.u32 %v1397, 4294901760
        %2091 = vmatmul.f32.gmra.mxu0 %v2090
        %v2092 = vpop.f32.mrf.mxu0
        %v2093 = vadd.f32 %v1956, %v2092
        %v2094 = vand.u32 %v1398, 4294901760
        %2095 = vmatmul.f32.gmra.mxu0 %v2094
        %v2096 = vpop.f32.mrf.mxu0
        %v2097 = vadd.f32 %v1962, %v2096
        %v2098 = vand.u32 %v1399, 4294901760
        %2099 = vmatmul.f32.gmra.mxu0 %v2098
        %v2100 = vpop.f32.mrf.mxu0
        %v2101 = vadd.f32 %v1968, %v2100
        %v2102 = vand.u32 %v1400, 4294901760
        %2103 = vmatmul.f32.gmra.mxu0 %v2102
        %v2104 = vpop.f32.mrf.mxu0
        %v2105 = vadd.f32 %v1974, %v2104
        %v2106 = vand.u32 %v1401, 4294901760
        %2107 = vmatmul.f32.gmra.mxu0 %v2106
        %v2108 = vpop.f32.mrf.mxu0
        %v2109 = vadd.f32 %v1980, %v2108
        %2110 = vdwg.mxu0
        %v2111 = vand.u32 %v579, 4294901760
        %2112 = vmatpush.msra.mxu0 %v2111
        %v2113 = vand.u32 %v578, 4294901760
        %2114 = vmatpush.msra.mxu0 %v2113
        %v2115 = vand.u32 %v577, 4294901760
        %2116 = vmatpush.msra.mxu0 %v2115
        %v2117 = vand.u32 %v576, 4294901760
        %2118 = vmatpush.msra.mxu0 %v2117
        %v2119 = vand.u32 %v575, 4294901760
        %2120 = vmatpush.msra.mxu0 %v2119
        %v2121 = vand.u32 %v574, 4294901760
        %2122 = vmatpush.msra.mxu0 %v2121
        %v2123 = vand.u32 %v573, 4294901760
        %2124 = vmatpush.msra.mxu0 %v2123
        %v2125 = vand.u32 %v572, 4294901760
        %2126 = vmatpush.msra.mxu0 %v2125
        %v2127 = vand.u32 %v571, 4294901760
        %2128 = vmatpush.msra.mxu0 %v2127
        %v2129 = vand.u32 %v570, 4294901760
        %2130 = vmatpush.msra.mxu0 %v2129
        %v2131 = vand.u32 %v569, 4294901760
        %2132 = vmatpush.msra.mxu0 %v2131
        %v2133 = vand.u32 %v568, 4294901760
        %2134 = vmatpush.msra.mxu0 %v2133
        %v2135 = vand.u32 %v567, 4294901760
        %2136 = vmatpush.msra.mxu0 %v2135
        %v2137 = vand.u32 %v566, 4294901760
        %2138 = vmatpush.msra.mxu0 %v2137
        %v2139 = vand.u32 %v565, 4294901760
        %2140 = vmatpush.msra.mxu0 %v2139
        %v2141 = vand.u32 %v564, 4294901760
        %2142 = vmatpush.msra.mxu0 %v2141
        %v2143 = vand.u32 %v1386, 4294901760
        %2144 = vmatmul.f32.gmra.mxu0 %v2143
        %v2145 = vpop.f32.mrf.mxu0
        %v2146 = vadd.f32 %v2049, %v2145
        %v2147 = vand.u32 %v1387, 4294901760
        %2148 = vmatmul.f32.gmra.mxu0 %v2147
        %v2149 = vpop.f32.mrf.mxu0
        %v2150 = vadd.f32 %v2053, %v2149
        %v2151 = vand.u32 %v1388, 4294901760
        %2152 = vmatmul.f32.gmra.mxu0 %v2151
        %v2153 = vpop.f32.mrf.mxu0
        %v2154 = vadd.f32 %v2057, %v2153
        %v2155 = vand.u32 %v1389, 4294901760
        %2156 = vmatmul.f32.gmra.mxu0 %v2155
        %v2157 = vpop.f32.mrf.mxu0
        %v2158 = vadd.f32 %v2061, %v2157
        %v2159 = vand.u32 %v1390, 4294901760
        %2160 = vmatmul.f32.gmra.mxu0 %v2159
        %v2161 = vpop.f32.mrf.mxu0
        %v2162 = vadd.f32 %v2065, %v2161
        %v2163 = vand.u32 %v1391, 4294901760
        %2164 = vmatmul.f32.gmra.mxu0 %v2163
        %v2165 = vpop.f32.mrf.mxu0
        %v2166 = vadd.f32 %v2069, %v2165
        %v2167 = vand.u32 %v1392, 4294901760
        %2168 = vmatmul.f32.gmra.mxu0 %v2167
        %v2169 = vpop.f32.mrf.mxu0
        %v2170 = vadd.f32 %v2073, %v2169
        %v2171 = vand.u32 %v1393, 4294901760
        %2172 = vmatmul.f32.gmra.mxu0 %v2171
        %v2173 = vpop.f32.mrf.mxu0
        %v2174 = vadd.f32 %v2077, %v2173
        %v2175 = vand.u32 %v1394, 4294901760
        %2176 = vmatmul.f32.gmra.mxu0 %v2175
        %v2177 = vpop.f32.mrf.mxu0
        %v2178 = vadd.f32 %v2081, %v2177
        %v2179 = vand.u32 %v1395, 4294901760
        %2180 = vmatmul.f32.gmra.mxu0 %v2179
        %v2181 = vpop.f32.mrf.mxu0
        %v2182 = vadd.f32 %v2085, %v2181
        %v2183 = vand.u32 %v1396, 4294901760
        %2184 = vmatmul.f32.gmra.mxu0 %v2183
        %v2185 = vpop.f32.mrf.mxu0
        %v2186 = vadd.f32 %v2089, %v2185
        %v2187 = vand.u32 %v1397, 4294901760
        %2188 = vmatmul.f32.gmra.mxu0 %v2187
        %v2189 = vpop.f32.mrf.mxu0
        %v2190 = vadd.f32 %v2093, %v2189
        %v2191 = vand.u32 %v1398, 4294901760
        %2192 = vmatmul.f32.gmra.mxu0 %v2191
        %v2193 = vpop.f32.mrf.mxu0
        %v2194 = vadd.f32 %v2097, %v2193
        %v2195 = vand.u32 %v1399, 4294901760
        %2196 = vmatmul.f32.gmra.mxu0 %v2195
        %v2197 = vpop.f32.mrf.mxu0
        %v2198 = vadd.f32 %v2101, %v2197
        %v2199 = vand.u32 %v1400, 4294901760
        %2200 = vmatmul.f32.gmra.mxu0 %v2199
        %v2201 = vpop.f32.mrf.mxu0
        %v2202 = vadd.f32 %v2105, %v2201
        %v2203 = vand.u32 %v1401, 4294901760
        %2204 = vmatmul.f32.gmra.mxu0 %v2203
        %v2205 = vpop.f32.mrf.mxu0
        %v2206 = vadd.f32 %v2109, %v2205
        %2207 = vdwg.mxu0
        %v2208 = vlaneseq
        %v2209 = vand.u32 %v2208, 127
        %v2210 = vld [vmem:[%s457] sm:$0xff]
        %v2211 = vld [vmem:[%s457 + $0x8] sm:$0xff]
        %v2212 = vld [vmem:[%s457 + $0x10] sm:$0xff]
        %v2213 = vld [vmem:[%s457 + $0x18] sm:$0xff]
        %v2214 = vld [vmem:[%s457 + $0x20] sm:$0xff]
        %v2215 = vld [vmem:[%s457 + $0x28] sm:$0xff]
        %v2216 = vld [vmem:[%s457 + $0x30] sm:$0xff]
        %v2217 = vld [vmem:[%s457 + $0x38] sm:$0xff]
        %v2218 = vld [vmem:[%s457 + $0x40] sm:$0xff]
        %v2219 = vld [vmem:[%s457 + $0x48] sm:$0xff]
        %v2220 = vld [vmem:[%s457 + $0x50] sm:$0xff]
        %v2221 = vld [vmem:[%s457 + $0x58] sm:$0xff]
        %v2222 = vld [vmem:[%s457 + $0x60] sm:$0xff]
        %v2223 = vld [vmem:[%s457 + $0x68] sm:$0xff]
        %v2224 = vld [vmem:[%s457 + $0x70] sm:$0xff]
        %v2225 = vld [vmem:[%s457 + $0x78] sm:$0xff]
        %2226 = vset.pattern.permute.xlu0 0
        %2227 = vperm.xlu0 %2226, %v2210
        %v2228 = vpop.permute.xlu0 %2227
        %2229 = vset.pattern.permute.xlu0 0
        %2230 = vperm.xlu0 %2229, %v2211
        %v2231 = vpop.permute.xlu0 %2230
        %2232 = vset.pattern.permute.xlu0 0
        %2233 = vperm.xlu0 %2232, %v2212
        %v2234 = vpop.permute.xlu0 %2233
        %2235 = vset.pattern.permute.xlu0 0
        %2236 = vperm.xlu0 %2235, %v2213
        %v2237 = vpop.permute.xlu0 %2236
        %2238 = vset.pattern.permute.xlu0 0
        %2239 = vperm.xlu0 %2238, %v2214
        %v2240 = vpop.permute.xlu0 %2239
        %2241 = vset.pattern.permute.xlu0 0
        %2242 = vperm.xlu0 %2241, %v2215
        %v2243 = vpop.permute.xlu0 %2242
        %2244 = vset.pattern.permute.xlu0 0
        %2245 = vperm.xlu0 %2244, %v2216
        %v2246 = vpop.permute.xlu0 %2245
        %2247 = vset.pattern.permute.xlu0 0
        %2248 = vperm.xlu0 %2247, %v2217
        %v2249 = vpop.permute.xlu0 %2248
        %2250 = vset.pattern.permute.xlu0 0
        %2251 = vperm.xlu0 %2250, %v2218
        %v2252 = vpop.permute.xlu0 %2251
        %2253 = vset.pattern.permute.xlu0 0
        %2254 = vperm.xlu0 %2253, %v2219
        %v2255 = vpop.permute.xlu0 %2254
        %2256 = vset.pattern.permute.xlu0 0
        %2257 = vperm.xlu0 %2256, %v2220
        %v2258 = vpop.permute.xlu0 %2257
        %2259 = vset.pattern.permute.xlu0 0
        %2260 = vperm.xlu0 %2259, %v2221
        %v2261 = vpop.permute.xlu0 %2260
        %2262 = vset.pattern.permute.xlu0 0
        %2263 = vperm.xlu0 %2262, %v2222
        %v2264 = vpop.permute.xlu0 %2263
        %2265 = vset.pattern.permute.xlu0 0
        %2266 = vperm.xlu0 %2265, %v2223
        %v2267 = vpop.permute.xlu0 %2266
        %2268 = vset.pattern.permute.xlu0 0
        %2269 = vperm.xlu0 %2268, %v2224
        %v2270 = vpop.permute.xlu0 %2269
        %2271 = vset.pattern.permute.xlu0 0
        %2272 = vperm.xlu0 %2271, %v2225
        %v2273 = vpop.permute.xlu0 %2272
        %vm2274 = vcmp.eq.s32.totalorder %v2228, %v2209
        %vm2275 = vcmp.eq.s32.totalorder %v2231, %v2209
        %vm2276 = vcmp.eq.s32.totalorder %v2234, %v2209
        %vm2277 = vcmp.eq.s32.totalorder %v2237, %v2209
        %vm2278 = vcmp.eq.s32.totalorder %v2240, %v2209
        %vm2279 = vcmp.eq.s32.totalorder %v2243, %v2209
        %vm2280 = vcmp.eq.s32.totalorder %v2246, %v2209
        %vm2281 = vcmp.eq.s32.totalorder %v2249, %v2209
        %vm2282 = vcmp.eq.s32.totalorder %v2252, %v2209
        %vm2283 = vcmp.eq.s32.totalorder %v2255, %v2209
        %vm2284 = vcmp.eq.s32.totalorder %v2258, %v2209
        %vm2285 = vcmp.eq.s32.totalorder %v2261, %v2209
        %vm2286 = vcmp.eq.s32.totalorder %v2264, %v2209
        %vm2287 = vcmp.eq.s32.totalorder %v2267, %v2209
        %vm2288 = vcmp.eq.s32.totalorder %v2270, %v2209
        %vm2289 = vcmp.eq.s32.totalorder %v2273, %v2209
        %v2290 = vsel %vm2274, 1, 0
        %v2291 = vsel %vm2275, 1, 0
        %v2292 = vsel %vm2276, 1, 0
        %v2293 = vsel %vm2277, 1, 0
        %v2294 = vsel %vm2278, 1, 0
        %v2295 = vsel %vm2279, 1, 0
        %v2296 = vsel %vm2280, 1, 0
        %v2297 = vsel %vm2281, 1, 0
        %v2298 = vsel %vm2282, 1, 0
        %v2299 = vsel %vm2283, 1, 0
        %v2300 = vsel %vm2284, 1, 0
        %v2301 = vsel %vm2285, 1, 0
        %v2302 = vsel %vm2286, 1, 0
        %v2303 = vsel %vm2287, 1, 0
        %v2304 = vsel %vm2288, 1, 0
        %v2305 = vsel %vm2289, 1, 0
        %v2306 = vcvt.s32.f32 %v2290
        %v2307 = vcvt.s32.f32 %v2291
        %v2308 = vcvt.s32.f32 %v2292
        %v2309 = vcvt.s32.f32 %v2293
        %v2310 = vcvt.s32.f32 %v2294
        %v2311 = vcvt.s32.f32 %v2295
        %v2312 = vcvt.s32.f32 %v2296
        %v2313 = vcvt.s32.f32 %v2297
        %v2314 = vcvt.s32.f32 %v2298
        %v2315 = vcvt.s32.f32 %v2299
        %v2316 = vcvt.s32.f32 %v2300
        %v2317 = vcvt.s32.f32 %v2301
        %v2318 = vcvt.s32.f32 %v2302
        %v2319 = vcvt.s32.f32 %v2303
        %v2320 = vcvt.s32.f32 %v2304
        %v2321 = vcvt.s32.f32 %v2305
        %v2322 = vand.u32 %v1384, 4294901760
        %2323 = vmatpush.msra.mxu0 %v2322
        %v2324 = vand.u32 %v1380, 4294901760
        %2325 = vmatpush.msra.mxu0 %v2324
        %v2326 = vand.u32 %v1376, 4294901760
        %2327 = vmatpush.msra.mxu0 %v2326
        %v2328 = vand.u32 %v1372, 4294901760
        %2329 = vmatpush.msra.mxu0 %v2328
        %v2330 = vand.u32 %v1368, 4294901760
        %2331 = vmatpush.msra.mxu0 %v2330
        %v2332 = vand.u32 %v1364, 4294901760
        %2333 = vmatpush.msra.mxu0 %v2332
        %v2334 = vand.u32 %v1360, 4294901760
        %2335 = vmatpush.msra.mxu0 %v2334
        %v2336 = vand.u32 %v1356, 4294901760
        %2337 = vmatpush.msra.mxu0 %v2336
        %v2338 = vand.u32 %v1352, 4294901760
        %2339 = vmatpush.msra.mxu0 %v2338
        %v2340 = vand.u32 %v1348, 4294901760
        %2341 = vmatpush.msra.mxu0 %v2340
        %v2342 = vand.u32 %v1344, 4294901760
        %2343 = vmatpush.msra.mxu0 %v2342
        %v2344 = vand.u32 %v1340, 4294901760
        %2345 = vmatpush.msra.mxu0 %v2344
        %v2346 = vand.u32 %v1336, 4294901760
        %2347 = vmatpush.msra.mxu0 %v2346
        %v2348 = vand.u32 %v1332, 4294901760
        %2349 = vmatpush.msra.mxu0 %v2348
        %v2350 = vand.u32 %v1328, 4294901760
        %2351 = vmatpush.msra.mxu0 %v2350
        %v2352 = vand.u32 %v1324, 4294901760
        %2353 = vmatpush.msra.mxu0 %v2352
        %v2354 = vand.u32 %v2306, 4294901760
        %v2355 = vsub.f32 %v2306, %v2354
        %v2356 = vand.u32 %v2355, 4294901760
        %v2357 = vsub.f32 %v2355, %v2356
        %v2358 = vand.u32 %v2357, 4294901760
        %2359 = vmatmul.f32.gmra.mxu0 %v2358
        %v2360 = vpop.f32.mrf.mxu0
        %v2361 = vadd.f32 0.0, %v2360
        %v2362 = vand.u32 %v2307, 4294901760
        %v2363 = vsub.f32 %v2307, %v2362
        %v2364 = vand.u32 %v2363, 4294901760
        %v2365 = vsub.f32 %v2363, %v2364
        %v2366 = vand.u32 %v2365, 4294901760
        %2367 = vmatmul.f32.gmra.mxu0 %v2366
        %v2368 = vpop.f32.mrf.mxu0
        %v2369 = vadd.f32 0.0, %v2368
        %v2370 = vand.u32 %v2308, 4294901760
        %v2371 = vsub.f32 %v2308, %v2370
        %v2372 = vand.u32 %v2371, 4294901760
        %v2373 = vsub.f32 %v2371, %v2372
        %v2374 = vand.u32 %v2373, 4294901760
        %2375 = vmatmul.f32.gmra.mxu0 %v2374
        %v2376 = vpop.f32.mrf.mxu0
        %v2377 = vadd.f32 0.0, %v2376
        %v2378 = vand.u32 %v2309, 4294901760
        %v2379 = vsub.f32 %v2309, %v2378
        %v2380 = vand.u32 %v2379, 4294901760
        %v2381 = vsub.f32 %v2379, %v2380
        %v2382 = vand.u32 %v2381, 4294901760
        %2383 = vmatmul.f32.gmra.mxu0 %v2382
        %v2384 = vpop.f32.mrf.mxu0
        %v2385 = vadd.f32 0.0, %v2384
        %v2386 = vand.u32 %v2310, 4294901760
        %v2387 = vsub.f32 %v2310, %v2386
        %v2388 = vand.u32 %v2387, 4294901760
        %v2389 = vsub.f32 %v2387, %v2388
        %v2390 = vand.u32 %v2389, 4294901760
        %2391 = vmatmul.f32.gmra.mxu0 %v2390
        %v2392 = vpop.f32.mrf.mxu0
        %v2393 = vadd.f32 0.0, %v2392
        %v2394 = vand.u32 %v2311, 4294901760
        %v2395 = vsub.f32 %v2311, %v2394
        %v2396 = vand.u32 %v2395, 4294901760
        %v2397 = vsub.f32 %v2395, %v2396
        %v2398 = vand.u32 %v2397, 4294901760
        %2399 = vmatmul.f32.gmra.mxu0 %v2398
        %v2400 = vpop.f32.mrf.mxu0
        %v2401 = vadd.f32 0.0, %v2400
        %v2402 = vand.u32 %v2312, 4294901760
        %v2403 = vsub.f32 %v2312, %v2402
        %v2404 = vand.u32 %v2403, 4294901760
        %v2405 = vsub.f32 %v2403, %v2404
        %v2406 = vand.u32 %v2405, 4294901760
        %2407 = vmatmul.f32.gmra.mxu0 %v2406
        %v2408 = vpop.f32.mrf.mxu0
        %v2409 = vadd.f32 0.0, %v2408
        %v2410 = vand.u32 %v2313, 4294901760
        %v2411 = vsub.f32 %v2313, %v2410
        %v2412 = vand.u32 %v2411, 4294901760
        %v2413 = vsub.f32 %v2411, %v2412
        %v2414 = vand.u32 %v2413, 4294901760
        %2415 = vmatmul.f32.gmra.mxu0 %v2414
        %v2416 = vpop.f32.mrf.mxu0
        %v2417 = vadd.f32 0.0, %v2416
        %v2418 = vand.u32 %v2314, 4294901760
        %v2419 = vsub.f32 %v2314, %v2418
        %v2420 = vand.u32 %v2419, 4294901760
        %v2421 = vsub.f32 %v2419, %v2420
        %v2422 = vand.u32 %v2421, 4294901760
        %2423 = vmatmul.f32.gmra.mxu0 %v2422
        %v2424 = vpop.f32.mrf.mxu0
        %v2425 = vadd.f32 0.0, %v2424
        %v2426 = vand.u32 %v2315, 4294901760
        %v2427 = vsub.f32 %v2315, %v2426
        %v2428 = vand.u32 %v2427, 4294901760
        %v2429 = vsub.f32 %v2427, %v2428
        %v2430 = vand.u32 %v2429, 4294901760
        %2431 = vmatmul.f32.gmra.mxu0 %v2430
        %v2432 = vpop.f32.mrf.mxu0
        %v2433 = vadd.f32 0.0, %v2432
        %v2434 = vand.u32 %v2316, 4294901760
        %v2435 = vsub.f32 %v2316, %v2434
        %v2436 = vand.u32 %v2435, 4294901760
        %v2437 = vsub.f32 %v2435, %v2436
        %v2438 = vand.u32 %v2437, 4294901760
        %2439 = vmatmul.f32.gmra.mxu0 %v2438
        %v2440 = vpop.f32.mrf.mxu0
        %v2441 = vadd.f32 0.0, %v2440
        %v2442 = vand.u32 %v2317, 4294901760
        %v2443 = vsub.f32 %v2317, %v2442
        %v2444 = vand.u32 %v2443, 4294901760
        %v2445 = vsub.f32 %v2443, %v2444
        %v2446 = vand.u32 %v2445, 4294901760
        %2447 = vmatmul.f32.gmra.mxu0 %v2446
        %v2448 = vpop.f32.mrf.mxu0
        %v2449 = vadd.f32 0.0, %v2448
        %v2450 = vand.u32 %v2318, 4294901760
        %v2451 = vsub.f32 %v2318, %v2450
        %v2452 = vand.u32 %v2451, 4294901760
        %v2453 = vsub.f32 %v2451, %v2452
        %v2454 = vand.u32 %v2453, 4294901760
        %2455 = vmatmul.f32.gmra.mxu0 %v2454
        %v2456 = vpop.f32.mrf.mxu0
        %v2457 = vadd.f32 0.0, %v2456
        %v2458 = vand.u32 %v2319, 4294901760
        %v2459 = vsub.f32 %v2319, %v2458
        %v2460 = vand.u32 %v2459, 4294901760
        %v2461 = vsub.f32 %v2459, %v2460
        %v2462 = vand.u32 %v2461, 4294901760
        %2463 = vmatmul.f32.gmra.mxu0 %v2462
        %v2464 = vpop.f32.mrf.mxu0
        %v2465 = vadd.f32 0.0, %v2464
        %v2466 = vand.u32 %v2320, 4294901760
        %v2467 = vsub.f32 %v2320, %v2466
        %v2468 = vand.u32 %v2467, 4294901760
        %v2469 = vsub.f32 %v2467, %v2468
        %v2470 = vand.u32 %v2469, 4294901760
        %2471 = vmatmul.f32.gmra.mxu0 %v2470
        %v2472 = vpop.f32.mrf.mxu0
        %v2473 = vadd.f32 0.0, %v2472
        %v2474 = vand.u32 %v2321, 4294901760
        %v2475 = vsub.f32 %v2321, %v2474
        %v2476 = vand.u32 %v2475, 4294901760
        %v2477 = vsub.f32 %v2475, %v2476
        %v2478 = vand.u32 %v2477, 4294901760
        %2479 = vmatmul.f32.gmra.mxu0 %v2478
        %v2480 = vpop.f32.mrf.mxu0
        %v2481 = vadd.f32 0.0, %v2480
        %2482 = vdwg.mxu0
        %v2483 = vand.u32 %v1384, 4294901760
        %v2484 = vsub.f32 %v1384, %v2483
        %v2485 = vand.u32 %v2484, 4294901760
        %v2486 = vsub.f32 %v2484, %v2485
        %v2487 = vand.u32 %v2486, 4294901760
        %2488 = vmatpush.msra.mxu0 %v2487
        %v2489 = vand.u32 %v1380, 4294901760
        %v2490 = vsub.f32 %v1380, %v2489
        %v2491 = vand.u32 %v2490, 4294901760
        %v2492 = vsub.f32 %v2490, %v2491
        %v2493 = vand.u32 %v2492, 4294901760
        %2494 = vmatpush.msra.mxu0 %v2493
        %v2495 = vand.u32 %v1376, 4294901760
        %v2496 = vsub.f32 %v1376, %v2495
        %v2497 = vand.u32 %v2496, 4294901760
        %v2498 = vsub.f32 %v2496, %v2497
        %v2499 = vand.u32 %v2498, 4294901760
        %2500 = vmatpush.msra.mxu0 %v2499
        %v2501 = vand.u32 %v1372, 4294901760
        %v2502 = vsub.f32 %v1372, %v2501
        %v2503 = vand.u32 %v2502, 4294901760
        %v2504 = vsub.f32 %v2502, %v2503
        %v2505 = vand.u32 %v2504, 4294901760
        %2506 = vmatpush.msra.mxu0 %v2505
        %v2507 = vand.u32 %v1368, 4294901760
        %v2508 = vsub.f32 %v1368, %v2507
        %v2509 = vand.u32 %v2508, 4294901760
        %v2510 = vsub.f32 %v2508, %v2509
        %v2511 = vand.u32 %v2510, 4294901760
        %2512 = vmatpush.msra.mxu0 %v2511
        %v2513 = vand.u32 %v1364, 4294901760
        %v2514 = vsub.f32 %v1364, %v2513
        %v2515 = vand.u32 %v2514, 4294901760
        %v2516 = vsub.f32 %v2514, %v2515
        %v2517 = vand.u32 %v2516, 4294901760
        %2518 = vmatpush.msra.mxu0 %v2517
        %v2519 = vand.u32 %v1360, 4294901760
        %v2520 = vsub.f32 %v1360, %v2519
        %v2521 = vand.u32 %v2520, 4294901760
        %v2522 = vsub.f32 %v2520, %v2521
        %v2523 = vand.u32 %v2522, 4294901760
        %2524 = vmatpush.msra.mxu0 %v2523
        %v2525 = vand.u32 %v1356, 4294901760
        %v2526 = vsub.f32 %v1356, %v2525
        %v2527 = vand.u32 %v2526, 4294901760
        %v2528 = vsub.f32 %v2526, %v2527
        %v2529 = vand.u32 %v2528, 4294901760
        %2530 = vmatpush.msra.mxu0 %v2529
        %v2531 = vand.u32 %v1352, 4294901760
        %v2532 = vsub.f32 %v1352, %v2531
        %v2533 = vand.u32 %v2532, 4294901760
        %v2534 = vsub.f32 %v2532, %v2533
        %v2535 = vand.u32 %v2534, 4294901760
        %2536 = vmatpush.msra.mxu0 %v2535
        %v2537 = vand.u32 %v1348, 4294901760
        %v2538 = vsub.f32 %v1348, %v2537
        %v2539 = vand.u32 %v2538, 4294901760
        %v2540 = vsub.f32 %v2538, %v2539
        %v2541 = vand.u32 %v2540, 4294901760
        %2542 = vmatpush.msra.mxu0 %v2541
        %v2543 = vand.u32 %v1344, 4294901760
        %v2544 = vsub.f32 %v1344, %v2543
        %v2545 = vand.u32 %v2544, 4294901760
        %v2546 = vsub.f32 %v2544, %v2545
        %v2547 = vand.u32 %v2546, 4294901760
        %2548 = vmatpush.msra.mxu0 %v2547
        %v2549 = vand.u32 %v1340, 4294901760
        %v2550 = vsub.f32 %v1340, %v2549
        %v2551 = vand.u32 %v2550, 4294901760
        %v2552 = vsub.f32 %v2550, %v2551
        %v2553 = vand.u32 %v2552, 4294901760
        %2554 = vmatpush.msra.mxu0 %v2553
        %v2555 = vand.u32 %v1336, 4294901760
        %v2556 = vsub.f32 %v1336, %v2555
        %v2557 = vand.u32 %v2556, 4294901760
        %v2558 = vsub.f32 %v2556, %v2557
        %v2559 = vand.u32 %v2558, 4294901760
        %2560 = vmatpush.msra.mxu0 %v2559
        %v2561 = vand.u32 %v1332, 4294901760
        %v2562 = vsub.f32 %v1332, %v2561
        %v2563 = vand.u32 %v2562, 4294901760
        %v2564 = vsub.f32 %v2562, %v2563
        %v2565 = vand.u32 %v2564, 4294901760
        %2566 = vmatpush.msra.mxu0 %v2565
        %v2567 = vand.u32 %v1328, 4294901760
        %v2568 = vsub.f32 %v1328, %v2567
        %v2569 = vand.u32 %v2568, 4294901760
        %v2570 = vsub.f32 %v2568, %v2569
        %v2571 = vand.u32 %v2570, 4294901760
        %2572 = vmatpush.msra.mxu0 %v2571
        %v2573 = vand.u32 %v1324, 4294901760
        %v2574 = vsub.f32 %v1324, %v2573
        %v2575 = vand.u32 %v2574, 4294901760
        %v2576 = vsub.f32 %v2574, %v2575
        %v2577 = vand.u32 %v2576, 4294901760
        %2578 = vmatpush.msra.mxu0 %v2577
        %v2579 = vand.u32 %v2306, 4294901760
        %2580 = vmatmul.f32.gmra.mxu0 %v2579
        %v2581 = vpop.f32.mrf.mxu0
        %v2582 = vadd.f32 %v2361, %v2581
        %v2583 = vand.u32 %v2307, 4294901760
        %2584 = vmatmul.f32.gmra.mxu0 %v2583
        %v2585 = vpop.f32.mrf.mxu0
        %v2586 = vadd.f32 %v2369, %v2585
        %v2587 = vand.u32 %v2308, 4294901760
        %2588 = vmatmul.f32.gmra.mxu0 %v2587
        %v2589 = vpop.f32.mrf.mxu0
        %v2590 = vadd.f32 %v2377, %v2589
        %v2591 = vand.u32 %v2309, 4294901760
        %2592 = vmatmul.f32.gmra.mxu0 %v2591
        %v2593 = vpop.f32.mrf.mxu0
        %v2594 = vadd.f32 %v2385, %v2593
        %v2595 = vand.u32 %v2310, 4294901760
        %2596 = vmatmul.f32.gmra.mxu0 %v2595
        %v2597 = vpop.f32.mrf.mxu0
        %v2598 = vadd.f32 %v2393, %v2597
        %v2599 = vand.u32 %v2311, 4294901760
        %2600 = vmatmul.f32.gmra.mxu0 %v2599
        %v2601 = vpop.f32.mrf.mxu0
        %v2602 = vadd.f32 %v2401, %v2601
        %v2603 = vand.u32 %v2312, 4294901760
        %2604 = vmatmul.f32.gmra.mxu0 %v2603
        %v2605 = vpop.f32.mrf.mxu0
        %v2606 = vadd.f32 %v2409, %v2605
        %v2607 = vand.u32 %v2313, 4294901760
        %2608 = vmatmul.f32.gmra.mxu0 %v2607
        %v2609 = vpop.f32.mrf.mxu0
        %v2610 = vadd.f32 %v2417, %v2609
        %v2611 = vand.u32 %v2314, 4294901760
        %2612 = vmatmul.f32.gmra.mxu0 %v2611
        %v2613 = vpop.f32.mrf.mxu0
        %v2614 = vadd.f32 %v2425, %v2613
        %v2615 = vand.u32 %v2315, 4294901760
        %2616 = vmatmul.f32.gmra.mxu0 %v2615
        %v2617 = vpop.f32.mrf.mxu0
        %v2618 = vadd.f32 %v2433, %v2617
        %v2619 = vand.u32 %v2316, 4294901760
        %2620 = vmatmul.f32.gmra.mxu0 %v2619
        %v2621 = vpop.f32.mrf.mxu0
        %v2622 = vadd.f32 %v2441, %v2621
        %v2623 = vand.u32 %v2317, 4294901760
        %2624 = vmatmul.f32.gmra.mxu0 %v2623
        %v2625 = vpop.f32.mrf.mxu0
        %v2626 = vadd.f32 %v2449, %v2625
        %v2627 = vand.u32 %v2318, 4294901760
        %2628 = vmatmul.f32.gmra.mxu0 %v2627
        %v2629 = vpop.f32.mrf.mxu0
        %v2630 = vadd.f32 %v2457, %v2629
        %v2631 = vand.u32 %v2319, 4294901760
        %2632 = vmatmul.f32.gmra.mxu0 %v2631
        %v2633 = vpop.f32.mrf.mxu0
        %v2634 = vadd.f32 %v2465, %v2633
        %v2635 = vand.u32 %v2320, 4294901760
        %2636 = vmatmul.f32.gmra.mxu0 %v2635
        %v2637 = vpop.f32.mrf.mxu0
        %v2638 = vadd.f32 %v2473, %v2637
        %v2639 = vand.u32 %v2321, 4294901760
        %2640 = vmatmul.f32.gmra.mxu0 %v2639
        %v2641 = vpop.f32.mrf.mxu0
        %v2642 = vadd.f32 %v2481, %v2641
        %2643 = vdwg.mxu0
        %v2644 = vand.u32 %v1384, 4294901760
        %v2645 = vsub.f32 %v1384, %v2644
        %2646 = vmatpush.msra.mxu0 %v2645
        %v2647 = vand.u32 %v1380, 4294901760
        %v2648 = vsub.f32 %v1380, %v2647
        %2649 = vmatpush.msra.mxu0 %v2648
        %v2650 = vand.u32 %v1376, 4294901760
        %v2651 = vsub.f32 %v1376, %v2650
        %2652 = vmatpush.msra.mxu0 %v2651
        %v2653 = vand.u32 %v1372, 4294901760
        %v2654 = vsub.f32 %v1372, %v2653
        %2655 = vmatpush.msra.mxu0 %v2654
        %v2656 = vand.u32 %v1368, 4294901760
        %v2657 = vsub.f32 %v1368, %v2656
        %2658 = vmatpush.msra.mxu0 %v2657
        %v2659 = vand.u32 %v1364, 4294901760
        %v2660 = vsub.f32 %v1364, %v2659
        %2661 = vmatpush.msra.mxu0 %v2660
        %v2662 = vand.u32 %v1360, 4294901760
        %v2663 = vsub.f32 %v1360, %v2662
        %2664 = vmatpush.msra.mxu0 %v2663
        %v2665 = vand.u32 %v1356, 4294901760
        %v2666 = vsub.f32 %v1356, %v2665
        %2667 = vmatpush.msra.mxu0 %v2666
        %v2668 = vand.u32 %v1352, 4294901760
        %v2669 = vsub.f32 %v1352, %v2668
        %2670 = vmatpush.msra.mxu0 %v2669
        %v2671 = vand.u32 %v1348, 4294901760
        %v2672 = vsub.f32 %v1348, %v2671
        %2673 = vmatpush.msra.mxu0 %v2672
        %v2674 = vand.u32 %v1344, 4294901760
        %v2675 = vsub.f32 %v1344, %v2674
        %2676 = vmatpush.msra.mxu0 %v2675
        %v2677 = vand.u32 %v1340, 4294901760
        %v2678 = vsub.f32 %v1340, %v2677
        %2679 = vmatpush.msra.mxu0 %v2678
        %v2680 = vand.u32 %v1336, 4294901760
        %v2681 = vsub.f32 %v1336, %v2680
        %2682 = vmatpush.msra.mxu0 %v2681
        %v2683 = vand.u32 %v1332, 4294901760
        %v2684 = vsub.f32 %v1332, %v2683
        %2685 = vmatpush.msra.mxu0 %v2684
        %v2686 = vand.u32 %v1328, 4294901760
        %v2687 = vsub.f32 %v1328, %v2686
        %2688 = vmatpush.msra.mxu0 %v2687
        %v2689 = vand.u32 %v1324, 4294901760
        %v2690 = vsub.f32 %v1324, %v2689
        %2691 = vmatpush.msra.mxu0 %v2690
        %v2692 = vand.u32 %v2306, 4294901760
        %v2693 = vsub.f32 %v2306, %v2692
        %2694 = vmatmul.f32.gmra.mxu0 %v2693
        %v2695 = vpop.f32.mrf.mxu0
        %v2696 = vadd.f32 %v2582, %v2695
        %v2697 = vand.u32 %v2307, 4294901760
        %v2698 = vsub.f32 %v2307, %v2697
        %2699 = vmatmul.f32.gmra.mxu0 %v2698
        %v2700 = vpop.f32.mrf.mxu0
        %v2701 = vadd.f32 %v2586, %v2700
        %v2702 = vand.u32 %v2308, 4294901760
        %v2703 = vsub.f32 %v2308, %v2702
        %2704 = vmatmul.f32.gmra.mxu0 %v2703
        %v2705 = vpop.f32.mrf.mxu0
        %v2706 = vadd.f32 %v2590, %v2705
        %v2707 = vand.u32 %v2309, 4294901760
        %v2708 = vsub.f32 %v2309, %v2707
        %2709 = vmatmul.f32.gmra.mxu0 %v2708
        %v2710 = vpop.f32.mrf.mxu0
        %v2711 = vadd.f32 %v2594, %v2710
        %v2712 = vand.u32 %v2310, 4294901760
        %v2713 = vsub.f32 %v2310, %v2712
        %2714 = vmatmul.f32.gmra.mxu0 %v2713
        %v2715 = vpop.f32.mrf.mxu0
        %v2716 = vadd.f32 %v2598, %v2715
        %v2717 = vand.u32 %v2311, 4294901760
        %v2718 = vsub.f32 %v2311, %v2717
        %2719 = vmatmul.f32.gmra.mxu0 %v2718
        %v2720 = vpop.f32.mrf.mxu0
        %v2721 = vadd.f32 %v2602, %v2720
        %v2722 = vand.u32 %v2312, 4294901760
        %v2723 = vsub.f32 %v2312, %v2722
        %2724 = vmatmul.f32.gmra.mxu0 %v2723
        %v2725 = vpop.f32.mrf.mxu0
        %v2726 = vadd.f32 %v2606, %v2725
        %v2727 = vand.u32 %v2313, 4294901760
        %v2728 = vsub.f32 %v2313, %v2727
        %2729 = vmatmul.f32.gmra.mxu0 %v2728
        %v2730 = vpop.f32.mrf.mxu0
        %v2731 = vadd.f32 %v2610, %v2730
        %v2732 = vand.u32 %v2314, 4294901760
        %v2733 = vsub.f32 %v2314, %v2732
        %2734 = vmatmul.f32.gmra.mxu0 %v2733
        %v2735 = vpop.f32.mrf.mxu0
        %v2736 = vadd.f32 %v2614, %v2735
        %v2737 = vand.u32 %v2315, 4294901760
        %v2738 = vsub.f32 %v2315, %v2737
        %2739 = vmatmul.f32.gmra.mxu0 %v2738
        %v2740 = vpop.f32.mrf.mxu0
        %v2741 = vadd.f32 %v2618, %v2740
        %v2742 = vand.u32 %v2316, 4294901760
        %v2743 = vsub.f32 %v2316, %v2742
        %2744 = vmatmul.f32.gmra.mxu0 %v2743
        %v2745 = vpop.f32.mrf.mxu0
        %v2746 = vadd.f32 %v2622, %v2745
        %v2747 = vand.u32 %v2317, 4294901760
        %v2748 = vsub.f32 %v2317, %v2747
        %2749 = vmatmul.f32.gmra.mxu0 %v2748
        %v2750 = vpop.f32.mrf.mxu0
        %v2751 = vadd.f32 %v2626, %v2750
        %v2752 = vand.u32 %v2318, 4294901760
        %v2753 = vsub.f32 %v2318, %v2752
        %2754 = vmatmul.f32.gmra.mxu0 %v2753
        %v2755 = vpop.f32.mrf.mxu0
        %v2756 = vadd.f32 %v2630, %v2755
        %v2757 = vand.u32 %v2319, 4294901760
        %v2758 = vsub.f32 %v2319, %v2757
        %2759 = vmatmul.f32.gmra.mxu0 %v2758
        %v2760 = vpop.f32.mrf.mxu0
        %v2761 = vadd.f32 %v2634, %v2760
        %v2762 = vand.u32 %v2320, 4294901760
        %v2763 = vsub.f32 %v2320, %v2762
        %2764 = vmatmul.f32.gmra.mxu0 %v2763
        %v2765 = vpop.f32.mrf.mxu0
        %v2766 = vadd.f32 %v2638, %v2765
        %v2767 = vand.u32 %v2321, 4294901760
        %v2768 = vsub.f32 %v2321, %v2767
        %2769 = vmatmul.f32.gmra.mxu0 %v2768
        %v2770 = vpop.f32.mrf.mxu0
        %v2771 = vadd.f32 %v2642, %v2770
        %2772 = vdwg.mxu0
        %v2773 = vand.u32 %v1384, 4294901760
        %2774 = vmatpush.msra.mxu0 %v2773
        %v2775 = vand.u32 %v1380, 4294901760
        %2776 = vmatpush.msra.mxu0 %v2775
        %v2777 = vand.u32 %v1376, 4294901760
        %2778 = vmatpush.msra.mxu0 %v2777
        %v2779 = vand.u32 %v1372, 4294901760
        %2780 = vmatpush.msra.mxu0 %v2779
        %v2781 = vand.u32 %v1368, 4294901760
        %2782 = vmatpush.msra.mxu0 %v2781
        %v2783 = vand.u32 %v1364, 4294901760
        %2784 = vmatpush.msra.mxu0 %v2783
        %v2785 = vand.u32 %v1360, 4294901760
        %2786 = vmatpush.msra.mxu0 %v2785
        %v2787 = vand.u32 %v1356, 4294901760
        %2788 = vmatpush.msra.mxu0 %v2787
        %v2789 = vand.u32 %v1352, 4294901760
        %2790 = vmatpush.msra.mxu0 %v2789
        %v2791 = vand.u32 %v1348, 4294901760
        %2792 = vmatpush.msra.mxu0 %v2791
        %v2793 = vand.u32 %v1344, 4294901760
        %2794 = vmatpush.msra.mxu0 %v2793
        %v2795 = vand.u32 %v1340, 4294901760
        %2796 = vmatpush.msra.mxu0 %v2795
        %v2797 = vand.u32 %v1336, 4294901760
        %2798 = vmatpush.msra.mxu0 %v2797
        %v2799 = vand.u32 %v1332, 4294901760
        %2800 = vmatpush.msra.mxu0 %v2799
        %v2801 = vand.u32 %v1328, 4294901760
        %2802 = vmatpush.msra.mxu0 %v2801
        %v2803 = vand.u32 %v1324, 4294901760
        %2804 = vmatpush.msra.mxu0 %v2803
        %v2805 = vand.u32 %v2306, 4294901760
        %v2806 = vsub.f32 %v2306, %v2805
        %v2807 = vand.u32 %v2806, 4294901760
        %2808 = vmatmul.f32.gmra.mxu0 %v2807
        %v2809 = vpop.f32.mrf.mxu0
        %v2810 = vadd.f32 %v2696, %v2809
        %v2811 = vand.u32 %v2307, 4294901760
        %v2812 = vsub.f32 %v2307, %v2811
        %v2813 = vand.u32 %v2812, 4294901760
        %2814 = vmatmul.f32.gmra.mxu0 %v2813
        %v2815 = vpop.f32.mrf.mxu0
        %v2816 = vadd.f32 %v2701, %v2815
        %v2817 = vand.u32 %v2308, 4294901760
        %v2818 = vsub.f32 %v2308, %v2817
        %v2819 = vand.u32 %v2818, 4294901760
        %2820 = vmatmul.f32.gmra.mxu0 %v2819
        %v2821 = vpop.f32.mrf.mxu0
        %v2822 = vadd.f32 %v2706, %v2821
        %v2823 = vand.u32 %v2309, 4294901760
        %v2824 = vsub.f32 %v2309, %v2823
        %v2825 = vand.u32 %v2824, 4294901760
        %2826 = vmatmul.f32.gmra.mxu0 %v2825
        %v2827 = vpop.f32.mrf.mxu0
        %v2828 = vadd.f32 %v2711, %v2827
        %v2829 = vand.u32 %v2310, 4294901760
        %v2830 = vsub.f32 %v2310, %v2829
        %v2831 = vand.u32 %v2830, 4294901760
        %2832 = vmatmul.f32.gmra.mxu0 %v2831
        %v2833 = vpop.f32.mrf.mxu0
        %v2834 = vadd.f32 %v2716, %v2833
        %v2835 = vand.u32 %v2311, 4294901760
        %v2836 = vsub.f32 %v2311, %v2835
        %v2837 = vand.u32 %v2836, 4294901760
        %2838 = vmatmul.f32.gmra.mxu0 %v2837
        %v2839 = vpop.f32.mrf.mxu0
        %v2840 = vadd.f32 %v2721, %v2839
        %v2841 = vand.u32 %v2312, 4294901760
        %v2842 = vsub.f32 %v2312, %v2841
        %v2843 = vand.u32 %v2842, 4294901760
        %2844 = vmatmul.f32.gmra.mxu0 %v2843
        %v2845 = vpop.f32.mrf.mxu0
        %v2846 = vadd.f32 %v2726, %v2845
        %v2847 = vand.u32 %v2313, 4294901760
        %v2848 = vsub.f32 %v2313, %v2847
        %v2849 = vand.u32 %v2848, 4294901760
        %2850 = vmatmul.f32.gmra.mxu0 %v2849
        %v2851 = vpop.f32.mrf.mxu0
        %v2852 = vadd.f32 %v2731, %v2851
        %v2853 = vand.u32 %v2314, 4294901760
        %v2854 = vsub.f32 %v2314, %v2853
        %v2855 = vand.u32 %v2854, 4294901760
        %2856 = vmatmul.f32.gmra.mxu0 %v2855
        %v2857 = vpop.f32.mrf.mxu0
        %v2858 = vadd.f32 %v2736, %v2857
        %v2859 = vand.u32 %v2315, 4294901760
        %v2860 = vsub.f32 %v2315, %v2859
        %v2861 = vand.u32 %v2860, 4294901760
        %2862 = vmatmul.f32.gmra.mxu0 %v2861
        %v2863 = vpop.f32.mrf.mxu0
        %v2864 = vadd.f32 %v2741, %v2863
        %v2865 = vand.u32 %v2316, 4294901760
        %v2866 = vsub.f32 %v2316, %v2865
        %v2867 = vand.u32 %v2866, 4294901760
        %2868 = vmatmul.f32.gmra.mxu0 %v2867
        %v2869 = vpop.f32.mrf.mxu0
        %v2870 = vadd.f32 %v2746, %v2869
        %v2871 = vand.u32 %v2317, 4294901760
        %v2872 = vsub.f32 %v2317, %v2871
        %v2873 = vand.u32 %v2872, 4294901760
        %2874 = vmatmul.f32.gmra.mxu0 %v2873
        %v2875 = vpop.f32.mrf.mxu0
        %v2876 = vadd.f32 %v2751, %v2875
        %v2877 = vand.u32 %v2318, 4294901760
        %v2878 = vsub.f32 %v2318, %v2877
        %v2879 = vand.u32 %v2878, 4294901760
        %2880 = vmatmul.f32.gmra.mxu0 %v2879
        %v2881 = vpop.f32.mrf.mxu0
        %v2882 = vadd.f32 %v2756, %v2881
        %v2883 = vand.u32 %v2319, 4294901760
        %v2884 = vsub.f32 %v2319, %v2883
        %v2885 = vand.u32 %v2884, 4294901760
        %2886 = vmatmul.f32.gmra.mxu0 %v2885
        %v2887 = vpop.f32.mrf.mxu0
        %v2888 = vadd.f32 %v2761, %v2887
        %v2889 = vand.u32 %v2320, 4294901760
        %v2890 = vsub.f32 %v2320, %v2889
        %v2891 = vand.u32 %v2890, 4294901760
        %2892 = vmatmul.f32.gmra.mxu0 %v2891
        %v2893 = vpop.f32.mrf.mxu0
        %v2894 = vadd.f32 %v2766, %v2893
        %v2895 = vand.u32 %v2321, 4294901760
        %v2896 = vsub.f32 %v2321, %v2895
        %v2897 = vand.u32 %v2896, 4294901760
        %2898 = vmatmul.f32.gmra.mxu0 %v2897
        %v2899 = vpop.f32.mrf.mxu0
        %v2900 = vadd.f32 %v2771, %v2899
        %2901 = vdwg.mxu0
        %v2902 = vand.u32 %v1384, 4294901760
        %v2903 = vsub.f32 %v1384, %v2902
        %v2904 = vand.u32 %v2903, 4294901760
        %2905 = vmatpush.msra.mxu0 %v2904
        %v2906 = vand.u32 %v1380, 4294901760
        %v2907 = vsub.f32 %v1380, %v2906
        %v2908 = vand.u32 %v2907, 4294901760
        %2909 = vmatpush.msra.mxu0 %v2908
        %v2910 = vand.u32 %v1376, 4294901760
        %v2911 = vsub.f32 %v1376, %v2910
        %v2912 = vand.u32 %v2911, 4294901760
        %2913 = vmatpush.msra.mxu0 %v2912
        %v2914 = vand.u32 %v1372, 4294901760
        %v2915 = vsub.f32 %v1372, %v2914
        %v2916 = vand.u32 %v2915, 4294901760
        %2917 = vmatpush.msra.mxu0 %v2916
        %v2918 = vand.u32 %v1368, 4294901760
        %v2919 = vsub.f32 %v1368, %v2918
        %v2920 = vand.u32 %v2919, 4294901760
        %2921 = vmatpush.msra.mxu0 %v2920
        %v2922 = vand.u32 %v1364, 4294901760
        %v2923 = vsub.f32 %v1364, %v2922
        %v2924 = vand.u32 %v2923, 4294901760
        %2925 = vmatpush.msra.mxu0 %v2924
        %v2926 = vand.u32 %v1360, 4294901760
        %v2927 = vsub.f32 %v1360, %v2926
        %v2928 = vand.u32 %v2927, 4294901760
        %2929 = vmatpush.msra.mxu0 %v2928
        %v2930 = vand.u32 %v1356, 4294901760
        %v2931 = vsub.f32 %v1356, %v2930
        %v2932 = vand.u32 %v2931, 4294901760
        %2933 = vmatpush.msra.mxu0 %v2932
        %v2934 = vand.u32 %v1352, 4294901760
        %v2935 = vsub.f32 %v1352, %v2934
        %v2936 = vand.u32 %v2935, 4294901760
        %2937 = vmatpush.msra.mxu0 %v2936
        %v2938 = vand.u32 %v1348, 4294901760
        %v2939 = vsub.f32 %v1348, %v2938
        %v2940 = vand.u32 %v2939, 4294901760
        %2941 = vmatpush.msra.mxu0 %v2940
        %v2942 = vand.u32 %v1344, 4294901760
        %v2943 = vsub.f32 %v1344, %v2942
        %v2944 = vand.u32 %v2943, 4294901760
        %2945 = vmatpush.msra.mxu0 %v2944
        %v2946 = vand.u32 %v1340, 4294901760
        %v2947 = vsub.f32 %v1340, %v2946
        %v2948 = vand.u32 %v2947, 4294901760
        %2949 = vmatpush.msra.mxu0 %v2948
        %v2950 = vand.u32 %v1336, 4294901760
        %v2951 = vsub.f32 %v1336, %v2950
        %v2952 = vand.u32 %v2951, 4294901760
        %2953 = vmatpush.msra.mxu0 %v2952
        %v2954 = vand.u32 %v1332, 4294901760
        %v2955 = vsub.f32 %v1332, %v2954
        %v2956 = vand.u32 %v2955, 4294901760
        %2957 = vmatpush.msra.mxu0 %v2956
        %v2958 = vand.u32 %v1328, 4294901760
        %v2959 = vsub.f32 %v1328, %v2958
        %v2960 = vand.u32 %v2959, 4294901760
        %2961 = vmatpush.msra.mxu0 %v2960
        %v2962 = vand.u32 %v1324, 4294901760
        %v2963 = vsub.f32 %v1324, %v2962
        %v2964 = vand.u32 %v2963, 4294901760
        %2965 = vmatpush.msra.mxu0 %v2964
        %v2966 = vand.u32 %v2306, 4294901760
        %2967 = vmatmul.f32.gmra.mxu0 %v2966
        %v2968 = vpop.f32.mrf.mxu0
        %v2969 = vadd.f32 %v2810, %v2968
        %v2970 = vand.u32 %v2307, 4294901760
        %2971 = vmatmul.f32.gmra.mxu0 %v2970
        %v2972 = vpop.f32.mrf.mxu0
        %v2973 = vadd.f32 %v2816, %v2972
        %v2974 = vand.u32 %v2308, 4294901760
        %2975 = vmatmul.f32.gmra.mxu0 %v2974
        %v2976 = vpop.f32.mrf.mxu0
        %v2977 = vadd.f32 %v2822, %v2976
        %v2978 = vand.u32 %v2309, 4294901760
        %2979 = vmatmul.f32.gmra.mxu0 %v2978
        %v2980 = vpop.f32.mrf.mxu0
        %v2981 = vadd.f32 %v2828, %v2980
        %v2982 = vand.u32 %v2310, 4294901760
        %2983 = vmatmul.f32.gmra.mxu0 %v2982
        %v2984 = vpop.f32.mrf.mxu0
        %v2985 = vadd.f32 %v2834, %v2984
        %v2986 = vand.u32 %v2311, 4294901760
        %2987 = vmatmul.f32.gmra.mxu0 %v2986
        %v2988 = vpop.f32.mrf.mxu0
        %v2989 = vadd.f32 %v2840, %v2988
        %v2990 = vand.u32 %v2312, 4294901760
        %2991 = vmatmul.f32.gmra.mxu0 %v2990
        %v2992 = vpop.f32.mrf.mxu0
        %v2993 = vadd.f32 %v2846, %v2992
        %v2994 = vand.u32 %v2313, 4294901760
        %2995 = vmatmul.f32.gmra.mxu0 %v2994
        %v2996 = vpop.f32.mrf.mxu0
        %v2997 = vadd.f32 %v2852, %v2996
        %v2998 = vand.u32 %v2314, 4294901760
        %2999 = vmatmul.f32.gmra.mxu0 %v2998
        %v3000 = vpop.f32.mrf.mxu0
        %v3001 = vadd.f32 %v2858, %v3000
        %v3002 = vand.u32 %v2315, 4294901760
        %3003 = vmatmul.f32.gmra.mxu0 %v3002
        %v3004 = vpop.f32.mrf.mxu0
        %v3005 = vadd.f32 %v2864, %v3004
        %v3006 = vand.u32 %v2316, 4294901760
        %3007 = vmatmul.f32.gmra.mxu0 %v3006
        %v3008 = vpop.f32.mrf.mxu0
        %v3009 = vadd.f32 %v2870, %v3008
        %v3010 = vand.u32 %v2317, 4294901760
        %3011 = vmatmul.f32.gmra.mxu0 %v3010
        %v3012 = vpop.f32.mrf.mxu0
        %v3013 = vadd.f32 %v2876, %v3012
        %v3014 = vand.u32 %v2318, 4294901760
        %3015 = vmatmul.f32.gmra.mxu0 %v3014
        %v3016 = vpop.f32.mrf.mxu0
        %v3017 = vadd.f32 %v2882, %v3016
        %v3018 = vand.u32 %v2319, 4294901760
        %3019 = vmatmul.f32.gmra.mxu0 %v3018
        %v3020 = vpop.f32.mrf.mxu0
        %v3021 = vadd.f32 %v2888, %v3020
        %v3022 = vand.u32 %v2320, 4294901760
        %3023 = vmatmul.f32.gmra.mxu0 %v3022
        %v3024 = vpop.f32.mrf.mxu0
        %v3025 = vadd.f32 %v2894, %v3024
        %v3026 = vand.u32 %v2321, 4294901760
        %3027 = vmatmul.f32.gmra.mxu0 %v3026
        %v3028 = vpop.f32.mrf.mxu0
        %v3029 = vadd.f32 %v2900, %v3028
        %3030 = vdwg.mxu0
        %v3031 = vand.u32 %v1384, 4294901760
        %3032 = vmatpush.msra.mxu0 %v3031
        %v3033 = vand.u32 %v1380, 4294901760
        %3034 = vmatpush.msra.mxu0 %v3033
        %v3035 = vand.u32 %v1376, 4294901760
        %3036 = vmatpush.msra.mxu0 %v3035
        %v3037 = vand.u32 %v1372, 4294901760
        %3038 = vmatpush.msra.mxu0 %v3037
        %v3039 = vand.u32 %v1368, 4294901760
        %3040 = vmatpush.msra.mxu0 %v3039
        %v3041 = vand.u32 %v1364, 4294901760
        %3042 = vmatpush.msra.mxu0 %v3041
        %v3043 = vand.u32 %v1360, 4294901760
        %3044 = vmatpush.msra.mxu0 %v3043
        %v3045 = vand.u32 %v1356, 4294901760
        %3046 = vmatpush.msra.mxu0 %v3045
        %v3047 = vand.u32 %v1352, 4294901760
        %3048 = vmatpush.msra.mxu0 %v3047
        %v3049 = vand.u32 %v1348, 4294901760
        %3050 = vmatpush.msra.mxu0 %v3049
        %v3051 = vand.u32 %v1344, 4294901760
        %3052 = vmatpush.msra.mxu0 %v3051
        %v3053 = vand.u32 %v1340, 4294901760
        %3054 = vmatpush.msra.mxu0 %v3053
        %v3055 = vand.u32 %v1336, 4294901760
        %3056 = vmatpush.msra.mxu0 %v3055
        %v3057 = vand.u32 %v1332, 4294901760
        %3058 = vmatpush.msra.mxu0 %v3057
        %v3059 = vand.u32 %v1328, 4294901760
        %3060 = vmatpush.msra.mxu0 %v3059
        %v3061 = vand.u32 %v1324, 4294901760
        %3062 = vmatpush.msra.mxu0 %v3061
        %v3063 = vand.u32 %v2306, 4294901760
        %3064 = vmatmul.f32.gmra.mxu0 %v3063
        %v3065 = vpop.f32.mrf.mxu0
        %v3066 = vadd.f32 %v2969, %v3065
        %v3067 = vand.u32 %v2307, 4294901760
        %3068 = vmatmul.f32.gmra.mxu0 %v3067
        %v3069 = vpop.f32.mrf.mxu0
        %v3070 = vadd.f32 %v2973, %v3069
        %v3071 = vand.u32 %v2308, 4294901760
        %3072 = vmatmul.f32.gmra.mxu0 %v3071
        %v3073 = vpop.f32.mrf.mxu0
        %v3074 = vadd.f32 %v2977, %v3073
        %v3075 = vand.u32 %v2309, 4294901760
        %3076 = vmatmul.f32.gmra.mxu0 %v3075
        %v3077 = vpop.f32.mrf.mxu0
        %v3078 = vadd.f32 %v2981, %v3077
        %v3079 = vand.u32 %v2310, 4294901760
        %3080 = vmatmul.f32.gmra.mxu0 %v3079
        %v3081 = vpop.f32.mrf.mxu0
        %v3082 = vadd.f32 %v2985, %v3081
        %v3083 = vand.u32 %v2311, 4294901760
        %3084 = vmatmul.f32.gmra.mxu0 %v3083
        %v3085 = vpop.f32.mrf.mxu0
        %v3086 = vadd.f32 %v2989, %v3085
        %v3087 = vand.u32 %v2312, 4294901760
        %3088 = vmatmul.f32.gmra.mxu0 %v3087
        %v3089 = vpop.f32.mrf.mxu0
        %v3090 = vadd.f32 %v2993, %v3089
        %v3091 = vand.u32 %v2313, 4294901760
        %3092 = vmatmul.f32.gmra.mxu0 %v3091
        %v3093 = vpop.f32.mrf.mxu0
        %v3094 = vadd.f32 %v2997, %v3093
        %v3095 = vand.u32 %v2314, 4294901760
        %3096 = vmatmul.f32.gmra.mxu0 %v3095
        %v3097 = vpop.f32.mrf.mxu0
        %v3098 = vadd.f32 %v3001, %v3097
        %v3099 = vand.u32 %v2315, 4294901760
        %3100 = vmatmul.f32.gmra.mxu0 %v3099
        %v3101 = vpop.f32.mrf.mxu0
        %v3102 = vadd.f32 %v3005, %v3101
        %v3103 = vand.u32 %v2316, 4294901760
        %3104 = vmatmul.f32.gmra.mxu0 %v3103
        %v3105 = vpop.f32.mrf.mxu0
        %v3106 = vadd.f32 %v3009, %v3105
        %v3107 = vand.u32 %v2317, 4294901760
        %3108 = vmatmul.f32.gmra.mxu0 %v3107
        %v3109 = vpop.f32.mrf.mxu0
        %v3110 = vadd.f32 %v3013, %v3109
        %v3111 = vand.u32 %v2318, 4294901760
        %3112 = vmatmul.f32.gmra.mxu0 %v3111
        %v3113 = vpop.f32.mrf.mxu0
        %v3114 = vadd.f32 %v3017, %v3113
        %v3115 = vand.u32 %v2319, 4294901760
        %3116 = vmatmul.f32.gmra.mxu0 %v3115
        %v3117 = vpop.f32.mrf.mxu0
        %v3118 = vadd.f32 %v3021, %v3117
        %v3119 = vand.u32 %v2320, 4294901760
        %3120 = vmatmul.f32.gmra.mxu0 %v3119
        %v3121 = vpop.f32.mrf.mxu0
        %v3122 = vadd.f32 %v3025, %v3121
        %v3123 = vand.u32 %v2321, 4294901760
        %3124 = vmatmul.f32.gmra.mxu0 %v3123
        %v3125 = vpop.f32.mrf.mxu0
        %v3126 = vadd.f32 %v3029, %v3125
        %3127 = vdwg.mxu0
        %v3128 = vand.u32 %v2206, 4294901760
        %3129 = vmatpush.msra.mxu0 %v3128
        %v3130 = vand.u32 %v2202, 4294901760
        %3131 = vmatpush.msra.mxu0 %v3130
        %v3132 = vand.u32 %v2198, 4294901760
        %3133 = vmatpush.msra.mxu0 %v3132
        %v3134 = vand.u32 %v2194, 4294901760
        %3135 = vmatpush.msra.mxu0 %v3134
        %v3136 = vand.u32 %v2190, 4294901760
        %3137 = vmatpush.msra.mxu0 %v3136
        %v3138 = vand.u32 %v2186, 4294901760
        %3139 = vmatpush.msra.mxu0 %v3138
        %v3140 = vand.u32 %v2182, 4294901760
        %3141 = vmatpush.msra.mxu0 %v3140
        %v3142 = vand.u32 %v2178, 4294901760
        %3143 = vmatpush.msra.mxu0 %v3142
        %v3144 = vand.u32 %v2174, 4294901760
        %3145 = vmatpush.msra.mxu0 %v3144
        %v3146 = vand.u32 %v2170, 4294901760
        %3147 = vmatpush.msra.mxu0 %v3146
        %v3148 = vand.u32 %v2166, 4294901760
        %3149 = vmatpush.msra.mxu0 %v3148
        %v3150 = vand.u32 %v2162, 4294901760
        %3151 = vmatpush.msra.mxu0 %v3150
        %v3152 = vand.u32 %v2158, 4294901760
        %3153 = vmatpush.msra.mxu0 %v3152
        %v3154 = vand.u32 %v2154, 4294901760
        %3155 = vmatpush.msra.mxu0 %v3154
        %v3156 = vand.u32 %v2150, 4294901760
        %3157 = vmatpush.msra.mxu0 %v3156
        %v3158 = vand.u32 %v2146, 4294901760
        %3159 = vmatpush.msra.mxu0 %v3158
        %v3160 = vand.u32 %v2306, 4294901760
        %v3161 = vsub.f32 %v2306, %v3160
        %v3162 = vand.u32 %v3161, 4294901760
        %v3163 = vsub.f32 %v3161, %v3162
        %v3164 = vand.u32 %v3163, 4294901760
        %3165 = vmatmul.f32.gmra.mxu0 %v3164
        %v3166 = vpop.f32.mrf.mxu0
        %v3167 = vadd.f32 0.0, %v3166
        %v3168 = vand.u32 %v2307, 4294901760
        %v3169 = vsub.f32 %v2307, %v3168
        %v3170 = vand.u32 %v3169, 4294901760
        %v3171 = vsub.f32 %v3169, %v3170
        %v3172 = vand.u32 %v3171, 4294901760
        %3173 = vmatmul.f32.gmra.mxu0 %v3172
        %v3174 = vpop.f32.mrf.mxu0
        %v3175 = vadd.f32 0.0, %v3174
        %v3176 = vand.u32 %v2308, 4294901760
        %v3177 = vsub.f32 %v2308, %v3176
        %v3178 = vand.u32 %v3177, 4294901760
        %v3179 = vsub.f32 %v3177, %v3178
        %v3180 = vand.u32 %v3179, 4294901760
        %3181 = vmatmul.f32.gmra.mxu0 %v3180
        %v3182 = vpop.f32.mrf.mxu0
        %v3183 = vadd.f32 0.0, %v3182
        %v3184 = vand.u32 %v2309, 4294901760
        %v3185 = vsub.f32 %v2309, %v3184
        %v3186 = vand.u32 %v3185, 4294901760
        %v3187 = vsub.f32 %v3185, %v3186
        %v3188 = vand.u32 %v3187, 4294901760
        %3189 = vmatmul.f32.gmra.mxu0 %v3188
        %v3190 = vpop.f32.mrf.mxu0
        %v3191 = vadd.f32 0.0, %v3190
        %v3192 = vand.u32 %v2310, 4294901760
        %v3193 = vsub.f32 %v2310, %v3192
        %v3194 = vand.u32 %v3193, 4294901760
        %v3195 = vsub.f32 %v3193, %v3194
        %v3196 = vand.u32 %v3195, 4294901760
        %3197 = vmatmul.f32.gmra.mxu0 %v3196
        %v3198 = vpop.f32.mrf.mxu0
        %v3199 = vadd.f32 0.0, %v3198
        %v3200 = vand.u32 %v2311, 4294901760
        %v3201 = vsub.f32 %v2311, %v3200
        %v3202 = vand.u32 %v3201, 4294901760
        %v3203 = vsub.f32 %v3201, %v3202
        %v3204 = vand.u32 %v3203, 4294901760
        %3205 = vmatmul.f32.gmra.mxu0 %v3204
        %v3206 = vpop.f32.mrf.mxu0
        %v3207 = vadd.f32 0.0, %v3206
        %v3208 = vand.u32 %v2312, 4294901760
        %v3209 = vsub.f32 %v2312, %v3208
        %v3210 = vand.u32 %v3209, 4294901760
        %v3211 = vsub.f32 %v3209, %v3210
        %v3212 = vand.u32 %v3211, 4294901760
        %3213 = vmatmul.f32.gmra.mxu0 %v3212
        %v3214 = vpop.f32.mrf.mxu0
        %v3215 = vadd.f32 0.0, %v3214
        %v3216 = vand.u32 %v2313, 4294901760
        %v3217 = vsub.f32 %v2313, %v3216
        %v3218 = vand.u32 %v3217, 4294901760
        %v3219 = vsub.f32 %v3217, %v3218
        %v3220 = vand.u32 %v3219, 4294901760
        %3221 = vmatmul.f32.gmra.mxu0 %v3220
        %v3222 = vpop.f32.mrf.mxu0
        %v3223 = vadd.f32 0.0, %v3222
        %v3224 = vand.u32 %v2314, 4294901760
        %v3225 = vsub.f32 %v2314, %v3224
        %v3226 = vand.u32 %v3225, 4294901760
        %v3227 = vsub.f32 %v3225, %v3226
        %v3228 = vand.u32 %v3227, 4294901760
        %3229 = vmatmul.f32.gmra.mxu0 %v3228
        %v3230 = vpop.f32.mrf.mxu0
        %v3231 = vadd.f32 0.0, %v3230
        %v3232 = vand.u32 %v2315, 4294901760
        %v3233 = vsub.f32 %v2315, %v3232
        %v3234 = vand.u32 %v3233, 4294901760
        %v3235 = vsub.f32 %v3233, %v3234
        %v3236 = vand.u32 %v3235, 4294901760
        %3237 = vmatmul.f32.gmra.mxu0 %v3236
        %v3238 = vpop.f32.mrf.mxu0
        %v3239 = vadd.f32 0.0, %v3238
        %v3240 = vand.u32 %v2316, 4294901760
        %v3241 = vsub.f32 %v2316, %v3240
        %v3242 = vand.u32 %v3241, 4294901760
        %v3243 = vsub.f32 %v3241, %v3242
        %v3244 = vand.u32 %v3243, 4294901760
        %3245 = vmatmul.f32.gmra.mxu0 %v3244
        %v3246 = vpop.f32.mrf.mxu0
        %v3247 = vadd.f32 0.0, %v3246
        %v3248 = vand.u32 %v2317, 4294901760
        %v3249 = vsub.f32 %v2317, %v3248
        %v3250 = vand.u32 %v3249, 4294901760
        %v3251 = vsub.f32 %v3249, %v3250
        %v3252 = vand.u32 %v3251, 4294901760
        %3253 = vmatmul.f32.gmra.mxu0 %v3252
        %v3254 = vpop.f32.mrf.mxu0
        %v3255 = vadd.f32 0.0, %v3254
        %v3256 = vand.u32 %v2318, 4294901760
        %v3257 = vsub.f32 %v2318, %v3256
        %v3258 = vand.u32 %v3257, 4294901760
        %v3259 = vsub.f32 %v3257, %v3258
        %v3260 = vand.u32 %v3259, 4294901760
        %3261 = vmatmul.f32.gmra.mxu0 %v3260
        %v3262 = vpop.f32.mrf.mxu0
        %v3263 = vadd.f32 0.0, %v3262
        %v3264 = vand.u32 %v2319, 4294901760
        %v3265 = vsub.f32 %v2319, %v3264
        %v3266 = vand.u32 %v3265, 4294901760
        %v3267 = vsub.f32 %v3265, %v3266
        %v3268 = vand.u32 %v3267, 4294901760
        %3269 = vmatmul.f32.gmra.mxu0 %v3268
        %v3270 = vpop.f32.mrf.mxu0
        %v3271 = vadd.f32 0.0, %v3270
        %v3272 = vand.u32 %v2320, 4294901760
        %v3273 = vsub.f32 %v2320, %v3272
        %v3274 = vand.u32 %v3273, 4294901760
        %v3275 = vsub.f32 %v3273, %v3274
        %v3276 = vand.u32 %v3275, 4294901760
        %3277 = vmatmul.f32.gmra.mxu0 %v3276
        %v3278 = vpop.f32.mrf.mxu0
        %v3279 = vadd.f32 0.0, %v3278
        %v3280 = vand.u32 %v2321, 4294901760
        %v3281 = vsub.f32 %v2321, %v3280
        %v3282 = vand.u32 %v3281, 4294901760
        %v3283 = vsub.f32 %v3281, %v3282
        %v3284 = vand.u32 %v3283, 4294901760
        %3285 = vmatmul.f32.gmra.mxu0 %v3284
        %v3286 = vpop.f32.mrf.mxu0
        %v3287 = vadd.f32 0.0, %v3286
        %3288 = vdwg.mxu0
        %v3289 = vand.u32 %v2206, 4294901760
        %v3290 = vsub.f32 %v2206, %v3289
        %v3291 = vand.u32 %v3290, 4294901760
        %v3292 = vsub.f32 %v3290, %v3291
        %v3293 = vand.u32 %v3292, 4294901760
        %3294 = vmatpush.msra.mxu0 %v3293
        %v3295 = vand.u32 %v2202, 4294901760
        %v3296 = vsub.f32 %v2202, %v3295
        %v3297 = vand.u32 %v3296, 4294901760
        %v3298 = vsub.f32 %v3296, %v3297
        %v3299 = vand.u32 %v3298, 4294901760
        %3300 = vmatpush.msra.mxu0 %v3299
        %v3301 = vand.u32 %v2198, 4294901760
        %v3302 = vsub.f32 %v2198, %v3301
        %v3303 = vand.u32 %v3302, 4294901760
        %v3304 = vsub.f32 %v3302, %v3303
        %v3305 = vand.u32 %v3304, 4294901760
        %3306 = vmatpush.msra.mxu0 %v3305
        %v3307 = vand.u32 %v2194, 4294901760
        %v3308 = vsub.f32 %v2194, %v3307
        %v3309 = vand.u32 %v3308, 4294901760
        %v3310 = vsub.f32 %v3308, %v3309
        %v3311 = vand.u32 %v3310, 4294901760
        %3312 = vmatpush.msra.mxu0 %v3311
        %v3313 = vand.u32 %v2190, 4294901760
        %v3314 = vsub.f32 %v2190, %v3313
        %v3315 = vand.u32 %v3314, 4294901760
        %v3316 = vsub.f32 %v3314, %v3315
        %v3317 = vand.u32 %v3316, 4294901760
        %3318 = vmatpush.msra.mxu0 %v3317
        %v3319 = vand.u32 %v2186, 4294901760
        %v3320 = vsub.f32 %v2186, %v3319
        %v3321 = vand.u32 %v3320, 4294901760
        %v3322 = vsub.f32 %v3320, %v3321
        %v3323 = vand.u32 %v3322, 4294901760
        %3324 = vmatpush.msra.mxu0 %v3323
        %v3325 = vand.u32 %v2182, 4294901760
        %v3326 = vsub.f32 %v2182, %v3325
        %v3327 = vand.u32 %v3326, 4294901760
        %v3328 = vsub.f32 %v3326, %v3327
        %v3329 = vand.u32 %v3328, 4294901760
        %3330 = vmatpush.msra.mxu0 %v3329
        %v3331 = vand.u32 %v2178, 4294901760
        %v3332 = vsub.f32 %v2178, %v3331
        %v3333 = vand.u32 %v3332, 4294901760
        %v3334 = vsub.f32 %v3332, %v3333
        %v3335 = vand.u32 %v3334, 4294901760
        %3336 = vmatpush.msra.mxu0 %v3335
        %v3337 = vand.u32 %v2174, 4294901760
        %v3338 = vsub.f32 %v2174, %v3337
        %v3339 = vand.u32 %v3338, 4294901760
        %v3340 = vsub.f32 %v3338, %v3339
        %v3341 = vand.u32 %v3340, 4294901760
        %3342 = vmatpush.msra.mxu0 %v3341
        %v3343 = vand.u32 %v2170, 4294901760
        %v3344 = vsub.f32 %v2170, %v3343
        %v3345 = vand.u32 %v3344, 4294901760
        %v3346 = vsub.f32 %v3344, %v3345
        %v3347 = vand.u32 %v3346, 4294901760
        %3348 = vmatpush.msra.mxu0 %v3347
        %v3349 = vand.u32 %v2166, 4294901760
        %v3350 = vsub.f32 %v2166, %v3349
        %v3351 = vand.u32 %v3350, 4294901760
        %v3352 = vsub.f32 %v3350, %v3351
        %v3353 = vand.u32 %v3352, 4294901760
        %3354 = vmatpush.msra.mxu0 %v3353
        %v3355 = vand.u32 %v2162, 4294901760
        %v3356 = vsub.f32 %v2162, %v3355
        %v3357 = vand.u32 %v3356, 4294901760
        %v3358 = vsub.f32 %v3356, %v3357
        %v3359 = vand.u32 %v3358, 4294901760
        %3360 = vmatpush.msra.mxu0 %v3359
        %v3361 = vand.u32 %v2158, 4294901760
        %v3362 = vsub.f32 %v2158, %v3361
        %v3363 = vand.u32 %v3362, 4294901760
        %v3364 = vsub.f32 %v3362, %v3363
        %v3365 = vand.u32 %v3364, 4294901760
        %3366 = vmatpush.msra.mxu0 %v3365
        %v3367 = vand.u32 %v2154, 4294901760
        %v3368 = vsub.f32 %v2154, %v3367
        %v3369 = vand.u32 %v3368, 4294901760
        %v3370 = vsub.f32 %v3368, %v3369
        %v3371 = vand.u32 %v3370, 4294901760
        %3372 = vmatpush.msra.mxu0 %v3371
        %v3373 = vand.u32 %v2150, 4294901760
        %v3374 = vsub.f32 %v2150, %v3373
        %v3375 = vand.u32 %v3374, 4294901760
        %v3376 = vsub.f32 %v3374, %v3375
        %v3377 = vand.u32 %v3376, 4294901760
        %3378 = vmatpush.msra.mxu0 %v3377
        %v3379 = vand.u32 %v2146, 4294901760
        %v3380 = vsub.f32 %v2146, %v3379
        %v3381 = vand.u32 %v3380, 4294901760
        %v3382 = vsub.f32 %v3380, %v3381
        %v3383 = vand.u32 %v3382, 4294901760
        %3384 = vmatpush.msra.mxu0 %v3383
        %v3385 = vand.u32 %v2306, 4294901760
        %3386 = vmatmul.f32.gmra.mxu0 %v3385
        %v3387 = vpop.f32.mrf.mxu0
        %v3388 = vadd.f32 %v3167, %v3387
        %v3389 = vand.u32 %v2307, 4294901760
        %3390 = vmatmul.f32.gmra.mxu0 %v3389
        %v3391 = vpop.f32.mrf.mxu0
        %v3392 = vadd.f32 %v3175, %v3391
        %v3393 = vand.u32 %v2308, 4294901760
        %3394 = vmatmul.f32.gmra.mxu0 %v3393
        %v3395 = vpop.f32.mrf.mxu0
        %v3396 = vadd.f32 %v3183, %v3395
        %v3397 = vand.u32 %v2309, 4294901760
        %3398 = vmatmul.f32.gmra.mxu0 %v3397
        %v3399 = vpop.f32.mrf.mxu0
        %v3400 = vadd.f32 %v3191, %v3399
        %v3401 = vand.u32 %v2310, 4294901760
        %3402 = vmatmul.f32.gmra.mxu0 %v3401
        %v3403 = vpop.f32.mrf.mxu0
        %v3404 = vadd.f32 %v3199, %v3403
        %v3405 = vand.u32 %v2311, 4294901760
        %3406 = vmatmul.f32.gmra.mxu0 %v3405
        %v3407 = vpop.f32.mrf.mxu0
        %v3408 = vadd.f32 %v3207, %v3407
        %v3409 = vand.u32 %v2312, 4294901760
        %3410 = vmatmul.f32.gmra.mxu0 %v3409
        %v3411 = vpop.f32.mrf.mxu0
        %v3412 = vadd.f32 %v3215, %v3411
        %v3413 = vand.u32 %v2313, 4294901760
        %3414 = vmatmul.f32.gmra.mxu0 %v3413
        %v3415 = vpop.f32.mrf.mxu0
        %v3416 = vadd.f32 %v3223, %v3415
        %v3417 = vand.u32 %v2314, 4294901760
        %3418 = vmatmul.f32.gmra.mxu0 %v3417
        %v3419 = vpop.f32.mrf.mxu0
        %v3420 = vadd.f32 %v3231, %v3419
        %v3421 = vand.u32 %v2315, 4294901760
        %3422 = vmatmul.f32.gmra.mxu0 %v3421
        %v3423 = vpop.f32.mrf.mxu0
        %v3424 = vadd.f32 %v3239, %v3423
        %v3425 = vand.u32 %v2316, 4294901760
        %3426 = vmatmul.f32.gmra.mxu0 %v3425
        %v3427 = vpop.f32.mrf.mxu0
        %v3428 = vadd.f32 %v3247, %v3427
        %v3429 = vand.u32 %v2317, 4294901760
        %3430 = vmatmul.f32.gmra.mxu0 %v3429
        %v3431 = vpop.f32.mrf.mxu0
        %v3432 = vadd.f32 %v3255, %v3431
        %v3433 = vand.u32 %v2318, 4294901760
        %3434 = vmatmul.f32.gmra.mxu0 %v3433
        %v3435 = vpop.f32.mrf.mxu0
        %v3436 = vadd.f32 %v3263, %v3435
        %v3437 = vand.u32 %v2319, 4294901760
        %3438 = vmatmul.f32.gmra.mxu0 %v3437
        %v3439 = vpop.f32.mrf.mxu0
        %v3440 = vadd.f32 %v3271, %v3439
        %v3441 = vand.u32 %v2320, 4294901760
        %3442 = vmatmul.f32.gmra.mxu0 %v3441
        %v3443 = vpop.f32.mrf.mxu0
        %v3444 = vadd.f32 %v3279, %v3443
        %v3445 = vand.u32 %v2321, 4294901760
        %3446 = vmatmul.f32.gmra.mxu0 %v3445
        %v3447 = vpop.f32.mrf.mxu0
        %v3448 = vadd.f32 %v3287, %v3447
        %3449 = vdwg.mxu0
        %v3450 = vand.u32 %v2206, 4294901760
        %v3451 = vsub.f32 %v2206, %v3450
        %3452 = vmatpush.msra.mxu0 %v3451
        %v3453 = vand.u32 %v2202, 4294901760
        %v3454 = vsub.f32 %v2202, %v3453
        %3455 = vmatpush.msra.mxu0 %v3454
        %v3456 = vand.u32 %v2198, 4294901760
        %v3457 = vsub.f32 %v2198, %v3456
        %3458 = vmatpush.msra.mxu0 %v3457
        %v3459 = vand.u32 %v2194, 4294901760
        %v3460 = vsub.f32 %v2194, %v3459
        %3461 = vmatpush.msra.mxu0 %v3460
        %v3462 = vand.u32 %v2190, 4294901760
        %v3463 = vsub.f32 %v2190, %v3462
        %3464 = vmatpush.msra.mxu0 %v3463
        %v3465 = vand.u32 %v2186, 4294901760
        %v3466 = vsub.f32 %v2186, %v3465
        %3467 = vmatpush.msra.mxu0 %v3466
        %v3468 = vand.u32 %v2182, 4294901760
        %v3469 = vsub.f32 %v2182, %v3468
        %3470 = vmatpush.msra.mxu0 %v3469
        %v3471 = vand.u32 %v2178, 4294901760
        %v3472 = vsub.f32 %v2178, %v3471
        %3473 = vmatpush.msra.mxu0 %v3472
        %v3474 = vand.u32 %v2174, 4294901760
        %v3475 = vsub.f32 %v2174, %v3474
        %3476 = vmatpush.msra.mxu0 %v3475
        %v3477 = vand.u32 %v2170, 4294901760
        %v3478 = vsub.f32 %v2170, %v3477
        %3479 = vmatpush.msra.mxu0 %v3478
        %v3480 = vand.u32 %v2166, 4294901760
        %v3481 = vsub.f32 %v2166, %v3480
        %3482 = vmatpush.msra.mxu0 %v3481
        %v3483 = vand.u32 %v2162, 4294901760
        %v3484 = vsub.f32 %v2162, %v3483
        %3485 = vmatpush.msra.mxu0 %v3484
        %v3486 = vand.u32 %v2158, 4294901760
        %v3487 = vsub.f32 %v2158, %v3486
        %3488 = vmatpush.msra.mxu0 %v3487
        %v3489 = vand.u32 %v2154, 4294901760
        %v3490 = vsub.f32 %v2154, %v3489
        %3491 = vmatpush.msra.mxu0 %v3490
        %v3492 = vand.u32 %v2150, 4294901760
        %v3493 = vsub.f32 %v2150, %v3492
        %3494 = vmatpush.msra.mxu0 %v3493
        %v3495 = vand.u32 %v2146, 4294901760
        %v3496 = vsub.f32 %v2146, %v3495
        %3497 = vmatpush.msra.mxu0 %v3496
        %v3498 = vand.u32 %v2306, 4294901760
        %v3499 = vsub.f32 %v2306, %v3498
        %3500 = vmatmul.f32.gmra.mxu0 %v3499
        %v3501 = vpop.f32.mrf.mxu0
        %v3502 = vadd.f32 %v3388, %v3501
        %v3503 = vand.u32 %v2307, 4294901760
        %v3504 = vsub.f32 %v2307, %v3503
        %3505 = vmatmul.f32.gmra.mxu0 %v3504
        %v3506 = vpop.f32.mrf.mxu0
        %v3507 = vadd.f32 %v3392, %v3506
        %v3508 = vand.u32 %v2308, 4294901760
        %v3509 = vsub.f32 %v2308, %v3508
        %3510 = vmatmul.f32.gmra.mxu0 %v3509
        %v3511 = vpop.f32.mrf.mxu0
        %v3512 = vadd.f32 %v3396, %v3511
        %v3513 = vand.u32 %v2309, 4294901760
        %v3514 = vsub.f32 %v2309, %v3513
        %3515 = vmatmul.f32.gmra.mxu0 %v3514
        %v3516 = vpop.f32.mrf.mxu0
        %v3517 = vadd.f32 %v3400, %v3516
        %v3518 = vand.u32 %v2310, 4294901760
        %v3519 = vsub.f32 %v2310, %v3518
        %3520 = vmatmul.f32.gmra.mxu0 %v3519
        %v3521 = vpop.f32.mrf.mxu0
        %v3522 = vadd.f32 %v3404, %v3521
        %v3523 = vand.u32 %v2311, 4294901760
        %v3524 = vsub.f32 %v2311, %v3523
        %3525 = vmatmul.f32.gmra.mxu0 %v3524
        %v3526 = vpop.f32.mrf.mxu0
        %v3527 = vadd.f32 %v3408, %v3526
        %v3528 = vand.u32 %v2312, 4294901760
        %v3529 = vsub.f32 %v2312, %v3528
        %3530 = vmatmul.f32.gmra.mxu0 %v3529
        %v3531 = vpop.f32.mrf.mxu0
        %v3532 = vadd.f32 %v3412, %v3531
        %v3533 = vand.u32 %v2313, 4294901760
        %v3534 = vsub.f32 %v2313, %v3533
        %3535 = vmatmul.f32.gmra.mxu0 %v3534
        %v3536 = vpop.f32.mrf.mxu0
        %v3537 = vadd.f32 %v3416, %v3536
        %v3538 = vand.u32 %v2314, 4294901760
        %v3539 = vsub.f32 %v2314, %v3538
        %3540 = vmatmul.f32.gmra.mxu0 %v3539
        %v3541 = vpop.f32.mrf.mxu0
        %v3542 = vadd.f32 %v3420, %v3541
        %v3543 = vand.u32 %v2315, 4294901760
        %v3544 = vsub.f32 %v2315, %v3543
        %3545 = vmatmul.f32.gmra.mxu0 %v3544
        %v3546 = vpop.f32.mrf.mxu0
        %v3547 = vadd.f32 %v3424, %v3546
        %v3548 = vand.u32 %v2316, 4294901760
        %v3549 = vsub.f32 %v2316, %v3548
        %3550 = vmatmul.f32.gmra.mxu0 %v3549
        %v3551 = vpop.f32.mrf.mxu0
        %v3552 = vadd.f32 %v3428, %v3551
        %v3553 = vand.u32 %v2317, 4294901760
        %v3554 = vsub.f32 %v2317, %v3553
        %3555 = vmatmul.f32.gmra.mxu0 %v3554
        %v3556 = vpop.f32.mrf.mxu0
        %v3557 = vadd.f32 %v3432, %v3556
        %v3558 = vand.u32 %v2318, 4294901760
        %v3559 = vsub.f32 %v2318, %v3558
        %3560 = vmatmul.f32.gmra.mxu0 %v3559
        %v3561 = vpop.f32.mrf.mxu0
        %v3562 = vadd.f32 %v3436, %v3561
        %v3563 = vand.u32 %v2319, 4294901760
        %v3564 = vsub.f32 %v2319, %v3563
        %3565 = vmatmul.f32.gmra.mxu0 %v3564
        %v3566 = vpop.f32.mrf.mxu0
        %v3567 = vadd.f32 %v3440, %v3566
        %v3568 = vand.u32 %v2320, 4294901760
        %v3569 = vsub.f32 %v2320, %v3568
        %3570 = vmatmul.f32.gmra.mxu0 %v3569
        %v3571 = vpop.f32.mrf.mxu0
        %v3572 = vadd.f32 %v3444, %v3571
        %v3573 = vand.u32 %v2321, 4294901760
        %v3574 = vsub.f32 %v2321, %v3573
        %3575 = vmatmul.f32.gmra.mxu0 %v3574
        %v3576 = vpop.f32.mrf.mxu0
        %v3577 = vadd.f32 %v3448, %v3576
        %3578 = vdwg.mxu0
        %v3579 = vand.u32 %v2206, 4294901760
        %3580 = vmatpush.msra.mxu0 %v3579
        %v3581 = vand.u32 %v2202, 4294901760
        %3582 = vmatpush.msra.mxu0 %v3581
        %v3583 = vand.u32 %v2198, 4294901760
        %3584 = vmatpush.msra.mxu0 %v3583
        %v3585 = vand.u32 %v2194, 4294901760
        %3586 = vmatpush.msra.mxu0 %v3585
        %v3587 = vand.u32 %v2190, 4294901760
        %3588 = vmatpush.msra.mxu0 %v3587
        %v3589 = vand.u32 %v2186, 4294901760
        %3590 = vmatpush.msra.mxu0 %v3589
        %v3591 = vand.u32 %v2182, 4294901760
        %3592 = vmatpush.msra.mxu0 %v3591
        %v3593 = vand.u32 %v2178, 4294901760
        %3594 = vmatpush.msra.mxu0 %v3593
        %v3595 = vand.u32 %v2174, 4294901760
        %3596 = vmatpush.msra.mxu0 %v3595
        %v3597 = vand.u32 %v2170, 4294901760
        %3598 = vmatpush.msra.mxu0 %v3597
        %v3599 = vand.u32 %v2166, 4294901760
        %3600 = vmatpush.msra.mxu0 %v3599
        %v3601 = vand.u32 %v2162, 4294901760
        %3602 = vmatpush.msra.mxu0 %v3601
        %v3603 = vand.u32 %v2158, 4294901760
        %3604 = vmatpush.msra.mxu0 %v3603
        %v3605 = vand.u32 %v2154, 4294901760
        %3606 = vmatpush.msra.mxu0 %v3605
        %v3607 = vand.u32 %v2150, 4294901760
        %3608 = vmatpush.msra.mxu0 %v3607
        %v3609 = vand.u32 %v2146, 4294901760
        %3610 = vmatpush.msra.mxu0 %v3609
        %v3611 = vand.u32 %v2306, 4294901760
        %v3612 = vsub.f32 %v2306, %v3611
        %v3613 = vand.u32 %v3612, 4294901760
        %3614 = vmatmul.f32.gmra.mxu0 %v3613
        %v3615 = vpop.f32.mrf.mxu0
        %v3616 = vadd.f32 %v3502, %v3615
        %v3617 = vand.u32 %v2307, 4294901760
        %v3618 = vsub.f32 %v2307, %v3617
        %v3619 = vand.u32 %v3618, 4294901760
        %3620 = vmatmul.f32.gmra.mxu0 %v3619
        %v3621 = vpop.f32.mrf.mxu0
        %v3622 = vadd.f32 %v3507, %v3621
        %v3623 = vand.u32 %v2308, 4294901760
        %v3624 = vsub.f32 %v2308, %v3623
        %v3625 = vand.u32 %v3624, 4294901760
        %3626 = vmatmul.f32.gmra.mxu0 %v3625
        %v3627 = vpop.f32.mrf.mxu0
        %v3628 = vadd.f32 %v3512, %v3627
        %v3629 = vand.u32 %v2309, 4294901760
        %v3630 = vsub.f32 %v2309, %v3629
        %v3631 = vand.u32 %v3630, 4294901760
        %3632 = vmatmul.f32.gmra.mxu0 %v3631
        %v3633 = vpop.f32.mrf.mxu0
        %v3634 = vadd.f32 %v3517, %v3633
        %v3635 = vand.u32 %v2310, 4294901760
        %v3636 = vsub.f32 %v2310, %v3635
        %v3637 = vand.u32 %v3636, 4294901760
        %3638 = vmatmul.f32.gmra.mxu0 %v3637
        %v3639 = vpop.f32.mrf.mxu0
        %v3640 = vadd.f32 %v3522, %v3639
        %v3641 = vand.u32 %v2311, 4294901760
        %v3642 = vsub.f32 %v2311, %v3641
        %v3643 = vand.u32 %v3642, 4294901760
        %3644 = vmatmul.f32.gmra.mxu0 %v3643
        %v3645 = vpop.f32.mrf.mxu0
        %v3646 = vadd.f32 %v3527, %v3645
        %v3647 = vand.u32 %v2312, 4294901760
        %v3648 = vsub.f32 %v2312, %v3647
        %v3649 = vand.u32 %v3648, 4294901760
        %3650 = vmatmul.f32.gmra.mxu0 %v3649
        %v3651 = vpop.f32.mrf.mxu0
        %v3652 = vadd.f32 %v3532, %v3651
        %v3653 = vand.u32 %v2313, 4294901760
        %v3654 = vsub.f32 %v2313, %v3653
        %v3655 = vand.u32 %v3654, 4294901760
        %3656 = vmatmul.f32.gmra.mxu0 %v3655
        %v3657 = vpop.f32.mrf.mxu0
        %v3658 = vadd.f32 %v3537, %v3657
        %v3659 = vand.u32 %v2314, 4294901760
        %v3660 = vsub.f32 %v2314, %v3659
        %v3661 = vand.u32 %v3660, 4294901760
        %3662 = vmatmul.f32.gmra.mxu0 %v3661
        %v3663 = vpop.f32.mrf.mxu0
        %v3664 = vadd.f32 %v3542, %v3663
        %v3665 = vand.u32 %v2315, 4294901760
        %v3666 = vsub.f32 %v2315, %v3665
        %v3667 = vand.u32 %v3666, 4294901760
        %3668 = vmatmul.f32.gmra.mxu0 %v3667
        %v3669 = vpop.f32.mrf.mxu0
        %v3670 = vadd.f32 %v3547, %v3669
        %v3671 = vand.u32 %v2316, 4294901760
        %v3672 = vsub.f32 %v2316, %v3671
        %v3673 = vand.u32 %v3672, 4294901760
        %3674 = vmatmul.f32.gmra.mxu0 %v3673
        %v3675 = vpop.f32.mrf.mxu0
        %v3676 = vadd.f32 %v3552, %v3675
        %v3677 = vand.u32 %v2317, 4294901760
        %v3678 = vsub.f32 %v2317, %v3677
        %v3679 = vand.u32 %v3678, 4294901760
        %3680 = vmatmul.f32.gmra.mxu0 %v3679
        %v3681 = vpop.f32.mrf.mxu0
        %v3682 = vadd.f32 %v3557, %v3681
        %v3683 = vand.u32 %v2318, 4294901760
        %v3684 = vsub.f32 %v2318, %v3683
        %v3685 = vand.u32 %v3684, 4294901760
        %3686 = vmatmul.f32.gmra.mxu0 %v3685
        %v3687 = vpop.f32.mrf.mxu0
        %v3688 = vadd.f32 %v3562, %v3687
        %v3689 = vand.u32 %v2319, 4294901760
        %v3690 = vsub.f32 %v2319, %v3689
        %v3691 = vand.u32 %v3690, 4294901760
        %3692 = vmatmul.f32.gmra.mxu0 %v3691
        %v3693 = vpop.f32.mrf.mxu0
        %v3694 = vadd.f32 %v3567, %v3693
        %v3695 = vand.u32 %v2320, 4294901760
        %v3696 = vsub.f32 %v2320, %v3695
        %v3697 = vand.u32 %v3696, 4294901760
        %3698 = vmatmul.f32.gmra.mxu0 %v3697
        %v3699 = vpop.f32.mrf.mxu0
        %v3700 = vadd.f32 %v3572, %v3699
        %v3701 = vand.u32 %v2321, 4294901760
        %v3702 = vsub.f32 %v2321, %v3701
        %v3703 = vand.u32 %v3702, 4294901760
        %3704 = vmatmul.f32.gmra.mxu0 %v3703
        %v3705 = vpop.f32.mrf.mxu0
        %v3706 = vadd.f32 %v3577, %v3705
        %3707 = vdwg.mxu0
        %v3708 = vand.u32 %v2206, 4294901760
        %v3709 = vsub.f32 %v2206, %v3708
        %v3710 = vand.u32 %v3709, 4294901760
        %3711 = vmatpush.msra.mxu0 %v3710
        %v3712 = vand.u32 %v2202, 4294901760
        %v3713 = vsub.f32 %v2202, %v3712
        %v3714 = vand.u32 %v3713, 4294901760
        %3715 = vmatpush.msra.mxu0 %v3714
        %v3716 = vand.u32 %v2198, 4294901760
        %v3717 = vsub.f32 %v2198, %v3716
        %v3718 = vand.u32 %v3717, 4294901760
        %3719 = vmatpush.msra.mxu0 %v3718
        %v3720 = vand.u32 %v2194, 4294901760
        %v3721 = vsub.f32 %v2194, %v3720
        %v3722 = vand.u32 %v3721, 4294901760
        %3723 = vmatpush.msra.mxu0 %v3722
        %v3724 = vand.u32 %v2190, 4294901760
        %v3725 = vsub.f32 %v2190, %v3724
        %v3726 = vand.u32 %v3725, 4294901760
        %3727 = vmatpush.msra.mxu0 %v3726
        %v3728 = vand.u32 %v2186, 4294901760
        %v3729 = vsub.f32 %v2186, %v3728
        %v3730 = vand.u32 %v3729, 4294901760
        %3731 = vmatpush.msra.mxu0 %v3730
        %v3732 = vand.u32 %v2182, 4294901760
        %v3733 = vsub.f32 %v2182, %v3732
        %v3734 = vand.u32 %v3733, 4294901760
        %3735 = vmatpush.msra.mxu0 %v3734
        %v3736 = vand.u32 %v2178, 4294901760
        %v3737 = vsub.f32 %v2178, %v3736
        %v3738 = vand.u32 %v3737, 4294901760
        %3739 = vmatpush.msra.mxu0 %v3738
        %v3740 = vand.u32 %v2174, 4294901760
        %v3741 = vsub.f32 %v2174, %v3740
        %v3742 = vand.u32 %v3741, 4294901760
        %3743 = vmatpush.msra.mxu0 %v3742
        %v3744 = vand.u32 %v2170, 4294901760
        %v3745 = vsub.f32 %v2170, %v3744
        %v3746 = vand.u32 %v3745, 4294901760
        %3747 = vmatpush.msra.mxu0 %v3746
        %v3748 = vand.u32 %v2166, 4294901760
        %v3749 = vsub.f32 %v2166, %v3748
        %v3750 = vand.u32 %v3749, 4294901760
        %3751 = vmatpush.msra.mxu0 %v3750
        %v3752 = vand.u32 %v2162, 4294901760
        %v3753 = vsub.f32 %v2162, %v3752
        %v3754 = vand.u32 %v3753, 4294901760
        %3755 = vmatpush.msra.mxu0 %v3754
        %v3756 = vand.u32 %v2158, 4294901760
        %v3757 = vsub.f32 %v2158, %v3756
        %v3758 = vand.u32 %v3757, 4294901760
        %3759 = vmatpush.msra.mxu0 %v3758
        %v3760 = vand.u32 %v2154, 4294901760
        %v3761 = vsub.f32 %v2154, %v3760
        %v3762 = vand.u32 %v3761, 4294901760
        %3763 = vmatpush.msra.mxu0 %v3762
        %v3764 = vand.u32 %v2150, 4294901760
        %v3765 = vsub.f32 %v2150, %v3764
        %v3766 = vand.u32 %v3765, 4294901760
        %3767 = vmatpush.msra.mxu0 %v3766
        %v3768 = vand.u32 %v2146, 4294901760
        %v3769 = vsub.f32 %v2146, %v3768
        %v3770 = vand.u32 %v3769, 4294901760
        %3771 = vmatpush.msra.mxu0 %v3770
        %v3772 = vand.u32 %v2306, 4294901760
        %3773 = vmatmul.f32.gmra.mxu0 %v3772
        %v3774 = vpop.f32.mrf.mxu0
        %v3775 = vadd.f32 %v3616, %v3774
        %v3776 = vand.u32 %v2307, 4294901760
        %3777 = vmatmul.f32.gmra.mxu0 %v3776
        %v3778 = vpop.f32.mrf.mxu0
        %v3779 = vadd.f32 %v3622, %v3778
        %v3780 = vand.u32 %v2308, 4294901760
        %3781 = vmatmul.f32.gmra.mxu0 %v3780
        %v3782 = vpop.f32.mrf.mxu0
        %v3783 = vadd.f32 %v3628, %v3782
        %v3784 = vand.u32 %v2309, 4294901760
        %3785 = vmatmul.f32.gmra.mxu0 %v3784
        %v3786 = vpop.f32.mrf.mxu0
        %v3787 = vadd.f32 %v3634, %v3786
        %v3788 = vand.u32 %v2310, 4294901760
        %3789 = vmatmul.f32.gmra.mxu0 %v3788
        %v3790 = vpop.f32.mrf.mxu0
        %v3791 = vadd.f32 %v3640, %v3790
        %v3792 = vand.u32 %v2311, 4294901760
        %3793 = vmatmul.f32.gmra.mxu0 %v3792
        %v3794 = vpop.f32.mrf.mxu0
        %v3795 = vadd.f32 %v3646, %v3794
        %v3796 = vand.u32 %v2312, 4294901760
        %3797 = vmatmul.f32.gmra.mxu0 %v3796
        %v3798 = vpop.f32.mrf.mxu0
        %v3799 = vadd.f32 %v3652, %v3798
        %v3800 = vand.u32 %v2313, 4294901760
        %3801 = vmatmul.f32.gmra.mxu0 %v3800
        %v3802 = vpop.f32.mrf.mxu0
        %v3803 = vadd.f32 %v3658, %v3802
        %v3804 = vand.u32 %v2314, 4294901760
        %3805 = vmatmul.f32.gmra.mxu0 %v3804
        %v3806 = vpop.f32.mrf.mxu0
        %v3807 = vadd.f32 %v3664, %v3806
        %v3808 = vand.u32 %v2315, 4294901760
        %3809 = vmatmul.f32.gmra.mxu0 %v3808
        %v3810 = vpop.f32.mrf.mxu0
        %v3811 = vadd.f32 %v3670, %v3810
        %v3812 = vand.u32 %v2316, 4294901760
        %3813 = vmatmul.f32.gmra.mxu0 %v3812
        %v3814 = vpop.f32.mrf.mxu0
        %v3815 = vadd.f32 %v3676, %v3814
        %v3816 = vand.u32 %v2317, 4294901760
        %3817 = vmatmul.f32.gmra.mxu0 %v3816
        %v3818 = vpop.f32.mrf.mxu0
        %v3819 = vadd.f32 %v3682, %v3818
        %v3820 = vand.u32 %v2318, 4294901760
        %3821 = vmatmul.f32.gmra.mxu0 %v3820
        %v3822 = vpop.f32.mrf.mxu0
        %v3823 = vadd.f32 %v3688, %v3822
        %v3824 = vand.u32 %v2319, 4294901760
        %3825 = vmatmul.f32.gmra.mxu0 %v3824
        %v3826 = vpop.f32.mrf.mxu0
        %v3827 = vadd.f32 %v3694, %v3826
        %v3828 = vand.u32 %v2320, 4294901760
        %3829 = vmatmul.f32.gmra.mxu0 %v3828
        %v3830 = vpop.f32.mrf.mxu0
        %v3831 = vadd.f32 %v3700, %v3830
        %v3832 = vand.u32 %v2321, 4294901760
        %3833 = vmatmul.f32.gmra.mxu0 %v3832
        %v3834 = vpop.f32.mrf.mxu0
        %v3835 = vadd.f32 %v3706, %v3834
        %3836 = vdwg.mxu0
        %v3837 = vand.u32 %v2206, 4294901760
        %3838 = vmatpush.msra.mxu0 %v3837
        %v3839 = vand.u32 %v2202, 4294901760
        %3840 = vmatpush.msra.mxu0 %v3839
        %v3841 = vand.u32 %v2198, 4294901760
        %3842 = vmatpush.msra.mxu0 %v3841
        %v3843 = vand.u32 %v2194, 4294901760
        %3844 = vmatpush.msra.mxu0 %v3843
        %v3845 = vand.u32 %v2190, 4294901760
        %3846 = vmatpush.msra.mxu0 %v3845
        %v3847 = vand.u32 %v2186, 4294901760
        %3848 = vmatpush.msra.mxu0 %v3847
        %v3849 = vand.u32 %v2182, 4294901760
        %3850 = vmatpush.msra.mxu0 %v3849
        %v3851 = vand.u32 %v2178, 4294901760
        %3852 = vmatpush.msra.mxu0 %v3851
        %v3853 = vand.u32 %v2174, 4294901760
        %3854 = vmatpush.msra.mxu0 %v3853
        %v3855 = vand.u32 %v2170, 4294901760
        %3856 = vmatpush.msra.mxu0 %v3855
        %v3857 = vand.u32 %v2166, 4294901760
        %3858 = vmatpush.msra.mxu0 %v3857
        %v3859 = vand.u32 %v2162, 4294901760
        %3860 = vmatpush.msra.mxu0 %v3859
        %v3861 = vand.u32 %v2158, 4294901760
        %3862 = vmatpush.msra.mxu0 %v3861
        %v3863 = vand.u32 %v2154, 4294901760
        %3864 = vmatpush.msra.mxu0 %v3863
        %v3865 = vand.u32 %v2150, 4294901760
        %3866 = vmatpush.msra.mxu0 %v3865
        %v3867 = vand.u32 %v2146, 4294901760
        %3868 = vmatpush.msra.mxu0 %v3867
        %v3869 = vand.u32 %v2306, 4294901760
        %3870 = vmatmul.f32.gmra.mxu0 %v3869
        %v3871 = vpop.f32.mrf.mxu0
        %v3872 = vadd.f32 %v3775, %v3871
        %v3873 = vand.u32 %v2307, 4294901760
        %3874 = vmatmul.f32.gmra.mxu0 %v3873
        %v3875 = vpop.f32.mrf.mxu0
        %v3876 = vadd.f32 %v3779, %v3875
        %v3877 = vand.u32 %v2308, 4294901760
        %3878 = vmatmul.f32.gmra.mxu0 %v3877
        %v3879 = vpop.f32.mrf.mxu0
        %v3880 = vadd.f32 %v3783, %v3879
        %v3881 = vand.u32 %v2309, 4294901760
        %3882 = vmatmul.f32.gmra.mxu0 %v3881
        %v3883 = vpop.f32.mrf.mxu0
        %v3884 = vadd.f32 %v3787, %v3883
        %v3885 = vand.u32 %v2310, 4294901760
        %3886 = vmatmul.f32.gmra.mxu0 %v3885
        %v3887 = vpop.f32.mrf.mxu0
        %v3888 = vadd.f32 %v3791, %v3887
        %v3889 = vand.u32 %v2311, 4294901760
        %3890 = vmatmul.f32.gmra.mxu0 %v3889
        %v3891 = vpop.f32.mrf.mxu0
        %v3892 = vadd.f32 %v3795, %v3891
        %v3893 = vand.u32 %v2312, 4294901760
        %3894 = vmatmul.f32.gmra.mxu0 %v3893
        %v3895 = vpop.f32.mrf.mxu0
        %v3896 = vadd.f32 %v3799, %v3895
        %v3897 = vand.u32 %v2313, 4294901760
        %3898 = vmatmul.f32.gmra.mxu0 %v3897
        %v3899 = vpop.f32.mrf.mxu0
        %v3900 = vadd.f32 %v3803, %v3899
        %v3901 = vand.u32 %v2314, 4294901760
        %3902 = vmatmul.f32.gmra.mxu0 %v3901
        %v3903 = vpop.f32.mrf.mxu0
        %v3904 = vadd.f32 %v3807, %v3903
        %v3905 = vand.u32 %v2315, 4294901760
        %3906 = vmatmul.f32.gmra.mxu0 %v3905
        %v3907 = vpop.f32.mrf.mxu0
        %v3908 = vadd.f32 %v3811, %v3907
        %v3909 = vand.u32 %v2316, 4294901760
        %3910 = vmatmul.f32.gmra.mxu0 %v3909
        %v3911 = vpop.f32.mrf.mxu0
        %v3912 = vadd.f32 %v3815, %v3911
        %v3913 = vand.u32 %v2317, 4294901760
        %3914 = vmatmul.f32.gmra.mxu0 %v3913
        %v3915 = vpop.f32.mrf.mxu0
        %v3916 = vadd.f32 %v3819, %v3915
        %v3917 = vand.u32 %v2318, 4294901760
        %3918 = vmatmul.f32.gmra.mxu0 %v3917
        %v3919 = vpop.f32.mrf.mxu0
        %v3920 = vadd.f32 %v3823, %v3919
        %v3921 = vand.u32 %v2319, 4294901760
        %3922 = vmatmul.f32.gmra.mxu0 %v3921
        %v3923 = vpop.f32.mrf.mxu0
        %v3924 = vadd.f32 %v3827, %v3923
        %v3925 = vand.u32 %v2320, 4294901760
        %3926 = vmatmul.f32.gmra.mxu0 %v3925
        %v3927 = vpop.f32.mrf.mxu0
        %v3928 = vadd.f32 %v3831, %v3927
        %v3929 = vand.u32 %v2321, 4294901760
        %3930 = vmatmul.f32.gmra.mxu0 %v3929
        %v3931 = vpop.f32.mrf.mxu0
        %v3932 = vadd.f32 %v3835, %v3931
        %3933 = vdwg.mxu0
        %v3934 = vmul.f32 %v3066, %v3066
        %v3935 = vmul.f32 %v3070, %v3070
        %v3936 = vmul.f32 %v3074, %v3074
        %v3937 = vmul.f32 %v3078, %v3078
        %v3938 = vmul.f32 %v3082, %v3082
        %v3939 = vmul.f32 %v3086, %v3086
        %v3940 = vmul.f32 %v3090, %v3090
        %v3941 = vmul.f32 %v3094, %v3094
        %v3942 = vmul.f32 %v3098, %v3098
        %v3943 = vmul.f32 %v3102, %v3102
        %v3944 = vmul.f32 %v3106, %v3106
        %v3945 = vmul.f32 %v3110, %v3110
        %v3946 = vmul.f32 %v3114, %v3114
        %v3947 = vmul.f32 %v3118, %v3118
        %v3948 = vmul.f32 %v3122, %v3122
        %v3949 = vmul.f32 %v3126, %v3126
        %v3950 = vsub.f32 %v3934, %v3872
        %v3951 = vsub.f32 %v3935, %v3876
        %v3952 = vsub.f32 %v3936, %v3880
        %v3953 = vsub.f32 %v3937, %v3884
        %v3954 = vsub.f32 %v3938, %v3888
        %v3955 = vsub.f32 %v3939, %v3892
        %v3956 = vsub.f32 %v3940, %v3896
        %v3957 = vsub.f32 %v3941, %v3900
        %v3958 = vsub.f32 %v3942, %v3904
        %v3959 = vsub.f32 %v3943, %v3908
        %v3960 = vsub.f32 %v3944, %v3912
        %v3961 = vsub.f32 %v3945, %v3916
        %v3962 = vsub.f32 %v3946, %v3920
        %v3963 = vsub.f32 %v3947, %v3924
        %v3964 = vsub.f32 %v3948, %v3928
        %v3965 = vsub.f32 %v3949, %v3932
        %vm3966 = vcmask 64512
        %v3967 = vsel %vm3966, %v3950, 0.0
        %3968 = vadd.xlane.f32.xlu0 %v3967
        %v3969 = vpop.xlane.xlu0 %3968
        %v3970 = vsel %vm3966, %v3951, 0.0
        %3971 = vadd.xlane.f32.xlu0 %v3970
        %v3972 = vpop.xlane.xlu0 %3971
        %v3973 = vsel %vm3966, %v3952, 0.0
        %3974 = vadd.xlane.f32.xlu0 %v3973
        %v3975 = vpop.xlane.xlu0 %3974
        %v3976 = vsel %vm3966, %v3953, 0.0
        %3977 = vadd.xlane.f32.xlu0 %v3976
        %v3978 = vpop.xlane.xlu0 %3977
        %v3979 = vsel %vm3966, %v3954, 0.0
        %3980 = vadd.xlane.f32.xlu0 %v3979
        %v3981 = vpop.xlane.xlu0 %3980
        %v3982 = vsel %vm3966, %v3955, 0.0
        %3983 = vadd.xlane.f32.xlu0 %v3982
        %v3984 = vpop.xlane.xlu0 %3983
        %v3985 = vsel %vm3966, %v3956, 0.0
        %3986 = vadd.xlane.f32.xlu0 %v3985
        %v3987 = vpop.xlane.xlu0 %3986
        %v3988 = vsel %vm3966, %v3957, 0.0
        %3989 = vadd.xlane.f32.xlu0 %v3988
        %v3990 = vpop.xlane.xlu0 %3989
        %v3991 = vsel %vm3966, %v3958, 0.0
        %3992 = vadd.xlane.f32.xlu0 %v3991
        %v3993 = vpop.xlane.xlu0 %3992
        %v3994 = vsel %vm3966, %v3959, 0.0
        %3995 = vadd.xlane.f32.xlu0 %v3994
        %v3996 = vpop.xlane.xlu0 %3995
        %v3997 = vsel %vm3966, %v3960, 0.0
        %3998 = vadd.xlane.f32.xlu0 %v3997
        %v3999 = vpop.xlane.xlu0 %3998
        %v4000 = vsel %vm3966, %v3961, 0.0
        %4001 = vadd.xlane.f32.xlu0 %v4000
        %v4002 = vpop.xlane.xlu0 %4001
        %v4003 = vsel %vm3966, %v3962, 0.0
        %4004 = vadd.xlane.f32.xlu0 %v4003
        %v4005 = vpop.xlane.xlu0 %4004
        %v4006 = vsel %vm3966, %v3963, 0.0
        %4007 = vadd.xlane.f32.xlu0 %v4006
        %v4008 = vpop.xlane.xlu0 %4007
        %v4009 = vsel %vm3966, %v3964, 0.0
        %4010 = vadd.xlane.f32.xlu0 %v4009
        %v4011 = vpop.xlane.xlu0 %4010
        %v4012 = vsel %vm3966, %v3965, 0.0
        %4013 = vadd.xlane.f32.xlu0 %v4012
        %v4014 = vpop.xlane.xlu0 %4013
        %v4015 = vadd.f32 %v3969, %v3975
        %v4016 = vadd.f32 %v4015, %v3981
        %v4017 = vadd.f32 %v4016, %v3987
        %v4018 = vadd.f32 %v4017, %v3993
        %v4019 = vadd.f32 %v4018, %v3999
        %v4020 = vadd.f32 %v4019, %v4005
        %v4021 = vadd.f32 %v4020, %v4011
        %v4022 = vadd.f32 %v3972, %v3978
        %v4023 = vadd.f32 %v4022, %v3984
        %v4024 = vadd.f32 %v4023, %v3990
        %v4025 = vadd.f32 %v4024, %v3996
        %v4026 = vadd.f32 %v4025, %v4002
        %v4027 = vadd.f32 %v4026, %v4008
        %v4028 = vadd.f32 %v4027, %v4014
        %v4029 = vmul.f32 %v4021, 0.5
        %v4030 = vmul.f32 %v4028, 0.5
        %v4031 = vadd.f32 %v2306, %v2308
        %v4032 = vadd.f32 %v4031, %v2310
        %v4033 = vadd.f32 %v4032, %v2312
        %v4034 = vadd.f32 %v4033, %v2314
        %v4035 = vadd.f32 %v4034, %v2316
        %v4036 = vadd.f32 %v4035, %v2318
        %v4037 = vadd.f32 %v4036, %v2320
        %v4038 = vadd.f32 %v2307, %v2309
        %v4039 = vadd.f32 %v4038, %v2311
        %v4040 = vadd.f32 %v4039, %v2313
        %v4041 = vadd.f32 %v4040, %v2315
        %v4042 = vadd.f32 %v4041, %v2317
        %v4043 = vadd.f32 %v4042, %v2319
        %v4044 = vadd.f32 %v4043, %v2321
        %v4045 = vmul.f32 %v4029, 8.0
        %v4046 = vmul.f32 %v4030, 8.0
        %v4047 = vand.u32 %v531, 4294901760
        %4048 = vmatpush.msra.mxu0 %v4047
        %v4049 = vand.u32 %v530, 4294901760
        %4050 = vmatpush.msra.mxu0 %v4049
        %v4051 = vand.u32 %v529, 4294901760
        %4052 = vmatpush.msra.mxu0 %v4051
        %v4053 = vand.u32 %v528, 4294901760
        %4054 = vmatpush.msra.mxu0 %v4053
        %v4055 = vand.u32 %v527, 4294901760
        %4056 = vmatpush.msra.mxu0 %v4055
        %v4057 = vand.u32 %v526, 4294901760
        %4058 = vmatpush.msra.mxu0 %v4057
        %v4059 = vand.u32 %v525, 4294901760
        %4060 = vmatpush.msra.mxu0 %v4059
        %v4061 = vand.u32 %v524, 4294901760
        %4062 = vmatpush.msra.mxu0 %v4061
        %v4063 = vand.u32 %v523, 4294901760
        %4064 = vmatpush.msra.mxu0 %v4063
        %v4065 = vand.u32 %v522, 4294901760
        %4066 = vmatpush.msra.mxu0 %v4065
        %v4067 = vand.u32 %v521, 4294901760
        %4068 = vmatpush.msra.mxu0 %v4067
        %v4069 = vand.u32 %v520, 4294901760
        %4070 = vmatpush.msra.mxu0 %v4069
        %v4071 = vand.u32 %v519, 4294901760
        %4072 = vmatpush.msra.mxu0 %v4071
        %v4073 = vand.u32 %v518, 4294901760
        %4074 = vmatpush.msra.mxu0 %v4073
        %v4075 = vand.u32 %v517, 4294901760
        %4076 = vmatpush.msra.mxu0 %v4075
        %v4077 = vand.u32 %v516, 4294901760
        %4078 = vmatpush.msra.mxu0 %v4077
        %v4079 = vand.u32 %v4037, 4294901760
        %v4080 = vsub.f32 %v4037, %v4079
        %v4081 = vand.u32 %v4080, 4294901760
        %v4082 = vsub.f32 %v4080, %v4081
        %v4083 = vand.u32 %v4082, 4294901760
        %4084 = vmatmul.f32.gmra.mxu0 %v4083
        %v4085 = vpop.f32.mrf.mxu0
        %v4086 = vadd.f32 %v4045, %v4085
        %v4087 = vand.u32 %v4044, 4294901760
        %v4088 = vsub.f32 %v4044, %v4087
        %v4089 = vand.u32 %v4088, 4294901760
        %v4090 = vsub.f32 %v4088, %v4089
        %v4091 = vand.u32 %v4090, 4294901760
        %4092 = vmatmul.f32.gmra.mxu0 %v4091
        %v4093 = vpop.f32.mrf.mxu0
        %v4094 = vadd.f32 %v4046, %v4093
        %4095 = vdwg.mxu0
        %v4096 = vand.u32 %v531, 4294901760
        %v4097 = vsub.f32 %v531, %v4096
        %v4098 = vand.u32 %v4097, 4294901760
        %v4099 = vsub.f32 %v4097, %v4098
        %v4100 = vand.u32 %v4099, 4294901760
        %4101 = vmatpush.msra.mxu0 %v4100
        %v4102 = vand.u32 %v530, 4294901760
        %v4103 = vsub.f32 %v530, %v4102
        %v4104 = vand.u32 %v4103, 4294901760
        %v4105 = vsub.f32 %v4103, %v4104
        %v4106 = vand.u32 %v4105, 4294901760
        %4107 = vmatpush.msra.mxu0 %v4106
        %v4108 = vand.u32 %v529, 4294901760
        %v4109 = vsub.f32 %v529, %v4108
        %v4110 = vand.u32 %v4109, 4294901760
        %v4111 = vsub.f32 %v4109, %v4110
        %v4112 = vand.u32 %v4111, 4294901760
        %4113 = vmatpush.msra.mxu0 %v4112
        %v4114 = vand.u32 %v528, 4294901760
        %v4115 = vsub.f32 %v528, %v4114
        %v4116 = vand.u32 %v4115, 4294901760
        %v4117 = vsub.f32 %v4115, %v4116
        %v4118 = vand.u32 %v4117, 4294901760
        %4119 = vmatpush.msra.mxu0 %v4118
        %v4120 = vand.u32 %v527, 4294901760
        %v4121 = vsub.f32 %v527, %v4120
        %v4122 = vand.u32 %v4121, 4294901760
        %v4123 = vsub.f32 %v4121, %v4122
        %v4124 = vand.u32 %v4123, 4294901760
        %4125 = vmatpush.msra.mxu0 %v4124
        %v4126 = vand.u32 %v526, 4294901760
        %v4127 = vsub.f32 %v526, %v4126
        %v4128 = vand.u32 %v4127, 4294901760
        %v4129 = vsub.f32 %v4127, %v4128
        %v4130 = vand.u32 %v4129, 4294901760
        %4131 = vmatpush.msra.mxu0 %v4130
        %v4132 = vand.u32 %v525, 4294901760
        %v4133 = vsub.f32 %v525, %v4132
        %v4134 = vand.u32 %v4133, 4294901760
        %v4135 = vsub.f32 %v4133, %v4134
        %v4136 = vand.u32 %v4135, 4294901760
        %4137 = vmatpush.msra.mxu0 %v4136
        %v4138 = vand.u32 %v524, 4294901760
        %v4139 = vsub.f32 %v524, %v4138
        %v4140 = vand.u32 %v4139, 4294901760
        %v4141 = vsub.f32 %v4139, %v4140
        %v4142 = vand.u32 %v4141, 4294901760
        %4143 = vmatpush.msra.mxu0 %v4142
        %v4144 = vand.u32 %v523, 4294901760
        %v4145 = vsub.f32 %v523, %v4144
        %v4146 = vand.u32 %v4145, 4294901760
        %v4147 = vsub.f32 %v4145, %v4146
        %v4148 = vand.u32 %v4147, 4294901760
        %4149 = vmatpush.msra.mxu0 %v4148
        %v4150 = vand.u32 %v522, 4294901760
        %v4151 = vsub.f32 %v522, %v4150
        %v4152 = vand.u32 %v4151, 4294901760
        %v4153 = vsub.f32 %v4151, %v4152
        %v4154 = vand.u32 %v4153, 4294901760
        %4155 = vmatpush.msra.mxu0 %v4154
        %v4156 = vand.u32 %v521, 4294901760
        %v4157 = vsub.f32 %v521, %v4156
        %v4158 = vand.u32 %v4157, 4294901760
        %v4159 = vsub.f32 %v4157, %v4158
        %v4160 = vand.u32 %v4159, 4294901760
        %4161 = vmatpush.msra.mxu0 %v4160
        %v4162 = vand.u32 %v520, 4294901760
        %v4163 = vsub.f32 %v520, %v4162
        %v4164 = vand.u32 %v4163, 4294901760
        %v4165 = vsub.f32 %v4163, %v4164
        %v4166 = vand.u32 %v4165, 4294901760
        %4167 = vmatpush.msra.mxu0 %v4166
        %v4168 = vand.u32 %v519, 4294901760
        %v4169 = vsub.f32 %v519, %v4168
        %v4170 = vand.u32 %v4169, 4294901760
        %v4171 = vsub.f32 %v4169, %v4170
        %v4172 = vand.u32 %v4171, 4294901760
        %4173 = vmatpush.msra.mxu0 %v4172
        %v4174 = vand.u32 %v518, 4294901760
        %v4175 = vsub.f32 %v518, %v4174
        %v4176 = vand.u32 %v4175, 4294901760
        %v4177 = vsub.f32 %v4175, %v4176
        %v4178 = vand.u32 %v4177, 4294901760
        %4179 = vmatpush.msra.mxu0 %v4178
        %v4180 = vand.u32 %v517, 4294901760
        %v4181 = vsub.f32 %v517, %v4180
        %v4182 = vand.u32 %v4181, 4294901760
        %v4183 = vsub.f32 %v4181, %v4182
        %v4184 = vand.u32 %v4183, 4294901760
        %4185 = vmatpush.msra.mxu0 %v4184
        %v4186 = vand.u32 %v516, 4294901760
        %v4187 = vsub.f32 %v516, %v4186
        %v4188 = vand.u32 %v4187, 4294901760
        %v4189 = vsub.f32 %v4187, %v4188
        %v4190 = vand.u32 %v4189, 4294901760
        %4191 = vmatpush.msra.mxu0 %v4190
        %v4192 = vand.u32 %v4037, 4294901760
        %4193 = vmatmul.f32.gmra.mxu0 %v4192
        %v4194 = vpop.f32.mrf.mxu0
        %v4195 = vadd.f32 %v4086, %v4194
        %v4196 = vand.u32 %v4044, 4294901760
        %4197 = vmatmul.f32.gmra.mxu0 %v4196
        %v4198 = vpop.f32.mrf.mxu0
        %v4199 = vadd.f32 %v4094, %v4198
        %4200 = vdwg.mxu0
        %v4201 = vand.u32 %v531, 4294901760
        %v4202 = vsub.f32 %v531, %v4201
        %4203 = vmatpush.msra.mxu0 %v4202
        %v4204 = vand.u32 %v530, 4294901760
        %v4205 = vsub.f32 %v530, %v4204
        %4206 = vmatpush.msra.mxu0 %v4205
        %v4207 = vand.u32 %v529, 4294901760
        %v4208 = vsub.f32 %v529, %v4207
        %4209 = vmatpush.msra.mxu0 %v4208
        %v4210 = vand.u32 %v528, 4294901760
        %v4211 = vsub.f32 %v528, %v4210
        %4212 = vmatpush.msra.mxu0 %v4211
        %v4213 = vand.u32 %v527, 4294901760
        %v4214 = vsub.f32 %v527, %v4213
        %4215 = vmatpush.msra.mxu0 %v4214
        %v4216 = vand.u32 %v526, 4294901760
        %v4217 = vsub.f32 %v526, %v4216
        %4218 = vmatpush.msra.mxu0 %v4217
        %v4219 = vand.u32 %v525, 4294901760
        %v4220 = vsub.f32 %v525, %v4219
        %4221 = vmatpush.msra.mxu0 %v4220
        %v4222 = vand.u32 %v524, 4294901760
        %v4223 = vsub.f32 %v524, %v4222
        %4224 = vmatpush.msra.mxu0 %v4223
        %v4225 = vand.u32 %v523, 4294901760
        %v4226 = vsub.f32 %v523, %v4225
        %4227 = vmatpush.msra.mxu0 %v4226
        %v4228 = vand.u32 %v522, 4294901760
        %v4229 = vsub.f32 %v522, %v4228
        %4230 = vmatpush.msra.mxu0 %v4229
        %v4231 = vand.u32 %v521, 4294901760
        %v4232 = vsub.f32 %v521, %v4231
        %4233 = vmatpush.msra.mxu0 %v4232
        %v4234 = vand.u32 %v520, 4294901760
        %v4235 = vsub.f32 %v520, %v4234
        %4236 = vmatpush.msra.mxu0 %v4235
        %v4237 = vand.u32 %v519, 4294901760
        %v4238 = vsub.f32 %v519, %v4237
        %4239 = vmatpush.msra.mxu0 %v4238
        %v4240 = vand.u32 %v518, 4294901760
        %v4241 = vsub.f32 %v518, %v4240
        %4242 = vmatpush.msra.mxu0 %v4241
        %v4243 = vand.u32 %v517, 4294901760
        %v4244 = vsub.f32 %v517, %v4243
        %4245 = vmatpush.msra.mxu0 %v4244
        %v4246 = vand.u32 %v516, 4294901760
        %v4247 = vsub.f32 %v516, %v4246
        %4248 = vmatpush.msra.mxu0 %v4247
        %v4249 = vand.u32 %v4037, 4294901760
        %v4250 = vsub.f32 %v4037, %v4249
        %4251 = vmatmul.f32.gmra.mxu0 %v4250
        %v4252 = vpop.f32.mrf.mxu0
        %v4253 = vadd.f32 %v4195, %v4252
        %v4254 = vand.u32 %v4044, 4294901760
        %v4255 = vsub.f32 %v4044, %v4254
        %4256 = vmatmul.f32.gmra.mxu0 %v4255
        %v4257 = vpop.f32.mrf.mxu0
        %v4258 = vadd.f32 %v4199, %v4257
        %4259 = vdwg.mxu0
        %v4260 = vand.u32 %v531, 4294901760
        %4261 = vmatpush.msra.mxu0 %v4260
        %v4262 = vand.u32 %v530, 4294901760
        %4263 = vmatpush.msra.mxu0 %v4262
        %v4264 = vand.u32 %v529, 4294901760
        %4265 = vmatpush.msra.mxu0 %v4264
        %v4266 = vand.u32 %v528, 4294901760
        %4267 = vmatpush.msra.mxu0 %v4266
        %v4268 = vand.u32 %v527, 4294901760
        %4269 = vmatpush.msra.mxu0 %v4268
        %v4270 = vand.u32 %v526, 4294901760
        %4271 = vmatpush.msra.mxu0 %v4270
        %v4272 = vand.u32 %v525, 4294901760
        %4273 = vmatpush.msra.mxu0 %v4272
        %v4274 = vand.u32 %v524, 4294901760
        %4275 = vmatpush.msra.mxu0 %v4274
        %v4276 = vand.u32 %v523, 4294901760
        %4277 = vmatpush.msra.mxu0 %v4276
        %v4278 = vand.u32 %v522, 4294901760
        %4279 = vmatpush.msra.mxu0 %v4278
        %v4280 = vand.u32 %v521, 4294901760
        %4281 = vmatpush.msra.mxu0 %v4280
        %v4282 = vand.u32 %v520, 4294901760
        %4283 = vmatpush.msra.mxu0 %v4282
        %v4284 = vand.u32 %v519, 4294901760
        %4285 = vmatpush.msra.mxu0 %v4284
        %v4286 = vand.u32 %v518, 4294901760
        %4287 = vmatpush.msra.mxu0 %v4286
        %v4288 = vand.u32 %v517, 4294901760
        %4289 = vmatpush.msra.mxu0 %v4288
        %v4290 = vand.u32 %v516, 4294901760
        %4291 = vmatpush.msra.mxu0 %v4290
        %v4292 = vand.u32 %v4037, 4294901760
        %v4293 = vsub.f32 %v4037, %v4292
        %v4294 = vand.u32 %v4293, 4294901760
        %4295 = vmatmul.f32.gmra.mxu0 %v4294
        %v4296 = vpop.f32.mrf.mxu0
        %v4297 = vadd.f32 %v4253, %v4296
        %v4298 = vand.u32 %v4044, 4294901760
        %v4299 = vsub.f32 %v4044, %v4298
        %v4300 = vand.u32 %v4299, 4294901760
        %4301 = vmatmul.f32.gmra.mxu0 %v4300
        %v4302 = vpop.f32.mrf.mxu0
        %v4303 = vadd.f32 %v4258, %v4302
        %4304 = vdwg.mxu0
        %v4305 = vand.u32 %v531, 4294901760
        %v4306 = vsub.f32 %v531, %v4305
        %v4307 = vand.u32 %v4306, 4294901760
        %4308 = vmatpush.msra.mxu0 %v4307
        %v4309 = vand.u32 %v530, 4294901760
        %v4310 = vsub.f32 %v530, %v4309
        %v4311 = vand.u32 %v4310, 4294901760
        %4312 = vmatpush.msra.mxu0 %v4311
        %v4313 = vand.u32 %v529, 4294901760
        %v4314 = vsub.f32 %v529, %v4313
        %v4315 = vand.u32 %v4314, 4294901760
        %4316 = vmatpush.msra.mxu0 %v4315
        %v4317 = vand.u32 %v528, 4294901760
        %v4318 = vsub.f32 %v528, %v4317
        %v4319 = vand.u32 %v4318, 4294901760
        %4320 = vmatpush.msra.mxu0 %v4319
        %v4321 = vand.u32 %v527, 4294901760
        %v4322 = vsub.f32 %v527, %v4321
        %v4323 = vand.u32 %v4322, 4294901760
        %4324 = vmatpush.msra.mxu0 %v4323
        %v4325 = vand.u32 %v526, 4294901760
        %v4326 = vsub.f32 %v526, %v4325
        %v4327 = vand.u32 %v4326, 4294901760
        %4328 = vmatpush.msra.mxu0 %v4327
        %v4329 = vand.u32 %v525, 4294901760
        %v4330 = vsub.f32 %v525, %v4329
        %v4331 = vand.u32 %v4330, 4294901760
        %4332 = vmatpush.msra.mxu0 %v4331
        %v4333 = vand.u32 %v524, 4294901760
        %v4334 = vsub.f32 %v524, %v4333
        %v4335 = vand.u32 %v4334, 4294901760
        %4336 = vmatpush.msra.mxu0 %v4335
        %v4337 = vand.u32 %v523, 4294901760
        %v4338 = vsub.f32 %v523, %v4337
        %v4339 = vand.u32 %v4338, 4294901760
        %4340 = vmatpush.msra.mxu0 %v4339
        %v4341 = vand.u32 %v522, 4294901760
        %v4342 = vsub.f32 %v522, %v4341
        %v4343 = vand.u32 %v4342, 4294901760
        %4344 = vmatpush.msra.mxu0 %v4343
        %v4345 = vand.u32 %v521, 4294901760
        %v4346 = vsub.f32 %v521, %v4345
        %v4347 = vand.u32 %v4346, 4294901760
        %4348 = vmatpush.msra.mxu0 %v4347
        %v4349 = vand.u32 %v520, 4294901760
        %v4350 = vsub.f32 %v520, %v4349
        %v4351 = vand.u32 %v4350, 4294901760
        %4352 = vmatpush.msra.mxu0 %v4351
        %v4353 = vand.u32 %v519, 4294901760
        %v4354 = vsub.f32 %v519, %v4353
        %v4355 = vand.u32 %v4354, 4294901760
        %4356 = vmatpush.msra.mxu0 %v4355
        %v4357 = vand.u32 %v518, 4294901760
        %v4358 = vsub.f32 %v518, %v4357
        %v4359 = vand.u32 %v4358, 4294901760
        %4360 = vmatpush.msra.mxu0 %v4359
        %v4361 = vand.u32 %v517, 4294901760
        %v4362 = vsub.f32 %v517, %v4361
        %v4363 = vand.u32 %v4362, 4294901760
        %4364 = vmatpush.msra.mxu0 %v4363
        %v4365 = vand.u32 %v516, 4294901760
        %v4366 = vsub.f32 %v516, %v4365
        %v4367 = vand.u32 %v4366, 4294901760
        %4368 = vmatpush.msra.mxu0 %v4367
        %v4369 = vand.u32 %v4037, 4294901760
        %4370 = vmatmul.f32.gmra.mxu0 %v4369
        %v4371 = vpop.f32.mrf.mxu0
        %v4372 = vadd.f32 %v4297, %v4371
        %v4373 = vand.u32 %v4044, 4294901760
        %4374 = vmatmul.f32.gmra.mxu0 %v4373
        %v4375 = vpop.f32.mrf.mxu0
        %v4376 = vadd.f32 %v4303, %v4375
        %4377 = vdwg.mxu0
        %v4378 = vand.u32 %v531, 4294901760
        %4379 = vmatpush.msra.mxu0 %v4378
        %v4380 = vand.u32 %v530, 4294901760
        %4381 = vmatpush.msra.mxu0 %v4380
        %v4382 = vand.u32 %v529, 4294901760
        %4383 = vmatpush.msra.mxu0 %v4382
        %v4384 = vand.u32 %v528, 4294901760
        %4385 = vmatpush.msra.mxu0 %v4384
        %v4386 = vand.u32 %v527, 4294901760
        %4387 = vmatpush.msra.mxu0 %v4386
        %v4388 = vand.u32 %v526, 4294901760
        %4389 = vmatpush.msra.mxu0 %v4388
        %v4390 = vand.u32 %v525, 4294901760
        %4391 = vmatpush.msra.mxu0 %v4390
        %v4392 = vand.u32 %v524, 4294901760
        %4393 = vmatpush.msra.mxu0 %v4392
        %v4394 = vand.u32 %v523, 4294901760
        %4395 = vmatpush.msra.mxu0 %v4394
        %v4396 = vand.u32 %v522, 4294901760
        %4397 = vmatpush.msra.mxu0 %v4396
        %v4398 = vand.u32 %v521, 4294901760
        %4399 = vmatpush.msra.mxu0 %v4398
        %v4400 = vand.u32 %v520, 4294901760
        %4401 = vmatpush.msra.mxu0 %v4400
        %v4402 = vand.u32 %v519, 4294901760
        %4403 = vmatpush.msra.mxu0 %v4402
        %v4404 = vand.u32 %v518, 4294901760
        %4405 = vmatpush.msra.mxu0 %v4404
        %v4406 = vand.u32 %v517, 4294901760
        %4407 = vmatpush.msra.mxu0 %v4406
        %v4408 = vand.u32 %v516, 4294901760
        %4409 = vmatpush.msra.mxu0 %v4408
        %v4410 = vand.u32 %v4037, 4294901760
        %4411 = vmatmul.f32.gmra.mxu0 %v4410
        %v4412 = vpop.f32.mrf.mxu0
        %v4413 = vadd.f32 %v4372, %v4412
        %v4414 = vand.u32 %v4044, 4294901760
        %4415 = vmatmul.f32.gmra.mxu0 %v4414
        %v4416 = vpop.f32.mrf.mxu0
        %v4417 = vadd.f32 %v4376, %v4416
        %4418 = vdwg.mxu0
        %v4419 = vld [vmem:[%s507] sm:$0xff]
        %v4420 = vld [vmem:[%s507 + $0x8] sm:$0xff]
        %4421 = vset.pattern.permute.xlu0 0
        %4422 = vperm.xlu0 %4421, %v4419
        %v4423 = vpop.permute.xlu0 %4422
        %4424 = vset.pattern.permute.xlu0 0
        %4425 = vperm.xlu0 %4424, %v4420
        %v4426 = vpop.permute.xlu0 %4425
        %vm4427 = vcmp.eq.s32.totalorder %v4423, %v2209
        %vm4428 = vcmp.eq.s32.totalorder %v4426, %v2209
        %v4429 = vsel %vm4427, 1, 0
        %v4430 = vsel %vm4428, 1, 0
        %v4431 = vcvt.s32.f32 %v4429
        %v4432 = vcvt.s32.f32 %v4430
        %v4433 = vld [vmem:[%s464] sm:$0xff]
        %v4434 = vld [vmem:[%s464 + $0x8] sm:$0xff]
        %v4435 = vld [vmem:[%s464 + $0x10] sm:$0xff]
        %v4436 = vld [vmem:[%s464 + $0x18] sm:$0xff]
        %v4437 = vld [vmem:[%s464 + $0x20] sm:$0xff]
        %v4438 = vld [vmem:[%s464 + $0x28] sm:$0xff]
        %v4439 = vld [vmem:[%s464 + $0x30] sm:$0xff]
        %v4440 = vld [vmem:[%s464 + $0x38] sm:$0xff]
        %v4441 = vld [vmem:[%s464 + $0x40] sm:$0xff]
        %v4442 = vld [vmem:[%s464 + $0x48] sm:$0xff]
        %v4443 = vld [vmem:[%s464 + $0x50] sm:$0xff]
        %v4444 = vld [vmem:[%s464 + $0x58] sm:$0xff]
        %v4445 = vld [vmem:[%s464 + $0x60] sm:$0xff]
        %v4446 = vld [vmem:[%s464 + $0x68] sm:$0xff]
        %v4447 = vld [vmem:[%s464 + $0x70] sm:$0xff]
        %v4448 = vld [vmem:[%s464 + $0x78] sm:$0xff]
        %4449 = vset.pattern.permute.xlu0 0
        %4450 = vperm.xlu0 %4449, %v4433
        %v4451 = vpop.permute.xlu0 %4450
        %4452 = vset.pattern.permute.xlu0 0
        %4453 = vperm.xlu0 %4452, %v4434
        %v4454 = vpop.permute.xlu0 %4453
        %4455 = vset.pattern.permute.xlu0 0
        %4456 = vperm.xlu0 %4455, %v4435
        %v4457 = vpop.permute.xlu0 %4456
        %4458 = vset.pattern.permute.xlu0 0
        %4459 = vperm.xlu0 %4458, %v4436
        %v4460 = vpop.permute.xlu0 %4459
        %4461 = vset.pattern.permute.xlu0 0
        %4462 = vperm.xlu0 %4461, %v4437
        %v4463 = vpop.permute.xlu0 %4462
        %4464 = vset.pattern.permute.xlu0 0
        %4465 = vperm.xlu0 %4464, %v4438
        %v4466 = vpop.permute.xlu0 %4465
        %4467 = vset.pattern.permute.xlu0 0
        %4468 = vperm.xlu0 %4467, %v4439
        %v4469 = vpop.permute.xlu0 %4468
        %4470 = vset.pattern.permute.xlu0 0
        %4471 = vperm.xlu0 %4470, %v4440
        %v4472 = vpop.permute.xlu0 %4471
        %4473 = vset.pattern.permute.xlu0 0
        %4474 = vperm.xlu0 %4473, %v4441
        %v4475 = vpop.permute.xlu0 %4474
        %4476 = vset.pattern.permute.xlu0 0
        %4477 = vperm.xlu0 %4476, %v4442
        %v4478 = vpop.permute.xlu0 %4477
        %4479 = vset.pattern.permute.xlu0 0
        %4480 = vperm.xlu0 %4479, %v4443
        %v4481 = vpop.permute.xlu0 %4480
        %4482 = vset.pattern.permute.xlu0 0
        %4483 = vperm.xlu0 %4482, %v4444
        %v4484 = vpop.permute.xlu0 %4483
        %4485 = vset.pattern.permute.xlu0 0
        %4486 = vperm.xlu0 %4485, %v4445
        %v4487 = vpop.permute.xlu0 %4486
        %4488 = vset.pattern.permute.xlu0 0
        %4489 = vperm.xlu0 %4488, %v4446
        %v4490 = vpop.permute.xlu0 %4489
        %4491 = vset.pattern.permute.xlu0 0
        %4492 = vperm.xlu0 %4491, %v4447
        %v4493 = vpop.permute.xlu0 %4492
        %4494 = vset.pattern.permute.xlu0 0
        %4495 = vperm.xlu0 %4494, %v4448
        %v4496 = vpop.permute.xlu0 %4495
        %vm4497 = vcmp.eq.s32.totalorder %v4451, %v2209
        %vm4498 = vcmp.eq.s32.totalorder %v4454, %v2209
        %vm4499 = vcmp.eq.s32.totalorder %v4457, %v2209
        %vm4500 = vcmp.eq.s32.totalorder %v4460, %v2209
        %vm4501 = vcmp.eq.s32.totalorder %v4463, %v2209
        %vm4502 = vcmp.eq.s32.totalorder %v4466, %v2209
        %vm4503 = vcmp.eq.s32.totalorder %v4469, %v2209
        %vm4504 = vcmp.eq.s32.totalorder %v4472, %v2209
        %vm4505 = vcmp.eq.s32.totalorder %v4475, %v2209
        %vm4506 = vcmp.eq.s32.totalorder %v4478, %v2209
        %vm4507 = vcmp.eq.s32.totalorder %v4481, %v2209
        %vm4508 = vcmp.eq.s32.totalorder %v4484, %v2209
        %vm4509 = vcmp.eq.s32.totalorder %v4487, %v2209
        %vm4510 = vcmp.eq.s32.totalorder %v4490, %v2209
        %vm4511 = vcmp.eq.s32.totalorder %v4493, %v2209
        %vm4512 = vcmp.eq.s32.totalorder %v4496, %v2209
        %v4513 = vsel %vm4497, 1, 0
        %v4514 = vsel %vm4498, 1, 0
        %v4515 = vsel %vm4499, 1, 0
        %v4516 = vsel %vm4500, 1, 0
        %v4517 = vsel %vm4501, 1, 0
        %v4518 = vsel %vm4502, 1, 0
        %v4519 = vsel %vm4503, 1, 0
        %v4520 = vsel %vm4504, 1, 0
        %v4521 = vsel %vm4505, 1, 0
        %v4522 = vsel %vm4506, 1, 0
        %v4523 = vsel %vm4507, 1, 0
        %v4524 = vsel %vm4508, 1, 0
        %v4525 = vsel %vm4509, 1, 0
        %v4526 = vsel %vm4510, 1, 0
        %v4527 = vsel %vm4511, 1, 0
        %v4528 = vsel %vm4512, 1, 0
        %v4529 = vcvt.s32.f32 %v4513
        %v4530 = vcvt.s32.f32 %v4514
        %v4531 = vcvt.s32.f32 %v4515
        %v4532 = vcvt.s32.f32 %v4516
        %v4533 = vcvt.s32.f32 %v4517
        %v4534 = vcvt.s32.f32 %v4518
        %v4535 = vcvt.s32.f32 %v4519
        %v4536 = vcvt.s32.f32 %v4520
        %v4537 = vcvt.s32.f32 %v4521
        %v4538 = vcvt.s32.f32 %v4522
        %v4539 = vcvt.s32.f32 %v4523
        %v4540 = vcvt.s32.f32 %v4524
        %v4541 = vcvt.s32.f32 %v4525
        %v4542 = vcvt.s32.f32 %v4526
        %v4543 = vcvt.s32.f32 %v4527
        %v4544 = vcvt.s32.f32 %v4528
        %v4545 = vadd.f32 %v4529, %v4531
        %v4546 = vadd.f32 %v4545, %v4533
        %v4547 = vadd.f32 %v4546, %v4535
        %v4548 = vadd.f32 %v4547, %v4537
        %v4549 = vadd.f32 %v4548, %v4539
        %v4550 = vadd.f32 %v4549, %v4541
        %v4551 = vadd.f32 %v4550, %v4543
        %v4552 = vadd.f32 %v4530, %v4532
        %v4553 = vadd.f32 %v4552, %v4534
        %v4554 = vadd.f32 %v4553, %v4536
        %v4555 = vadd.f32 %v4554, %v4538
        %v4556 = vadd.f32 %v4555, %v4540
        %v4557 = vadd.f32 %v4556, %v4542
        %v4558 = vadd.f32 %v4557, %v4544
        %v4559 = vand.u32 %v547, 4294901760
        %4560 = vmatpush.msra.mxu0 %v4559
        %v4561 = vand.u32 %v546, 4294901760
        %4562 = vmatpush.msra.mxu0 %v4561
        %v4563 = vand.u32 %v545, 4294901760
        %4564 = vmatpush.msra.mxu0 %v4563
        %v4565 = vand.u32 %v544, 4294901760
        %4566 = vmatpush.msra.mxu0 %v4565
        %v4567 = vand.u32 %v543, 4294901760
        %4568 = vmatpush.msra.mxu0 %v4567
        %v4569 = vand.u32 %v542, 4294901760
        %4570 = vmatpush.msra.mxu0 %v4569
        %v4571 = vand.u32 %v541, 4294901760
        %4572 = vmatpush.msra.mxu0 %v4571
        %v4573 = vand.u32 %v540, 4294901760
        %4574 = vmatpush.msra.mxu0 %v4573
        %v4575 = vand.u32 %v539, 4294901760
        %4576 = vmatpush.msra.mxu0 %v4575
        %v4577 = vand.u32 %v538, 4294901760
        %4578 = vmatpush.msra.mxu0 %v4577
        %v4579 = vand.u32 %v537, 4294901760
        %4580 = vmatpush.msra.mxu0 %v4579
        %v4581 = vand.u32 %v536, 4294901760
        %4582 = vmatpush.msra.mxu0 %v4581
        %v4583 = vand.u32 %v535, 4294901760
        %4584 = vmatpush.msra.mxu0 %v4583
        %v4585 = vand.u32 %v534, 4294901760
        %4586 = vmatpush.msra.mxu0 %v4585
        %v4587 = vand.u32 %v533, 4294901760
        %4588 = vmatpush.msra.mxu0 %v4587
        %v4589 = vand.u32 %v532, 4294901760
        %4590 = vmatpush.msra.mxu0 %v4589
        %v4591 = vand.u32 %v4431, 4294901760
        %v4592 = vsub.f32 %v4431, %v4591
        %v4593 = vand.u32 %v4592, 4294901760
        %v4594 = vsub.f32 %v4592, %v4593
        %v4595 = vand.u32 %v4594, 4294901760
        %4596 = vmatmul.f32.gmra.mxu0 %v4595
        %v4597 = vpop.f32.mrf.mxu0
        %v4598 = vadd.f32 0.0, %v4597
        %v4599 = vand.u32 %v4432, 4294901760
        %v4600 = vsub.f32 %v4432, %v4599
        %v4601 = vand.u32 %v4600, 4294901760
        %v4602 = vsub.f32 %v4600, %v4601
        %v4603 = vand.u32 %v4602, 4294901760
        %4604 = vmatmul.f32.gmra.mxu0 %v4603
        %v4605 = vpop.f32.mrf.mxu0
        %v4606 = vadd.f32 0.0, %v4605
        %4607 = vdwg.mxu0
        %v4608 = vand.u32 %v547, 4294901760
        %v4609 = vsub.f32 %v547, %v4608
        %v4610 = vand.u32 %v4609, 4294901760
        %v4611 = vsub.f32 %v4609, %v4610
        %v4612 = vand.u32 %v4611, 4294901760
        %4613 = vmatpush.msra.mxu0 %v4612
        %v4614 = vand.u32 %v546, 4294901760
        %v4615 = vsub.f32 %v546, %v4614
        %v4616 = vand.u32 %v4615, 4294901760
        %v4617 = vsub.f32 %v4615, %v4616
        %v4618 = vand.u32 %v4617, 4294901760
        %4619 = vmatpush.msra.mxu0 %v4618
        %v4620 = vand.u32 %v545, 4294901760
        %v4621 = vsub.f32 %v545, %v4620
        %v4622 = vand.u32 %v4621, 4294901760
        %v4623 = vsub.f32 %v4621, %v4622
        %v4624 = vand.u32 %v4623, 4294901760
        %4625 = vmatpush.msra.mxu0 %v4624
        %v4626 = vand.u32 %v544, 4294901760
        %v4627 = vsub.f32 %v544, %v4626
        %v4628 = vand.u32 %v4627, 4294901760
        %v4629 = vsub.f32 %v4627, %v4628
        %v4630 = vand.u32 %v4629, 4294901760
        %4631 = vmatpush.msra.mxu0 %v4630
        %v4632 = vand.u32 %v543, 4294901760
        %v4633 = vsub.f32 %v543, %v4632
        %v4634 = vand.u32 %v4633, 4294901760
        %v4635 = vsub.f32 %v4633, %v4634
        %v4636 = vand.u32 %v4635, 4294901760
        %4637 = vmatpush.msra.mxu0 %v4636
        %v4638 = vand.u32 %v542, 4294901760
        %v4639 = vsub.f32 %v542, %v4638
        %v4640 = vand.u32 %v4639, 4294901760
        %v4641 = vsub.f32 %v4639, %v4640
        %v4642 = vand.u32 %v4641, 4294901760
        %4643 = vmatpush.msra.mxu0 %v4642
        %v4644 = vand.u32 %v541, 4294901760
        %v4645 = vsub.f32 %v541, %v4644
        %v4646 = vand.u32 %v4645, 4294901760
        %v4647 = vsub.f32 %v4645, %v4646
        %v4648 = vand.u32 %v4647, 4294901760
        %4649 = vmatpush.msra.mxu0 %v4648
        %v4650 = vand.u32 %v540, 4294901760
        %v4651 = vsub.f32 %v540, %v4650
        %v4652 = vand.u32 %v4651, 4294901760
        %v4653 = vsub.f32 %v4651, %v4652
        %v4654 = vand.u32 %v4653, 4294901760
        %4655 = vmatpush.msra.mxu0 %v4654
        %v4656 = vand.u32 %v539, 4294901760
        %v4657 = vsub.f32 %v539, %v4656
        %v4658 = vand.u32 %v4657, 4294901760
        %v4659 = vsub.f32 %v4657, %v4658
        %v4660 = vand.u32 %v4659, 4294901760
        %4661 = vmatpush.msra.mxu0 %v4660
        %v4662 = vand.u32 %v538, 4294901760
        %v4663 = vsub.f32 %v538, %v4662
        %v4664 = vand.u32 %v4663, 4294901760
        %v4665 = vsub.f32 %v4663, %v4664
        %v4666 = vand.u32 %v4665, 4294901760
        %4667 = vmatpush.msra.mxu0 %v4666
        %v4668 = vand.u32 %v537, 4294901760
        %v4669 = vsub.f32 %v537, %v4668
        %v4670 = vand.u32 %v4669, 4294901760
        %v4671 = vsub.f32 %v4669, %v4670
        %v4672 = vand.u32 %v4671, 4294901760
        %4673 = vmatpush.msra.mxu0 %v4672
        %v4674 = vand.u32 %v536, 4294901760
        %v4675 = vsub.f32 %v536, %v4674
        %v4676 = vand.u32 %v4675, 4294901760
        %v4677 = vsub.f32 %v4675, %v4676
        %v4678 = vand.u32 %v4677, 4294901760
        %4679 = vmatpush.msra.mxu0 %v4678
        %v4680 = vand.u32 %v535, 4294901760
        %v4681 = vsub.f32 %v535, %v4680
        %v4682 = vand.u32 %v4681, 4294901760
        %v4683 = vsub.f32 %v4681, %v4682
        %v4684 = vand.u32 %v4683, 4294901760
        %4685 = vmatpush.msra.mxu0 %v4684
        %v4686 = vand.u32 %v534, 4294901760
        %v4687 = vsub.f32 %v534, %v4686
        %v4688 = vand.u32 %v4687, 4294901760
        %v4689 = vsub.f32 %v4687, %v4688
        %v4690 = vand.u32 %v4689, 4294901760
        %4691 = vmatpush.msra.mxu0 %v4690
        %v4692 = vand.u32 %v533, 4294901760
        %v4693 = vsub.f32 %v533, %v4692
        %v4694 = vand.u32 %v4693, 4294901760
        %v4695 = vsub.f32 %v4693, %v4694
        %v4696 = vand.u32 %v4695, 4294901760
        %4697 = vmatpush.msra.mxu0 %v4696
        %v4698 = vand.u32 %v532, 4294901760
        %v4699 = vsub.f32 %v532, %v4698
        %v4700 = vand.u32 %v4699, 4294901760
        %v4701 = vsub.f32 %v4699, %v4700
        %v4702 = vand.u32 %v4701, 4294901760
        %4703 = vmatpush.msra.mxu0 %v4702
        %v4704 = vand.u32 %v4431, 4294901760
        %4705 = vmatmul.f32.gmra.mxu0 %v4704
        %v4706 = vpop.f32.mrf.mxu0
        %v4707 = vadd.f32 %v4598, %v4706
        %v4708 = vand.u32 %v4432, 4294901760
        %4709 = vmatmul.f32.gmra.mxu0 %v4708
        %v4710 = vpop.f32.mrf.mxu0
        %v4711 = vadd.f32 %v4606, %v4710
        %4712 = vdwg.mxu0
        %v4713 = vand.u32 %v547, 4294901760
        %v4714 = vsub.f32 %v547, %v4713
        %4715 = vmatpush.msra.mxu0 %v4714
        %v4716 = vand.u32 %v546, 4294901760
        %v4717 = vsub.f32 %v546, %v4716
        %4718 = vmatpush.msra.mxu0 %v4717
        %v4719 = vand.u32 %v545, 4294901760
        %v4720 = vsub.f32 %v545, %v4719
        %4721 = vmatpush.msra.mxu0 %v4720
        %v4722 = vand.u32 %v544, 4294901760
        %v4723 = vsub.f32 %v544, %v4722
        %4724 = vmatpush.msra.mxu0 %v4723
        %v4725 = vand.u32 %v543, 4294901760
        %v4726 = vsub.f32 %v543, %v4725
        %4727 = vmatpush.msra.mxu0 %v4726
        %v4728 = vand.u32 %v542, 4294901760
        %v4729 = vsub.f32 %v542, %v4728
        %4730 = vmatpush.msra.mxu0 %v4729
        %v4731 = vand.u32 %v541, 4294901760
        %v4732 = vsub.f32 %v541, %v4731
        %4733 = vmatpush.msra.mxu0 %v4732
        %v4734 = vand.u32 %v540, 4294901760
        %v4735 = vsub.f32 %v540, %v4734
        %4736 = vmatpush.msra.mxu0 %v4735
        %v4737 = vand.u32 %v539, 4294901760
        %v4738 = vsub.f32 %v539, %v4737
        %4739 = vmatpush.msra.mxu0 %v4738
        %v4740 = vand.u32 %v538, 4294901760
        %v4741 = vsub.f32 %v538, %v4740
        %4742 = vmatpush.msra.mxu0 %v4741
        %v4743 = vand.u32 %v537, 4294901760
        %v4744 = vsub.f32 %v537, %v4743
        %4745 = vmatpush.msra.mxu0 %v4744
        %v4746 = vand.u32 %v536, 4294901760
        %v4747 = vsub.f32 %v536, %v4746
        %4748 = vmatpush.msra.mxu0 %v4747
        %v4749 = vand.u32 %v535, 4294901760
        %v4750 = vsub.f32 %v535, %v4749
        %4751 = vmatpush.msra.mxu0 %v4750
        %v4752 = vand.u32 %v534, 4294901760
        %v4753 = vsub.f32 %v534, %v4752
        %4754 = vmatpush.msra.mxu0 %v4753
        %v4755 = vand.u32 %v533, 4294901760
        %v4756 = vsub.f32 %v533, %v4755
        %4757 = vmatpush.msra.mxu0 %v4756
        %v4758 = vand.u32 %v532, 4294901760
        %v4759 = vsub.f32 %v532, %v4758
        %4760 = vmatpush.msra.mxu0 %v4759
        %v4761 = vand.u32 %v4431, 4294901760
        %v4762 = vsub.f32 %v4431, %v4761
        %4763 = vmatmul.f32.gmra.mxu0 %v4762
        %v4764 = vpop.f32.mrf.mxu0
        %v4765 = vadd.f32 %v4707, %v4764
        %v4766 = vand.u32 %v4432, 4294901760
        %v4767 = vsub.f32 %v4432, %v4766
        %4768 = vmatmul.f32.gmra.mxu0 %v4767
        %v4769 = vpop.f32.mrf.mxu0
        %v4770 = vadd.f32 %v4711, %v4769
        %4771 = vdwg.mxu0
        %v4772 = vand.u32 %v547, 4294901760
        %4773 = vmatpush.msra.mxu0 %v4772
        %v4774 = vand.u32 %v546, 4294901760
        %4775 = vmatpush.msra.mxu0 %v4774
        %v4776 = vand.u32 %v545, 4294901760
        %4777 = vmatpush.msra.mxu0 %v4776
        %v4778 = vand.u32 %v544, 4294901760
        %4779 = vmatpush.msra.mxu0 %v4778
        %v4780 = vand.u32 %v543, 4294901760
        %4781 = vmatpush.msra.mxu0 %v4780
        %v4782 = vand.u32 %v542, 4294901760
        %4783 = vmatpush.msra.mxu0 %v4782
        %v4784 = vand.u32 %v541, 4294901760
        %4785 = vmatpush.msra.mxu0 %v4784
        %v4786 = vand.u32 %v540, 4294901760
        %4787 = vmatpush.msra.mxu0 %v4786
        %v4788 = vand.u32 %v539, 4294901760
        %4789 = vmatpush.msra.mxu0 %v4788
        %v4790 = vand.u32 %v538, 4294901760
        %4791 = vmatpush.msra.mxu0 %v4790
        %v4792 = vand.u32 %v537, 4294901760
        %4793 = vmatpush.msra.mxu0 %v4792
        %v4794 = vand.u32 %v536, 4294901760
        %4795 = vmatpush.msra.mxu0 %v4794
        %v4796 = vand.u32 %v535, 4294901760
        %4797 = vmatpush.msra.mxu0 %v4796
        %v4798 = vand.u32 %v534, 4294901760
        %4799 = vmatpush.msra.mxu0 %v4798
        %v4800 = vand.u32 %v533, 4294901760
        %4801 = vmatpush.msra.mxu0 %v4800
        %v4802 = vand.u32 %v532, 4294901760
        %4803 = vmatpush.msra.mxu0 %v4802
        %v4804 = vand.u32 %v4431, 4294901760
        %v4805 = vsub.f32 %v4431, %v4804
        %v4806 = vand.u32 %v4805, 4294901760
        %4807 = vmatmul.f32.gmra.mxu0 %v4806
        %v4808 = vpop.f32.mrf.mxu0
        %v4809 = vadd.f32 %v4765, %v4808
        %v4810 = vand.u32 %v4432, 4294901760
        %v4811 = vsub.f32 %v4432, %v4810
        %v4812 = vand.u32 %v4811, 4294901760
        %4813 = vmatmul.f32.gmra.mxu0 %v4812
        %v4814 = vpop.f32.mrf.mxu0
        %v4815 = vadd.f32 %v4770, %v4814
        %4816 = vdwg.mxu0
        %v4817 = vand.u32 %v547, 4294901760
        %v4818 = vsub.f32 %v547, %v4817
        %v4819 = vand.u32 %v4818, 4294901760
        %4820 = vmatpush.msra.mxu0 %v4819
        %v4821 = vand.u32 %v546, 4294901760
        %v4822 = vsub.f32 %v546, %v4821
        %v4823 = vand.u32 %v4822, 4294901760
        %4824 = vmatpush.msra.mxu0 %v4823
        %v4825 = vand.u32 %v545, 4294901760
        %v4826 = vsub.f32 %v545, %v4825
        %v4827 = vand.u32 %v4826, 4294901760
        %4828 = vmatpush.msra.mxu0 %v4827
        %v4829 = vand.u32 %v544, 4294901760
        %v4830 = vsub.f32 %v544, %v4829
        %v4831 = vand.u32 %v4830, 4294901760
        %4832 = vmatpush.msra.mxu0 %v4831
        %v4833 = vand.u32 %v543, 4294901760
        %v4834 = vsub.f32 %v543, %v4833
        %v4835 = vand.u32 %v4834, 4294901760
        %4836 = vmatpush.msra.mxu0 %v4835
        %v4837 = vand.u32 %v542, 4294901760
        %v4838 = vsub.f32 %v542, %v4837
        %v4839 = vand.u32 %v4838, 4294901760
        %4840 = vmatpush.msra.mxu0 %v4839
        %v4841 = vand.u32 %v541, 4294901760
        %v4842 = vsub.f32 %v541, %v4841
        %v4843 = vand.u32 %v4842, 4294901760
        %4844 = vmatpush.msra.mxu0 %v4843
        %v4845 = vand.u32 %v540, 4294901760
        %v4846 = vsub.f32 %v540, %v4845
        %v4847 = vand.u32 %v4846, 4294901760
        %4848 = vmatpush.msra.mxu0 %v4847
        %v4849 = vand.u32 %v539, 4294901760
        %v4850 = vsub.f32 %v539, %v4849
        %v4851 = vand.u32 %v4850, 4294901760
        %4852 = vmatpush.msra.mxu0 %v4851
        %v4853 = vand.u32 %v538, 4294901760
        %v4854 = vsub.f32 %v538, %v4853
        %v4855 = vand.u32 %v4854, 4294901760
        %4856 = vmatpush.msra.mxu0 %v4855
        %v4857 = vand.u32 %v537, 4294901760
        %v4858 = vsub.f32 %v537, %v4857
        %v4859 = vand.u32 %v4858, 4294901760
        %4860 = vmatpush.msra.mxu0 %v4859
        %v4861 = vand.u32 %v536, 4294901760
        %v4862 = vsub.f32 %v536, %v4861
        %v4863 = vand.u32 %v4862, 4294901760
        %4864 = vmatpush.msra.mxu0 %v4863
        %v4865 = vand.u32 %v535, 4294901760
        %v4866 = vsub.f32 %v535, %v4865
        %v4867 = vand.u32 %v4866, 4294901760
        %4868 = vmatpush.msra.mxu0 %v4867
        %v4869 = vand.u32 %v534, 4294901760
        %v4870 = vsub.f32 %v534, %v4869
        %v4871 = vand.u32 %v4870, 4294901760
        %4872 = vmatpush.msra.mxu0 %v4871
        %v4873 = vand.u32 %v533, 4294901760
        %v4874 = vsub.f32 %v533, %v4873
        %v4875 = vand.u32 %v4874, 4294901760
        %4876 = vmatpush.msra.mxu0 %v4875
        %v4877 = vand.u32 %v532, 4294901760
        %v4878 = vsub.f32 %v532, %v4877
        %v4879 = vand.u32 %v4878, 4294901760
        %4880 = vmatpush.msra.mxu0 %v4879
        %v4881 = vand.u32 %v4431, 4294901760
        %4882 = vmatmul.f32.gmra.mxu0 %v4881
        %v4883 = vpop.f32.mrf.mxu0
        %v4884 = vadd.f32 %v4809, %v4883
        %v4885 = vand.u32 %v4432, 4294901760
        %4886 = vmatmul.f32.gmra.mxu0 %v4885
        %v4887 = vpop.f32.mrf.mxu0
        %v4888 = vadd.f32 %v4815, %v4887
        %4889 = vdwg.mxu0
        %v4890 = vand.u32 %v547, 4294901760
        %4891 = vmatpush.msra.mxu0 %v4890
        %v4892 = vand.u32 %v546, 4294901760
        %4893 = vmatpush.msra.mxu0 %v4892
        %v4894 = vand.u32 %v545, 4294901760
        %4895 = vmatpush.msra.mxu0 %v4894
        %v4896 = vand.u32 %v544, 4294901760
        %4897 = vmatpush.msra.mxu0 %v4896
        %v4898 = vand.u32 %v543, 4294901760
        %4899 = vmatpush.msra.mxu0 %v4898
        %v4900 = vand.u32 %v542, 4294901760
        %4901 = vmatpush.msra.mxu0 %v4900
        %v4902 = vand.u32 %v541, 4294901760
        %4903 = vmatpush.msra.mxu0 %v4902
        %v4904 = vand.u32 %v540, 4294901760
        %4905 = vmatpush.msra.mxu0 %v4904
        %v4906 = vand.u32 %v539, 4294901760
        %4907 = vmatpush.msra.mxu0 %v4906
        %v4908 = vand.u32 %v538, 4294901760
        %4909 = vmatpush.msra.mxu0 %v4908
        %v4910 = vand.u32 %v537, 4294901760
        %4911 = vmatpush.msra.mxu0 %v4910
        %v4912 = vand.u32 %v536, 4294901760
        %4913 = vmatpush.msra.mxu0 %v4912
        %v4914 = vand.u32 %v535, 4294901760
        %4915 = vmatpush.msra.mxu0 %v4914
        %v4916 = vand.u32 %v534, 4294901760
        %4917 = vmatpush.msra.mxu0 %v4916
        %v4918 = vand.u32 %v533, 4294901760
        %4919 = vmatpush.msra.mxu0 %v4918
        %v4920 = vand.u32 %v532, 4294901760
        %4921 = vmatpush.msra.mxu0 %v4920
        %v4922 = vand.u32 %v4431, 4294901760
        %4923 = vmatmul.f32.gmra.mxu0 %v4922
        %v4924 = vpop.f32.mrf.mxu0
        %v4925 = vadd.f32 %v4884, %v4924
        %v4926 = vand.u32 %v4432, 4294901760
        %4927 = vmatmul.f32.gmra.mxu0 %v4926
        %v4928 = vpop.f32.mrf.mxu0
        %v4929 = vadd.f32 %v4888, %v4928
        %4930 = vdwg.mxu0
        %v4931 = vand.u32 %v547, 4294901760
        %4932 = vmatpush.msra.mxu0 %v4931
        %v4933 = vand.u32 %v546, 4294901760
        %4934 = vmatpush.msra.mxu0 %v4933
        %v4935 = vand.u32 %v545, 4294901760
        %4936 = vmatpush.msra.mxu0 %v4935
        %v4937 = vand.u32 %v544, 4294901760
        %4938 = vmatpush.msra.mxu0 %v4937
        %v4939 = vand.u32 %v543, 4294901760
        %4940 = vmatpush.msra.mxu0 %v4939
        %v4941 = vand.u32 %v542, 4294901760
        %4942 = vmatpush.msra.mxu0 %v4941
        %v4943 = vand.u32 %v541, 4294901760
        %4944 = vmatpush.msra.mxu0 %v4943
        %v4945 = vand.u32 %v540, 4294901760
        %4946 = vmatpush.msra.mxu0 %v4945
        %v4947 = vand.u32 %v539, 4294901760
        %4948 = vmatpush.msra.mxu0 %v4947
        %v4949 = vand.u32 %v538, 4294901760
        %4950 = vmatpush.msra.mxu0 %v4949
        %v4951 = vand.u32 %v537, 4294901760
        %4952 = vmatpush.msra.mxu0 %v4951
        %v4953 = vand.u32 %v536, 4294901760
        %4954 = vmatpush.msra.mxu0 %v4953
        %v4955 = vand.u32 %v535, 4294901760
        %4956 = vmatpush.msra.mxu0 %v4955
        %v4957 = vand.u32 %v534, 4294901760
        %4958 = vmatpush.msra.mxu0 %v4957
        %v4959 = vand.u32 %v533, 4294901760
        %4960 = vmatpush.msra.mxu0 %v4959
        %v4961 = vand.u32 %v532, 4294901760
        %4962 = vmatpush.msra.mxu0 %v4961
        %v4963 = vand.u32 %v4551, 4294901760
        %v4964 = vsub.f32 %v4551, %v4963
        %v4965 = vand.u32 %v4964, 4294901760
        %v4966 = vsub.f32 %v4964, %v4965
        %v4967 = vand.u32 %v4966, 4294901760
        %4968 = vmatmul.f32.gmra.mxu0 %v4967
        %v4969 = vpop.f32.mrf.mxu0
        %v4970 = vadd.f32 0.0, %v4969
        %v4971 = vand.u32 %v4558, 4294901760
        %v4972 = vsub.f32 %v4558, %v4971
        %v4973 = vand.u32 %v4972, 4294901760
        %v4974 = vsub.f32 %v4972, %v4973
        %v4975 = vand.u32 %v4974, 4294901760
        %4976 = vmatmul.f32.gmra.mxu0 %v4975
        %v4977 = vpop.f32.mrf.mxu0
        %v4978 = vadd.f32 0.0, %v4977
        %4979 = vdwg.mxu0
        %v4980 = vand.u32 %v547, 4294901760
        %v4981 = vsub.f32 %v547, %v4980
        %v4982 = vand.u32 %v4981, 4294901760
        %v4983 = vsub.f32 %v4981, %v4982
        %v4984 = vand.u32 %v4983, 4294901760
        %4985 = vmatpush.msra.mxu0 %v4984
        %v4986 = vand.u32 %v546, 4294901760
        %v4987 = vsub.f32 %v546, %v4986
        %v4988 = vand.u32 %v4987, 4294901760
        %v4989 = vsub.f32 %v4987, %v4988
        %v4990 = vand.u32 %v4989, 4294901760
        %4991 = vmatpush.msra.mxu0 %v4990
        %v4992 = vand.u32 %v545, 4294901760
        %v4993 = vsub.f32 %v545, %v4992
        %v4994 = vand.u32 %v4993, 4294901760
        %v4995 = vsub.f32 %v4993, %v4994
        %v4996 = vand.u32 %v4995, 4294901760
        %4997 = vmatpush.msra.mxu0 %v4996
        %v4998 = vand.u32 %v544, 4294901760
        %v4999 = vsub.f32 %v544, %v4998
        %v5000 = vand.u32 %v4999, 4294901760
        %v5001 = vsub.f32 %v4999, %v5000
        %v5002 = vand.u32 %v5001, 4294901760
        %5003 = vmatpush.msra.mxu0 %v5002
        %v5004 = vand.u32 %v543, 4294901760
        %v5005 = vsub.f32 %v543, %v5004
        %v5006 = vand.u32 %v5005, 4294901760
        %v5007 = vsub.f32 %v5005, %v5006
        %v5008 = vand.u32 %v5007, 4294901760
        %5009 = vmatpush.msra.mxu0 %v5008
        %v5010 = vand.u32 %v542, 4294901760
        %v5011 = vsub.f32 %v542, %v5010
        %v5012 = vand.u32 %v5011, 4294901760
        %v5013 = vsub.f32 %v5011, %v5012
        %v5014 = vand.u32 %v5013, 4294901760
        %5015 = vmatpush.msra.mxu0 %v5014
        %v5016 = vand.u32 %v541, 4294901760
        %v5017 = vsub.f32 %v541, %v5016
        %v5018 = vand.u32 %v5017, 4294901760
        %v5019 = vsub.f32 %v5017, %v5018
        %v5020 = vand.u32 %v5019, 4294901760
        %5021 = vmatpush.msra.mxu0 %v5020
        %v5022 = vand.u32 %v540, 4294901760
        %v5023 = vsub.f32 %v540, %v5022
        %v5024 = vand.u32 %v5023, 4294901760
        %v5025 = vsub.f32 %v5023, %v5024
        %v5026 = vand.u32 %v5025, 4294901760
        %5027 = vmatpush.msra.mxu0 %v5026
        %v5028 = vand.u32 %v539, 4294901760
        %v5029 = vsub.f32 %v539, %v5028
        %v5030 = vand.u32 %v5029, 4294901760
        %v5031 = vsub.f32 %v5029, %v5030
        %v5032 = vand.u32 %v5031, 4294901760
        %5033 = vmatpush.msra.mxu0 %v5032
        %v5034 = vand.u32 %v538, 4294901760
        %v5035 = vsub.f32 %v538, %v5034
        %v5036 = vand.u32 %v5035, 4294901760
        %v5037 = vsub.f32 %v5035, %v5036
        %v5038 = vand.u32 %v5037, 4294901760
        %5039 = vmatpush.msra.mxu0 %v5038
        %v5040 = vand.u32 %v537, 4294901760
        %v5041 = vsub.f32 %v537, %v5040
        %v5042 = vand.u32 %v5041, 4294901760
        %v5043 = vsub.f32 %v5041, %v5042
        %v5044 = vand.u32 %v5043, 4294901760
        %5045 = vmatpush.msra.mxu0 %v5044
        %v5046 = vand.u32 %v536, 4294901760
        %v5047 = vsub.f32 %v536, %v5046
        %v5048 = vand.u32 %v5047, 4294901760
        %v5049 = vsub.f32 %v5047, %v5048
        %v5050 = vand.u32 %v5049, 4294901760
        %5051 = vmatpush.msra.mxu0 %v5050
        %v5052 = vand.u32 %v535, 4294901760
        %v5053 = vsub.f32 %v535, %v5052
        %v5054 = vand.u32 %v5053, 4294901760
        %v5055 = vsub.f32 %v5053, %v5054
        %v5056 = vand.u32 %v5055, 4294901760
        %5057 = vmatpush.msra.mxu0 %v5056
        %v5058 = vand.u32 %v534, 4294901760
        %v5059 = vsub.f32 %v534, %v5058
        %v5060 = vand.u32 %v5059, 4294901760
        %v5061 = vsub.f32 %v5059, %v5060
        %v5062 = vand.u32 %v5061, 4294901760
        %5063 = vmatpush.msra.mxu0 %v5062
        %v5064 = vand.u32 %v533, 4294901760
        %v5065 = vsub.f32 %v533, %v5064
        %v5066 = vand.u32 %v5065, 4294901760
        %v5067 = vsub.f32 %v5065, %v5066
        %v5068 = vand.u32 %v5067, 4294901760
        %5069 = vmatpush.msra.mxu0 %v5068
        %v5070 = vand.u32 %v532, 4294901760
        %v5071 = vsub.f32 %v532, %v5070
        %v5072 = vand.u32 %v5071, 4294901760
        %v5073 = vsub.f32 %v5071, %v5072
        %v5074 = vand.u32 %v5073, 4294901760
        %5075 = vmatpush.msra.mxu0 %v5074
        %v5076 = vand.u32 %v4551, 4294901760
        %5077 = vmatmul.f32.gmra.mxu0 %v5076
        %v5078 = vpop.f32.mrf.mxu0
        %v5079 = vadd.f32 %v4970, %v5078
        %v5080 = vand.u32 %v4558, 4294901760
        %5081 = vmatmul.f32.gmra.mxu0 %v5080
        %v5082 = vpop.f32.mrf.mxu0
        %v5083 = vadd.f32 %v4978, %v5082
        %5084 = vdwg.mxu0
        %v5085 = vand.u32 %v547, 4294901760
        %v5086 = vsub.f32 %v547, %v5085
        %5087 = vmatpush.msra.mxu0 %v5086
        %v5088 = vand.u32 %v546, 4294901760
        %v5089 = vsub.f32 %v546, %v5088
        %5090 = vmatpush.msra.mxu0 %v5089
        %v5091 = vand.u32 %v545, 4294901760
        %v5092 = vsub.f32 %v545, %v5091
        %5093 = vmatpush.msra.mxu0 %v5092
        %v5094 = vand.u32 %v544, 4294901760
        %v5095 = vsub.f32 %v544, %v5094
        %5096 = vmatpush.msra.mxu0 %v5095
        %v5097 = vand.u32 %v543, 4294901760
        %v5098 = vsub.f32 %v543, %v5097
        %5099 = vmatpush.msra.mxu0 %v5098
        %v5100 = vand.u32 %v542, 4294901760
        %v5101 = vsub.f32 %v542, %v5100
        %5102 = vmatpush.msra.mxu0 %v5101
        %v5103 = vand.u32 %v541, 4294901760
        %v5104 = vsub.f32 %v541, %v5103
        %5105 = vmatpush.msra.mxu0 %v5104
        %v5106 = vand.u32 %v540, 4294901760
        %v5107 = vsub.f32 %v540, %v5106
        %5108 = vmatpush.msra.mxu0 %v5107
        %v5109 = vand.u32 %v539, 4294901760
        %v5110 = vsub.f32 %v539, %v5109
        %5111 = vmatpush.msra.mxu0 %v5110
        %v5112 = vand.u32 %v538, 4294901760
        %v5113 = vsub.f32 %v538, %v5112
        %5114 = vmatpush.msra.mxu0 %v5113
        %v5115 = vand.u32 %v537, 4294901760
        %v5116 = vsub.f32 %v537, %v5115
        %5117 = vmatpush.msra.mxu0 %v5116
        %v5118 = vand.u32 %v536, 4294901760
        %v5119 = vsub.f32 %v536, %v5118
        %5120 = vmatpush.msra.mxu0 %v5119
        %v5121 = vand.u32 %v535, 4294901760
        %v5122 = vsub.f32 %v535, %v5121
        %5123 = vmatpush.msra.mxu0 %v5122
        %v5124 = vand.u32 %v534, 4294901760
        %v5125 = vsub.f32 %v534, %v5124
        %5126 = vmatpush.msra.mxu0 %v5125
        %v5127 = vand.u32 %v533, 4294901760
        %v5128 = vsub.f32 %v533, %v5127
        %5129 = vmatpush.msra.mxu0 %v5128
        %v5130 = vand.u32 %v532, 4294901760
        %v5131 = vsub.f32 %v532, %v5130
        %5132 = vmatpush.msra.mxu0 %v5131
        %v5133 = vand.u32 %v4551, 4294901760
        %v5134 = vsub.f32 %v4551, %v5133
        %5135 = vmatmul.f32.gmra.mxu0 %v5134
        %v5136 = vpop.f32.mrf.mxu0
        %v5137 = vadd.f32 %v5079, %v5136
        %v5138 = vand.u32 %v4558, 4294901760
        %v5139 = vsub.f32 %v4558, %v5138
        %5140 = vmatmul.f32.gmra.mxu0 %v5139
        %v5141 = vpop.f32.mrf.mxu0
        %v5142 = vadd.f32 %v5083, %v5141
        %5143 = vdwg.mxu0
        %v5144 = vand.u32 %v547, 4294901760
        %5145 = vmatpush.msra.mxu0 %v5144
        %v5146 = vand.u32 %v546, 4294901760
        %5147 = vmatpush.msra.mxu0 %v5146
        %v5148 = vand.u32 %v545, 4294901760
        %5149 = vmatpush.msra.mxu0 %v5148
        %v5150 = vand.u32 %v544, 4294901760
        %5151 = vmatpush.msra.mxu0 %v5150
        %v5152 = vand.u32 %v543, 4294901760
        %5153 = vmatpush.msra.mxu0 %v5152
        %v5154 = vand.u32 %v542, 4294901760
        %5155 = vmatpush.msra.mxu0 %v5154
        %v5156 = vand.u32 %v541, 4294901760
        %5157 = vmatpush.msra.mxu0 %v5156
        %v5158 = vand.u32 %v540, 4294901760
        %5159 = vmatpush.msra.mxu0 %v5158
        %v5160 = vand.u32 %v539, 4294901760
        %5161 = vmatpush.msra.mxu0 %v5160
        %v5162 = vand.u32 %v538, 4294901760
        %5163 = vmatpush.msra.mxu0 %v5162
        %v5164 = vand.u32 %v537, 4294901760
        %5165 = vmatpush.msra.mxu0 %v5164
        %v5166 = vand.u32 %v536, 4294901760
        %5167 = vmatpush.msra.mxu0 %v5166
        %v5168 = vand.u32 %v535, 4294901760
        %5169 = vmatpush.msra.mxu0 %v5168
        %v5170 = vand.u32 %v534, 4294901760
        %5171 = vmatpush.msra.mxu0 %v5170
        %v5172 = vand.u32 %v533, 4294901760
        %5173 = vmatpush.msra.mxu0 %v5172
        %v5174 = vand.u32 %v532, 4294901760
        %5175 = vmatpush.msra.mxu0 %v5174
        %v5176 = vand.u32 %v4551, 4294901760
        %v5177 = vsub.f32 %v4551, %v5176
        %v5178 = vand.u32 %v5177, 4294901760
        %5179 = vmatmul.f32.gmra.mxu0 %v5178
        %v5180 = vpop.f32.mrf.mxu0
        %v5181 = vadd.f32 %v5137, %v5180
        %v5182 = vand.u32 %v4558, 4294901760
        %v5183 = vsub.f32 %v4558, %v5182
        %v5184 = vand.u32 %v5183, 4294901760
        %5185 = vmatmul.f32.gmra.mxu0 %v5184
        %v5186 = vpop.f32.mrf.mxu0
        %v5187 = vadd.f32 %v5142, %v5186
        %5188 = vdwg.mxu0
        %v5189 = vand.u32 %v547, 4294901760
        %v5190 = vsub.f32 %v547, %v5189
        %v5191 = vand.u32 %v5190, 4294901760
        %5192 = vmatpush.msra.mxu0 %v5191
        %v5193 = vand.u32 %v546, 4294901760
        %v5194 = vsub.f32 %v546, %v5193
        %v5195 = vand.u32 %v5194, 4294901760
        %5196 = vmatpush.msra.mxu0 %v5195
        %v5197 = vand.u32 %v545, 4294901760
        %v5198 = vsub.f32 %v545, %v5197
        %v5199 = vand.u32 %v5198, 4294901760
        %5200 = vmatpush.msra.mxu0 %v5199
        %v5201 = vand.u32 %v544, 4294901760
        %v5202 = vsub.f32 %v544, %v5201
        %v5203 = vand.u32 %v5202, 4294901760
        %5204 = vmatpush.msra.mxu0 %v5203
        %v5205 = vand.u32 %v543, 4294901760
        %v5206 = vsub.f32 %v543, %v5205
        %v5207 = vand.u32 %v5206, 4294901760
        %5208 = vmatpush.msra.mxu0 %v5207
        %v5209 = vand.u32 %v542, 4294901760
        %v5210 = vsub.f32 %v542, %v5209
        %v5211 = vand.u32 %v5210, 4294901760
        %5212 = vmatpush.msra.mxu0 %v5211
        %v5213 = vand.u32 %v541, 4294901760
        %v5214 = vsub.f32 %v541, %v5213
        %v5215 = vand.u32 %v5214, 4294901760
        %5216 = vmatpush.msra.mxu0 %v5215
        %v5217 = vand.u32 %v540, 4294901760
        %v5218 = vsub.f32 %v540, %v5217
        %v5219 = vand.u32 %v5218, 4294901760
        %5220 = vmatpush.msra.mxu0 %v5219
        %v5221 = vand.u32 %v539, 4294901760
        %v5222 = vsub.f32 %v539, %v5221
        %v5223 = vand.u32 %v5222, 4294901760
        %5224 = vmatpush.msra.mxu0 %v5223
        %v5225 = vand.u32 %v538, 4294901760
        %v5226 = vsub.f32 %v538, %v5225
        %v5227 = vand.u32 %v5226, 4294901760
        %5228 = vmatpush.msra.mxu0 %v5227
        %v5229 = vand.u32 %v537, 4294901760
        %v5230 = vsub.f32 %v537, %v5229
        %v5231 = vand.u32 %v5230, 4294901760
        %5232 = vmatpush.msra.mxu0 %v5231
        %v5233 = vand.u32 %v536, 4294901760
        %v5234 = vsub.f32 %v536, %v5233
        %v5235 = vand.u32 %v5234, 4294901760
        %5236 = vmatpush.msra.mxu0 %v5235
        %v5237 = vand.u32 %v535, 4294901760
        %v5238 = vsub.f32 %v535, %v5237
        %v5239 = vand.u32 %v5238, 4294901760
        %5240 = vmatpush.msra.mxu0 %v5239
        %v5241 = vand.u32 %v534, 4294901760
        %v5242 = vsub.f32 %v534, %v5241
        %v5243 = vand.u32 %v5242, 4294901760
        %5244 = vmatpush.msra.mxu0 %v5243
        %v5245 = vand.u32 %v533, 4294901760
        %v5246 = vsub.f32 %v533, %v5245
        %v5247 = vand.u32 %v5246, 4294901760
        %5248 = vmatpush.msra.mxu0 %v5247
        %v5249 = vand.u32 %v532, 4294901760
        %v5250 = vsub.f32 %v532, %v5249
        %v5251 = vand.u32 %v5250, 4294901760
        %5252 = vmatpush.msra.mxu0 %v5251
        %v5253 = vand.u32 %v4551, 4294901760
        %5254 = vmatmul.f32.gmra.mxu0 %v5253
        %v5255 = vpop.f32.mrf.mxu0
        %v5256 = vadd.f32 %v5181, %v5255
        %v5257 = vand.u32 %v4558, 4294901760
        %5258 = vmatmul.f32.gmra.mxu0 %v5257
        %v5259 = vpop.f32.mrf.mxu0
        %v5260 = vadd.f32 %v5187, %v5259
        %5261 = vdwg.mxu0
        %v5262 = vand.u32 %v547, 4294901760
        %5263 = vmatpush.msra.mxu0 %v5262
        %v5264 = vand.u32 %v546, 4294901760
        %5265 = vmatpush.msra.mxu0 %v5264
        %v5266 = vand.u32 %v545, 4294901760
        %5267 = vmatpush.msra.mxu0 %v5266
        %v5268 = vand.u32 %v544, 4294901760
        %5269 = vmatpush.msra.mxu0 %v5268
        %v5270 = vand.u32 %v543, 4294901760
        %5271 = vmatpush.msra.mxu0 %v5270
        %v5272 = vand.u32 %v542, 4294901760
        %5273 = vmatpush.msra.mxu0 %v5272
        %v5274 = vand.u32 %v541, 4294901760
        %5275 = vmatpush.msra.mxu0 %v5274
        %v5276 = vand.u32 %v540, 4294901760
        %5277 = vmatpush.msra.mxu0 %v5276
        %v5278 = vand.u32 %v539, 4294901760
        %5279 = vmatpush.msra.mxu0 %v5278
        %v5280 = vand.u32 %v538, 4294901760
        %5281 = vmatpush.msra.mxu0 %v5280
        %v5282 = vand.u32 %v537, 4294901760
        %5283 = vmatpush.msra.mxu0 %v5282
        %v5284 = vand.u32 %v536, 4294901760
        %5285 = vmatpush.msra.mxu0 %v5284
        %v5286 = vand.u32 %v535, 4294901760
        %5287 = vmatpush.msra.mxu0 %v5286
        %v5288 = vand.u32 %v534, 4294901760
        %5289 = vmatpush.msra.mxu0 %v5288
        %v5290 = vand.u32 %v533, 4294901760
        %5291 = vmatpush.msra.mxu0 %v5290
        %v5292 = vand.u32 %v532, 4294901760
        %5293 = vmatpush.msra.mxu0 %v5292
        %v5294 = vand.u32 %v4551, 4294901760
        %5295 = vmatmul.f32.gmra.mxu0 %v5294
        %v5296 = vpop.f32.mrf.mxu0
        %v5297 = vadd.f32 %v5256, %v5296
        %v5298 = vand.u32 %v4558, 4294901760
        %5299 = vmatmul.f32.gmra.mxu0 %v5298
        %v5300 = vpop.f32.mrf.mxu0
        %v5301 = vadd.f32 %v5260, %v5300
        %5302 = vdwg.mxu0
        %v5303 = vmul.f32 %v4413, %v4925
        %v5304 = vmul.f32 %v4417, %v4929
        %5305 = vadd.xlane.f32.xlu0 %v5303
        %v5306 = vpop.xlane.xlu0 %5305
        %5307 = vadd.xlane.f32.xlu0 %v5304
        %v5308 = vpop.xlane.xlu0 %5307
        %v5309 = vmul.f32 %v4413, %v5297
        %v5310 = vmul.f32 %v4417, %v5301
        %5311 = vadd.xlane.f32.xlu0 %v5309
        %v5312 = vpop.xlane.xlu0 %5311
        %5313 = vadd.xlane.f32.xlu0 %v5310
        %v5314 = vpop.xlane.xlu0 %5313
        %v5315 = vmin.f32 %v5306, 0.0
        %v5316 = vmin.f32 %v5308, 0.0
        %v5317 = vand.u32 2147483647, %v5306
        %v5318 = vand.u32 2147483647, %v5308
        %v5319 = vsub.f32 0.0, %v5317
        %v5320 = vsub.f32 0.0, %v5318
        %v5321 = vmul.f32 %v5319, 1.442695
        %v5322 = vpow.pop %v5321
        %v5323 = vmul.f32 %v5320, 1.442695
        %v5324 = vpow.pop %v5323
        %v5325 = vadd.f32 %v5322, 1.0
        %v5326 = vadd.f32 %v5324, 1.0
        %v5327 = vlog2.pop %v5325
        %v5328 = vmul.f32 %v5327, 0.6931472
        %v5329 = vlog2.pop %v5326
        %v5330 = vmul.f32 %v5329, 0.6931472
        %v5331 = vsub.f32 %v5315, %v5328
        %v5332 = vsub.f32 %v5316, %v5330
        %v5333 = vsub.f32 0.0, %v5312
        %v5334 = vsub.f32 0.0, %v5314
        %v5335 = vmin.f32 %v5333, 0.0
        %v5336 = vmin.f32 %v5334, 0.0
        %v5337 = vand.u32 2147483647, %v5333
        %v5338 = vand.u32 2147483647, %v5334
        %v5339 = vsub.f32 0.0, %v5337
        %v5340 = vsub.f32 0.0, %v5338
        %v5341 = vmul.f32 %v5339, 1.442695
        %v5342 = vpow.pop %v5341
        %v5343 = vmul.f32 %v5340, 1.442695
        %v5344 = vpow.pop %v5343
        %v5345 = vadd.f32 %v5342, 1.0
        %v5346 = vadd.f32 %v5344, 1.0
        %v5347 = vlog2.pop %v5345
        %v5348 = vmul.f32 %v5347, 0.6931472
        %v5349 = vlog2.pop %v5346
        %v5350 = vmul.f32 %v5349, 0.6931472
        %v5351 = vsub.f32 %v5335, %v5348
        %v5352 = vsub.f32 %v5336, %v5350
        %v5353 = vadd.f32 %v5331, %v5351
        %v5354 = vadd.f32 %v5332, %v5352
        %vm5355 = vcmask 7168
        %5356 = vst.msk [vmem:[%s514] sm:$0xff] %vm5355, %v5353
        %5357 = vst.msk [vmem:[%s514 + $0x8] sm:$0xff] %vm5355, %v5354
        %s5358 = smul.u32 2, %s18
        %p5359 = scmp.lt.s32.totalorder %s5358, 3
        %s5360 = scalar_select %p5359, %s5358, 3
        %s5361 = smul.addr %s5360, 8
        %s5362 = scalar_lea.vmem %s7, %s5361
        // Predicated region
        $region125: #{tpu_custom_call.1} parent=115 // pred_check
          %p5363 = pneg %p198
        $region126: #{tpu_custom_call.1} parent=115 // pred_check_branch
          %5365 = sbr.rel (%p5363) target = $region128
        $region127: #{tpu_custom_call.1} parent=115 // pred_region
          %s5366 = smul.u32 2, %s18
        $region128: #{tpu_custom_call.1} parent=115 // pred_fallthru
          _
      $region116: #{tpu_custom_call.1} parent=5 // pred_fallthru
        _
      %p5367 = scmp.le.s32.totalorder 2, %s13
      // Predicated region
      $region129: #{tpu_custom_call.1} parent=5 // pred_check
        %p5368 = pneg %p5367
      $region130: #{tpu_custom_call.1} parent=5 // pred_check_branch
        %5370 = sbr.rel (%p5368) target = $region132
      $region131: #{tpu_custom_call.1} parent=5 // pred_region
        %s5371 = ssub.s32 %s13, 2
        // Predicated region
        $region133: #{tpu_custom_call.1} parent=131 // pred_check
          %p5372 = pneg %p204
        $region134: #{tpu_custom_call.1} parent=131 // pred_check_branch
          %5374 = sbr.rel (%p5372) target = $region136
        $region135: #{tpu_custom_call.1} parent=131 // pred_region
          %s5375 = smul.u32 2, %s19
          %p5376 = scmp.lt.s32.totalorder %s5375, 3
          %s5377 = scalar_select %p5376, %s5375, 3
          %s5378 = smul.addr %s5377, 8
          %s5379 = scalar_lea.vmem %s7, %s5378
        $region136: #{tpu_custom_call.1} parent=131 // pred_fallthru
          _
      $region132: #{tpu_custom_call.1} parent=5 // pred_fallthru
        _
    $region6: #{tpu_custom_call.1} parent=1 // loop_footer
      %s17 = sadd.s32 1, %s13
    $region7: #{tpu_custom_call.1} parent=1 // loop_footer_branch
      %12 = sbr.rel target = $region3
    $region8: #{tpu_custom_call.1} parent=1 // loop_exit
      _

</llo_original>
